<compile_context>
chip_gen: v5e
topology: v5e:2x2
jax: 0.10.0
libtpu: 0.0.40
codegen_flags: <defaults>
</compile_context>

<pallas_src>
import math
import jax
import jax.numpy as jnp
from jax import lax
from jax.experimental import pallas as pl
from jax.experimental.pallas import tpu as pltpu

# ----------------------------- config (small, consistent with the module) ------------
BS = 2                    # batch size
HIDDEN = 32               # transformer.d_model (divisible by 32 for GroupNorm(32, .))
NQ = 8                    # num_queries (small)
N_DEC = 2                 # transformer.num_decoder_layers
L_TEXT = 8                # tokenized caption length
BERT_HIDDEN = 64          # bert hidden size (small stand-in for 768)
MAX_TEXT_LEN = 256        # module hardcodes self.max_text_len = 256
H = W = 8                 # detection backbone feature map spatial size
C_BACKBONE = 64           # backbone.num_channels[-1] (small stand-in)
Q_CHANNELS = (256, 512, 1024)   # feature_map_proj input: Conv2d(256+512+1024, hidden, 1)
Q_SPATIAL = (8, 4, 2)           # query-image pyramid resolutions (resized to first)
NUM_GROUPS = 32                 # GroupNorm(32, hidden_dim)


# ----------------------------- helpers (plain JAX, constant under jit) ----------------
def _interp_matrix_1d(n_in, n_out):
    """1-D interpolation matrix of F.interpolate(mode='bilinear', align_corners=True)."""
    if n_in == 1:
        return jnp.ones((n_out, 1), jnp.float32)
    if n_out == 1:
        return jnp.zeros((1, n_in), jnp.float32).at[0, 0].set(1.0)
    src = jnp.linspace(0.0, n_in - 1.0, n_out)
    i0 = jnp.floor(src).astype(jnp.int32)
    i1 = jnp.minimum(i0 + 1, n_in - 1)
    w = (src - i0).astype(jnp.float32)
    rows = jnp.arange(n_out)
    m = jnp.zeros((n_out, n_in), jnp.float32)
    m = m.at[rows, i0].add(1.0 - w)
    m = m.at[rows, i1].add(w)
    return m


def _xavier(key, fan_in, fan_out, shape):
    a = math.sqrt(6.0 / (fan_in + fan_out))
    return jax.random.uniform(key, shape, jnp.float32, -a, a)


# ----------------------------- the single fused Pallas kernel -------------------------
def fused_grounding_dino_head(bert_flat, mask3, hs2, ref2,
                              bfeat3, q0, q1, q2, p1t, p2t,
                              fm_w, fm_b, ip_w, ip_b, gmat, gn_g, gn_b,
                              fw0, fw1, fw2, fp_b,
                              bb_w1, bb_b1, bb_w2, bb_b2, bb_w3, bb_b3,
                              *, batch, text_len, num_layers, num_queries, group_size):
    """One pallas_call, one grid step: all operands (< ~3 MiB) live in VMEM.

    Returns:
      enc_flat  (B*L, D)          feat_map(bert_last_hidden)
      logits3   (Ld*B, nq, T)     ContrastiveEmbed, -inf on masked / padded columns
      coords2   (Ld*B*nq, 4)      sigmoid(bbox_MLP(hs) + inverse_sigmoid(reference))
      srcs3     (B, D, HW)        input_proj[0] = Conv1x1 + GroupNorm (NCHW orientation)
      qf3       (B, D, S0)        feature_map_proj(combine_features)  (NCHW orientation)
    """
    B, L, Ld, nq, gs = batch, text_len, num_layers, num_queries, group_size
    BL, _ = bert_flat.shape
    T = mask3.shape[-1]
    D = fm_w.shape[1]
    HWs = bfeat3.shape[2]
    S0 = q0.shape[2]
    f32, bf16 = jnp.float32, jnp.bfloat16

    def kernel(bert_ref, mask_ref, hs_ref, ref_ref,
               bfeat_ref, q0_ref, q1_ref, q2_ref, p1t_ref, p2t_ref,
               fmw_ref, fmb_ref, ipw_ref, ipb_ref, gmat_ref, gng_ref, gnb_ref,
               fw0_ref, fw1_ref, fw2_ref, fpb_ref,
               w1_ref, b1_ref, w2_ref, b2_ref, w3_ref, b3_ref,
               enc_out_ref, logit_out_ref, coord_out_ref, srcs_out_ref, qf_out_ref,
               txt_pad_ref):
        # ---- feat_map Linear: batched over all (B*L) token rows, bf16 MXU / f32 acc --
        enc_all = jnp.dot(bert_ref[...].astype(bf16), fmw_ref[...].astype(bf16),
                          preferred_element_type=f32) + fmb_ref[...]          # (B*L, D)
        enc_out_ref[...] = enc_all

        # ---- bbox MLP(hidden, hidden, 4, 3), batched over all (Ld*B*nq) query rows ---
        h_all = hs_ref[...]                                                   # (R, D)
        x = jnp.maximum(jnp.dot(h_all.astype(bf16), w1_ref[...].astype(bf16),
                                preferred_element_type=f32) + b1_ref[...], 0.0)
        x = jnp.maximum(jnp.dot(x.astype(bf16), w2_ref[...].astype(bf16),
                                preferred_element_type=f32) + b2_ref[...], 0.0)
        delta = jnp.dot(x.astype(bf16), w3_ref[...].astype(bf16),
                        preferred_element_type=f32) + b3_ref[...]             # (R, 4)
        r = jnp.clip(ref_ref[...], 0.0, 1.0)                                  # inverse_sigmoid
        unsig = delta + jnp.log(jnp.maximum(r, 1e-3) / jnp.maximum(1.0 - r, 1e-3))
        coord_out_ref[...] = 1.0 / (1.0 + jnp.exp(-unsig))                    # exact sigmoid

        # ---- ContrastiveEmbed: pad text to max_text_len in VMEM (zero-filled ONCE),
        #      logits = hs @ text^T with -inf on masked / padded columns --------------
        txt_pad_ref[...] = jnp.zeros((T, D), f32)
        hs_bf = h_all.astype(bf16)
        for b in range(B):
            txt_pad_ref[0:L, :] = enc_all[b * L:(b + 1) * L, :]
            txt_bf = txt_pad_ref[...].astype(bf16)                            # (T, D)
            mask_b = mask_ref[b] > 0                                          # (1, T)
            for l in range(Ld):
                idx = l * B + b
                h_lb = hs_bf[idx * nq:(idx + 1) * nq, :]                      # (nq, D)
                logits = lax.dot_general(h_lb, txt_bf, (((1,), (1,)), ((), ())),
                                         preferred_element_type=f32)          # (nq, T)
                logit_out_ref[idx] = jnp.where(mask_b, logits, -jnp.inf)

        # ---- image path (NCHW orientation: channels on sublanes, spatial on lanes) ---
        ipw_bf = ipw_ref[...].astype(bf16)
        fw0_bf = fw0_ref[...].astype(bf16)
        fw1_bf = fw1_ref[...].astype(bf16)
        fw2_bf = fw2_ref[...].astype(bf16)
        gng, gnb = gng_ref[...], gnb_ref[...]
        for b in range(B):
            # input_proj[0]: 1x1 conv (matmul) + GroupNorm(num_groups, D)
            y = jnp.dot(ipw_bf, bfeat_ref[b].astype(bf16),
                        preferred_element_type=f32) + ipb_ref[...]            # (D, HW)
            mu = jnp.mean(y, axis=1, keepdims=True)                           # (D, 1)
            if gs == 1:                 # per-channel groups: no group averaging needed
                gmu = mu
            else:                       # general case: block-diagonal group averaging
                gmu = jnp.dot(gmat_ref[...], mu, preferred_element_type=f32)
            d = y - gmu
            ex2 = jnp.mean(d * d, axis=1, keepdims=True)
            gvar = ex2 if gs == 1 else jnp.dot(gmat_ref[...], ex2,
                                               preferred_element_type=f32)
            srcs_out_ref[b] = d * lax.rsqrt(gvar + 1e-5) * gng + gnb

            # feature_map_proj: 1x1 conv and bilinear resize commute -> contract each
            # level's channels at native resolution, then resize the D-channel results
            # with the precomputed interpolation matrices and sum.
            z0 = jnp.dot(fw0_bf, q0_ref[b].astype(bf16), preferred_element_type=f32)
            z1 = jnp.dot(fw1_bf, q1_ref[b].astype(bf16), preferred_element_type=f32)
            z2 = jnp.dot(fw2_bf, q2_ref[b].astype(bf16), preferred_element_type=f32)
            y1 = jnp.dot(z1, p1t_ref[...], preferred_element_type=f32)        # (D, S0)
            y2 = jnp.dot(z2, p2t_ref[...], preferred_element_type=f32)        # (D, S0)
            qf_out_ref[b] = z0 + y1 + y2 + fpb_ref[...]

    out_shape = (jax.ShapeDtypeStruct((BL, D), f32),
                 jax.ShapeDtypeStruct((Ld * B, nq, T), f32),
                 jax.ShapeDtypeStruct((Ld * B * nq, 4), f32),
                 jax.ShapeDtypeStruct((B, D, HWs), f32),
                 jax.ShapeDtypeStruct((B, D, S0), f32))

    # Single launch, grid=() (one step): no per-grid-step overhead, no HBM round-trips
    # for intermediates, weights DMA'd exactly once.
    # TODO(synk): at real GroundingDINO sizes (hidden=256, H*W ~ 1e4+) re-introduce a
    #             row/batch grid with pltpu.CORE_PARALLEL for v7x's two TensorCores and
    #             re-derive block sizes against v7x's 64 MiB VMEM.
    return pl.pallas_call(
        kernel,
        out_shape=out_shape,
        scratch_shapes=[pltpu.VMEM((T, D), f32)],
    )(bert_flat, mask3, hs2, ref2, bfeat3, q0, q1, q2, p1t, p2t,
      fm_w, fm_b, ip_w, ip_b, gmat, gn_g, gn_b, fw0, fw1, fw2, fp_b,
      bb_w1, bb_b1, bb_w2, bb_b2, bb_w3, bb_b3)


# ----------------------------- parameters ---------------------------------------------
def init_params(key):
    ks = jax.random.split(key, 8)
    cin_total = sum(Q_CHANNELS)
    return {
        # feat_map: Linear(bert_hidden, hidden) — stored as W^T (in, out); zero bias
        "feat_map_w": _xavier(ks[0], BERT_HIDDEN, HIDDEN, (BERT_HIDDEN, HIDDEN)),
        "feat_map_b": jnp.zeros((HIDDEN,), jnp.float32),
        # input_proj[0]: Conv2d(C_backbone, hidden, 1), PyTorch (Cout, Cin) layout
        "input_proj_w": _xavier(ks[1], C_BACKBONE, HIDDEN, (HIDDEN, C_BACKBONE)),
        "input_proj_b": jnp.zeros((HIDDEN,), jnp.float32),
        "gn_gamma": jnp.ones((HIDDEN,), jnp.float32),
        "gn_beta": jnp.zeros((HIDDEN,), jnp.float32),
        # feature_map_proj: Conv2d(256+512+1024, hidden, 1), PyTorch (Cout, Cin) layout
        "fproj_w": _xavier(ks[2], cin_total, HIDDEN, (HIDDEN, cin_total)),
        "fproj_b": 0.01 * jax.random.normal(ks[3], (HIDDEN,), jnp.float32),
        # bbox_embed MLP(hidden, hidden, 4, 3); last layer zero-init per the module
        "bb_w1": _xavier(ks[4], HIDDEN, HIDDEN, (HIDDEN, HIDDEN)),
        "bb_b1": 0.01 * jax.random.normal(ks[5], (HIDDEN,), jnp.float32),
        "bb_w2": _xavier(ks[6], HIDDEN, HIDDEN, (HIDDEN, HIDDEN)),
        "bb_b2": 0.01 * jax.random.normal(ks[7], (HIDDEN,), jnp.float32),
        "bb_w3": jnp.zeros((HIDDEN, 4), jnp.float32),
        "bb_b3": jnp.zeros((4,), jnp.float32),
    }


# ----------------------------- forward (wrapper around the fused kernel) ---------------
def grounding_dino_forward(params, bert_last_hidden, text_token_mask,
                           backbone_feat_nchw, query_pyramid, hs, reference):
    B, L, BH = bert_last_hidden.shape
    D = HIDDEN
    Ld, _, nq, _ = hs.shape
    T = MAX_TEXT_LEN

    # TODO(synk): backbone (Swin/ResNet), BERT encoder + tokenizer, roi_align exemplar
    #             tokens / add_exemplar_tokens, target/query adapters and the
    #             deformable transformer are external modules; their outputs
    #             (bert_last_hidden, backbone features, hs, reference) are inputs here
    #             (num_exemplars == 0, two_stage_type == 'no' path).

    # text mask padded to max_text_len (== out['text_mask'] construction in the module)
    mask_pad = jnp.zeros((B, T), jnp.int32).at[:, :L].set(text_token_mask.astype(jnp.int32))

    # backbone feature NCHW -> (B, C, H*W): free reshape, channels stay on sublanes
    _, C, Hh, Ww = backbone_feat_nchw.shape
    bfeat3 = backbone_feat_nchw.reshape(B, C, Hh * Ww)

    # query pyramid NCHW -> (B, C_l, h_l*w_l) + per-level bilinear-resize matrices
    h0, w0 = query_pyramid[0].shape[-2:]
    q_rows = [f.reshape(B, f.shape[1], f.shape[2] * f.shape[3]) for f in query_pyramid]
    p_t = []
    for f in query_pyramid[1:]:
        hl, wl = f.shape[-2:]
        p = jnp.kron(_interp_matrix_1d(hl, h0), _interp_matrix_1d(wl, w0))  # (h0*w0, hl*wl)
        p_t.append(p.T)

    # per-level column slices of the combined 1x1-conv weight
    fw = params["fproj_w"]
    c0, c1, _ = Q_CHANNELS
    fw0, fw1, fw2 = fw[:, :c0], fw[:, c0:c0 + c1], fw[:, c0 + c1:]

    gs = D // NUM_GROUPS
    gmat = jnp.kron(jnp.eye(NUM_GROUPS, dtype=jnp.float32),
                    jnp.ones((gs, gs), jnp.float32)) / gs

    hs2 = hs.reshape(Ld * B * nq, D)
    ref2 = reference[:-1].reshape(Ld * B * nq, 4)

    enc_flat, logits3, coords2, srcs3, qf3 = fused_grounding_dino_head(
        bert_last_hidden.reshape(B * L, BH), mask_pad.reshape(B, 1, T), hs2, ref2,
        bfeat3, q_rows[0], q_rows[1], q_rows[2], p_t[0], p_t[1],
        params["feat_map_w"], params["feat_map_b"].reshape(1, D),
        params["input_proj_w"], params["input_proj_b"].reshape(D, 1),
        gmat, params["gn_gamma"].reshape(D, 1), params["gn_beta"].reshape(D, 1),
        fw0, fw1, fw2, params["fproj_b"].reshape(D, 1),
        params["bb_w1"], params["bb_b1"].reshape(1, D),
        params["bb_w2"], params["bb_b2"].reshape(1, D),
        params["bb_w3"], params["bb_b3"].reshape(1, 4),
        batch=B, text_len=L, num_layers=Ld, num_queries=nq, group_size=gs)

    outputs_class = logits3.reshape(Ld, B, nq, T)
    outputs_coord = coords2.reshape(Ld, B, nq, 4)

    return {
        "pred_logits": outputs_class[-1],                        # (B, NQ, 256)
        "pred_boxes": outputs_coord[-1],                         # (B, NQ, 4)
        "text_mask": mask_pad.astype(bool),                      # (B, 256)
        # intermediates produced by the Pallas kernel (fed to the transformer in the
        # original model), kept in PyTorch's NCHW layout:
        "encoded_text": enc_flat.reshape(B, L, D),               # (B, L, hidden)
        "aux_srcs": srcs3.reshape(B, D, Hh, Ww),                 # input_proj[0] output
        "aux_query_features": qf3.reshape(B, D, h0, w0),         # combine_features output
    }


# ----------------------------- main ----------------------------------------------------
if __name__ == "__main__":
    key = jax.random.PRNGKey(0)
    k_param, k_bert, k_bb, k_qp, k_hs, k_ref = jax.random.split(key, 6)

    params = init_params(k_param)

    # synthetic BERT last_hidden_state and attention mask (caption lengths 8 and 6)
    bert_last_hidden = jax.random.normal(k_bert, (BS, L_TEXT, BERT_HIDDEN), jnp.float32)
    lengths = jnp.array([L_TEXT, L_TEXT - 2])
    text_token_mask = jnp.arange(L_TEXT)[None, :] < lengths[:, None]        # (BS, L) bool

    # synthetic detection backbone feature (NCHW) and query-image pyramid (NCHW levels)
    backbone_feat = jax.random.normal(k_bb, (BS, C_BACKBONE, H, W), jnp.float32)
    qkeys = jax.random.split(k_qp, len(Q_CHANNELS))
    query_pyramid = [jax.random.normal(qkeys[i],
                                       (BS, Q_CHANNELS[i], Q_SPATIAL[i], Q_SPATIAL[i]),
                                       jnp.float32)
                     for i in range(len(Q_CHANNELS))]

    # synthetic deformable-transformer outputs (external module)
    hs = 0.1 * jax.random.normal(k_hs, (N_DEC, BS, NQ, HIDDEN), jnp.float32)
    reference = jax.nn.sigmoid(jax.random.normal(k_ref, (N_DEC + 1, BS, NQ, 4),
                                                 jnp.float32))

    fwd = jax.jit(grounding_dino_forward)
    out = fwd(params, bert_last_hidden, text_token_mask,
              backbone_feat, query_pyramid, hs, reference)
    jax.block_until_ready(out)

    assert out["pred_logits"].shape == (BS, NQ, MAX_TEXT_LEN)
    assert out["pred_boxes"].shape == (BS, NQ, 4)
    assert out["text_mask"].shape == (BS, MAX_TEXT_LEN)
    assert out["encoded_text"].shape == (BS, L_TEXT, HIDDEN)
    assert out["aux_srcs"].shape == (BS, HIDDEN, H, W)
    assert out["aux_query_features"].shape == (BS, HIDDEN, Q_SPATIAL[0], Q_SPATIAL[0])
    boxes = out["pred_boxes"]
    assert bool(jnp.all(jnp.isfinite(boxes)))
    assert bool(jnp.all((boxes >= 0.0) & (boxes <= 1.0)))
    assert bool(jnp.all(jnp.isfinite(out["encoded_text"])))
    print("KERNEL_OK")
</pallas_src>

<mosaic_0001>
module attributes {stable_mosaic.version = 11 : i64} {
  func.func @kernel(%arg0: memref<16x64xf32, #tpu.memory_space<vmem>>, %arg1: memref<2x1x256xi32, #tpu.memory_space<vmem>>, %arg2: memref<32x32xf32, #tpu.memory_space<vmem>>, %arg3: memref<32x4xf32, #tpu.memory_space<vmem>>, %arg4: memref<2x64x64xf32, #tpu.memory_space<vmem>>, %arg5: memref<2x256x64xf32, #tpu.memory_space<vmem>>, %arg6: memref<2x512x16xf32, #tpu.memory_space<vmem>>, %arg7: memref<2x1024x4xf32, #tpu.memory_space<vmem>>, %arg8: memref<16x64xf32, #tpu.memory_space<vmem>>, %arg9: memref<4x64xf32, #tpu.memory_space<vmem>>, %arg10: memref<64x32xf32, #tpu.memory_space<vmem>>, %arg11: memref<1x32xf32, #tpu.memory_space<vmem>>, %arg12: memref<32x64xf32, #tpu.memory_space<vmem>>, %arg13: memref<32x1xf32, #tpu.memory_space<vmem>>, %arg14: memref<32x32xf32, #tpu.memory_space<vmem>>, %arg15: memref<32x1xf32, #tpu.memory_space<vmem>>, %arg16: memref<32x1xf32, #tpu.memory_space<vmem>>, %arg17: memref<32x256xf32, #tpu.memory_space<vmem>>, %arg18: memref<32x512xf32, #tpu.memory_space<vmem>>, %arg19: memref<32x1024xf32, #tpu.memory_space<vmem>>, %arg20: memref<32x1xf32, #tpu.memory_space<vmem>>, %arg21: memref<32x32xf32, #tpu.memory_space<vmem>>, %arg22: memref<1x32xf32, #tpu.memory_space<vmem>>, %arg23: memref<32x32xf32, #tpu.memory_space<vmem>>, %arg24: memref<1x32xf32, #tpu.memory_space<vmem>>, %arg25: memref<32x4xf32, #tpu.memory_space<vmem>>, %arg26: memref<1x4xf32, #tpu.memory_space<vmem>>, %arg27: memref<16x32xf32, #tpu.memory_space<vmem>>, %arg28: memref<4x8x256xf32, #tpu.memory_space<vmem>>, %arg29: memref<32x4xf32, #tpu.memory_space<vmem>>, %arg30: memref<2x32x64xf32, #tpu.memory_space<vmem>>, %arg31: memref<2x32x64xf32, #tpu.memory_space<vmem>>, %arg32: memref<256x32xf32, #tpu.memory_space<vmem>>) attributes {dimension_semantics = [], scalar_prefetch = 0 : i64, scratch_operands = 1 : i64, tpu.core_type = #tpu.core_type<tc>} {
    %c0 = arith.constant 0 : index
    %c0_0 = arith.constant 0 : index
    %0 = vector.load %arg0[%c0, %c0_0] : memref<16x64xf32, #tpu.memory_space<vmem>>, vector<16x64xf32>
    %1 = arith.truncf %0 : vector<16x64xf32> to vector<16x64xbf16>
    %c0_1 = arith.constant 0 : index
    %c0_2 = arith.constant 0 : index
    %2 = vector.load %arg10[%c0_1, %c0_2] : memref<64x32xf32, #tpu.memory_space<vmem>>, vector<64x32xf32>
    %3 = arith.truncf %2 : vector<64x32xf32> to vector<64x32xbf16>
    %cst = arith.constant dense<0.000000e+00> : vector<16x32xf32>
    %4 = tpu.matmul %1, %3, %cst {dimension_numbers = #tpu.dot_dimension_numbers<[1], [0], [0], [1], [0, 0, 1, 1], [], []>} : vector<16x64xbf16>, vector<64x32xbf16>, vector<16x32xf32> -> vector<16x32xf32>
    %c0_3 = arith.constant 0 : index
    %c0_4 = arith.constant 0 : index
    %5 = vector.load %arg11[%c0_3, %c0_4] : memref<1x32xf32, #tpu.memory_space<vmem>>, vector<1x32xf32>
    %6 = vector.broadcast %5 : vector<1x32xf32> to vector<16x32xf32>
    %7 = arith.addf %4, %6 : vector<16x32xf32>
    %c0_5 = arith.constant 0 : index
    %c0_6 = arith.constant 0 : index
    %8 = vector.load %arg27[%c0_5, %c0_6] : memref<16x32xf32, #tpu.memory_space<vmem>>, vector<16x32xf32>
    tpu.vector_store %arg27[%c0_5, %c0_6], %7 {strides = array<i32>} : memref<16x32xf32, #tpu.memory_space<vmem>>, vector<16x32xf32>,
    %c0_7 = arith.constant 0 : index
    %c0_8 = arith.constant 0 : index
    %9 = vector.load %arg2[%c0_7, %c0_8] : memref<32x32xf32, #tpu.memory_space<vmem>>, vector<32x32xf32>
    %10 = arith.truncf %9 : vector<32x32xf32> to vector<32x32xbf16>
    %c0_9 = arith.constant 0 : index
    %c0_10 = arith.constant 0 : index
    %11 = vector.load %arg21[%c0_9, %c0_10] : memref<32x32xf32, #tpu.memory_space<vmem>>, vector<32x32xf32>
    %12 = arith.truncf %11 : vector<32x32xf32> to vector<32x32xbf16>
    %cst_11 = arith.constant dense<0.000000e+00> : vector<32x32xf32>
    %13 = tpu.matmul %10, %12, %cst_11 {dimension_numbers = #tpu.dot_dimension_numbers<[1], [0], [0], [1], [0, 0, 1, 1], [], []>} : vector<32x32xbf16>, vector<32x32xbf16>, vector<32x32xf32> -> vector<32x32xf32>
    %c0_12 = arith.constant 0 : index
    %c0_13 = arith.constant 0 : index
    %14 = vector.load %arg22[%c0_12, %c0_13] : memref<1x32xf32, #tpu.memory_space<vmem>>, vector<1x32xf32>
    %15 = vector.broadcast %14 : vector<1x32xf32> to vector<32x32xf32>
    %16 = arith.addf %13, %15 : vector<32x32xf32>
    %cst_14 = arith.constant 0.000000e+00 : f32
    %17 = vector.broadcast %cst_14 : f32 to vector<32x32xf32>
    %18 = arith.maximumf %16, %17 : vector<32x32xf32>
    %19 = arith.truncf %18 : vector<32x32xf32> to vector<32x32xbf16>
    %c0_15 = arith.constant 0 : index
    %c0_16 = arith.constant 0 : index
    %20 = vector.load %arg23[%c0_15, %c0_16] : memref<32x32xf32, #tpu.memory_space<vmem>>, vector<32x32xf32>
    %21 = arith.truncf %20 : vector<32x32xf32> to vector<32x32xbf16>
    %cst_17 = arith.constant dense<0.000000e+00> : vector<32x32xf32>
    %22 = tpu.matmul %19, %21, %cst_17 {dimension_numbers = #tpu.dot_dimension_numbers<[1], [0], [0], [1], [0, 0, 1, 1], [], []>} : vector<32x32xbf16>, vector<32x32xbf16>, vector<32x32xf32> -> vector<32x32xf32>
    %c0_18 = arith.constant 0 : index
    %c0_19 = arith.constant 0 : index
    %23 = vector.load %arg24[%c0_18, %c0_19] : memref<1x32xf32, #tpu.memory_space<vmem>>, vector<1x32xf32>
    %24 = vector.broadcast %23 : vector<1x32xf32> to vector<32x32xf32>
    %25 = arith.addf %22, %24 : vector<32x32xf32>
    %cst_20 = arith.constant 0.000000e+00 : f32
    %26 = vector.broadcast %cst_20 : f32 to vector<32x32xf32>
    %27 = arith.maximumf %25, %26 : vector<32x32xf32>
    %28 = arith.truncf %27 : vector<32x32xf32> to vector<32x32xbf16>
    %c0_21 = arith.constant 0 : index
    %c0_22 = arith.constant 0 : index
    %29 = vector.load %arg25[%c0_21, %c0_22] : memref<32x4xf32, #tpu.memory_space<vmem>>, vector<32x4xf32>
    %30 = arith.truncf %29 : vector<32x4xf32> to vector<32x4xbf16>
    %cst_23 = arith.constant dense<0.000000e+00> : vector<32x4xf32>
    %31 = tpu.matmul %28, %30, %cst_23 {dimension_numbers = #tpu.dot_dimension_numbers<[1], [0], [0], [1], [0, 0, 1, 1], [], []>} : vector<32x32xbf16>, vector<32x4xbf16>, vector<32x4xf32> -> vector<32x4xf32>
    %c0_24 = arith.constant 0 : index
    %c0_25 = arith.constant 0 : index
    %32 = vector.load %arg26[%c0_24, %c0_25] : memref<1x4xf32, #tpu.memory_space<vmem>>, vector<1x4xf32>
    %33 = vector.broadcast %32 : vector<1x4xf32> to vector<32x4xf32>
    %34 = arith.addf %31, %33 : vector<32x4xf32>
    %c0_26 = arith.constant 0 : index
    %c0_27 = arith.constant 0 : index
    %35 = vector.load %arg3[%c0_26, %c0_27] : memref<32x4xf32, #tpu.memory_space<vmem>>, vector<32x4xf32>
    %cst_28 = arith.constant 0.000000e+00 : f32
    %cst_29 = arith.constant 1.000000e+00 : f32
    %36 = vector.broadcast %cst_28 : f32 to vector<32x4xf32>
    %37 = arith.maximumf %36, %35 : vector<32x4xf32>
    %38 = vector.broadcast %cst_29 : f32 to vector<32x4xf32>
    %39 = arith.minimumf %38, %37 : vector<32x4xf32>
    %cst_30 = arith.constant 1.000000e-03 : f32
    %40 = vector.broadcast %cst_30 : f32 to vector<32x4xf32>
    %41 = arith.maximumf %39, %40 : vector<32x4xf32>
    %cst_31 = arith.constant 1.000000e+00 : f32
    %42 = vector.broadcast %cst_31 : f32 to vector<32x4xf32>
    %43 = arith.subf %42, %39 : vector<32x4xf32>
    %cst_32 = arith.constant 1.000000e-03 : f32
    %44 = vector.broadcast %cst_32 : f32 to vector<32x4xf32>
    %45 = arith.maximumf %43, %44 : vector<32x4xf32>
    %46 = arith.divf %41, %45 : vector<32x4xf32>
    %47 = math.log %46 : vector<32x4xf32>
    %48 = arith.addf %34, %47 : vector<32x4xf32>
    %cst_33 = arith.constant 0.000000e+00 : f32
    %49 = vector.broadcast %cst_33 : f32 to vector<32x4xf32>
    %50 = arith.subf %49, %48 : vector<32x4xf32>
    %51 = math.exp %50 : vector<32x4xf32>
    %cst_34 = arith.constant 1.000000e+00 : f32
    %52 = vector.broadcast %cst_34 : f32 to vector<32x4xf32>
    %53 = arith.addf %52, %51 : vector<32x4xf32>
    %cst_35 = arith.constant 1.000000e+00 : f32
    %54 = vector.broadcast %cst_35 : f32 to vector<32x4xf32>
    %55 = arith.divf %54, %53 : vector<32x4xf32>
    %c0_36 = arith.constant 0 : index
    %c0_37 = arith.constant 0 : index
    %56 = vector.load %arg29[%c0_36, %c0_37] : memref<32x4xf32, #tpu.memory_space<vmem>>, vector<32x4xf32>
    tpu.vector_store %arg29[%c0_36, %c0_37], %55 {strides = array<i32>} : memref<32x4xf32, #tpu.memory_space<vmem>>, vector<32x4xf32>,
    %cst_38 = arith.constant 0.000000e+00 : f32
    %57 = vector.broadcast %cst_38 : f32 to vector<256x32xf32>
    %c0_39 = arith.constant 0 : index
    %c0_40 = arith.constant 0 : index
    %58 = vector.load %arg32[%c0_39, %c0_40] : memref<256x32xf32, #tpu.memory_space<vmem>>, vector<256x32xf32>
    tpu.vector_store %arg32[%c0_39, %c0_40], %57 {strides = array<i32>} : memref<256x32xf32, #tpu.memory_space<vmem>>, vector<256x32xf32>,
    %59 = arith.truncf %9 : vector<32x32xf32> to vector<32x32xbf16>
    %60 = vector.extract_strided_slice %7 {offsets = [0, 0], sizes = [8, 32], strides = [1, 1]} : vector<16x32xf32> to vector<8x32xf32>
    %c0_41 = arith.constant 0 : index
    %c0_42 = arith.constant 0 : index
    %61 = vector.load %arg32[%c0_41, %c0_42] : memref<256x32xf32, #tpu.memory_space<vmem>>, vector<8x32xf32>
    tpu.vector_store %arg32[%c0_41, %c0_42], %60 {strides = array<i32>} : memref<256x32xf32, #tpu.memory_space<vmem>>, vector<8x32xf32>,
    %c0_43 = arith.constant 0 : index
    %c0_44 = arith.constant 0 : index
    %62 = vector.load %arg32[%c0_43, %c0_44] : memref<256x32xf32, #tpu.memory_space<vmem>>, vector<256x32xf32>
    %63 = arith.truncf %62 : vector<256x32xf32> to vector<256x32xbf16>
    %c0_45 = arith.constant 0 : index
    %c0_46 = arith.constant 0 : index
    %c0_47 = arith.constant 0 : index
    %64 = vector.load %arg1[%c0_45, %c0_46, %c0_47] : memref<2x1x256xi32, #tpu.memory_space<vmem>>, vector<1x1x256xi32>
    %65 = vector.shape_cast %64 : vector<1x1x256xi32> to vector<1x256xi32>
    %c0_i32 = arith.constant 0 : i32
    %66 = vector.broadcast %c0_i32 : i32 to vector<1x256xi32>
    %67 = arith.cmpi sgt, %65, %66 : vector<1x256xi32>
    %68 = vector.extract_strided_slice %59 {offsets = [0, 0], sizes = [8, 32], strides = [1, 1]} : vector<32x32xbf16> to vector<8x32xbf16>
    %cst_48 = arith.constant dense<0.000000e+00> : vector<8x256xf32>
    %69 = tpu.matmul %68, %63, %cst_48 {dimension_numbers = #tpu.dot_dimension_numbers<[1], [1], [0], [0], [0, 0, 1, 0], [], []>} : vector<8x32xbf16>, vector<256x32xbf16>, vector<8x256xf32> -> vector<8x256xf32>
    %cst_49 = arith.constant 0xFF800000 : f32
    %70 = vector.shape_cast %67 : vector<1x256xi1> to vector<1x256xi1>
    %71 = vector.broadcast %70 : vector<1x256xi1> to vector<8x256xi1>
    %72 = vector.broadcast %cst_49 : f32 to vector<8x256xf32>
    %73 = arith.select %71, %69, %72 : vector<8x256xi1>, vector<8x256xf32>
    %c0_50 = arith.constant 0 : index
    %c0_51 = arith.constant 0 : index
    %c0_52 = arith.constant 0 : index
    %74 = vector.load %arg28[%c0_50, %c0_51, %c0_52] : memref<4x8x256xf32, #tpu.memory_space<vmem>>, vector<1x8x256xf32>
    %75 = vector.shape_cast %74 : vector<1x8x256xf32> to vector<8x256xf32>
    %76 = vector.shape_cast %73 : vector<8x256xf32> to vector<1x8x256xf32>
    tpu.vector_store %arg28[%c0_50, %c0_51, %c0_52], %76 {strides = array<i32>} : memref<4x8x256xf32, #tpu.memory_space<vmem>>, vector<1x8x256xf32>,
    %77 = vector.extract_strided_slice %59 {offsets = [16, 0], sizes = [8, 32], strides = [1, 1]} : vector<32x32xbf16> to vector<8x32xbf16>
    %cst_53 = arith.constant dense<0.000000e+00> : vector<8x256xf32>
    %78 = tpu.matmul %77, %63, %cst_53 {dimension_numbers = #tpu.dot_dimension_numbers<[1], [1], [0], [0], [0, 0, 1, 0], [], []>} : vector<8x32xbf16>, vector<256x32xbf16>, vector<8x256xf32> -> vector<8x256xf32>
    %cst_54 = arith.constant 0xFF800000 : f32
    %79 = vector.shape_cast %67 : vector<1x256xi1> to vector<1x256xi1>
    %80 = vector.broadcast %79 : vector<1x256xi1> to vector<8x256xi1>
    %81 = vector.broadcast %cst_54 : f32 to vector<8x256xf32>
    %82 = arith.select %80, %78, %81 : vector<8x256xi1>, vector<8x256xf32>
    %c2 = arith.constant 2 : index
    %c0_55 = arith.constant 0 : index
    %c0_56 = arith.constant 0 : index
    %83 = vector.load %arg28[%c2, %c0_55, %c0_56] : memref<4x8x256xf32, #tpu.memory_space<vmem>>, vector<1x8x256xf32>
    %84 = vector.shape_cast %83 : vector<1x8x256xf32> to vector<8x256xf32>
    %85 = vector.shape_cast %82 : vector<8x256xf32> to vector<1x8x256xf32>
    tpu.vector_store %arg28[%c2, %c0_55, %c0_56], %85 {strides = array<i32>} : memref<4x8x256xf32, #tpu.memory_space<vmem>>, vector<1x8x256xf32>,
    %86 = vector.extract_strided_slice %7 {offsets = [8, 0], sizes = [8, 32], strides = [1, 1]} : vector<16x32xf32> to vector<8x32xf32>
    %c0_57 = arith.constant 0 : index
    %c0_58 = arith.constant 0 : index
    %87 = vector.load %arg32[%c0_57, %c0_58] : memref<256x32xf32, #tpu.memory_space<vmem>>, vector<8x32xf32>
    tpu.vector_store %arg32[%c0_57, %c0_58], %86 {strides = array<i32>} : memref<256x32xf32, #tpu.memory_space<vmem>>, vector<8x32xf32>,
    %c0_59 = arith.constant 0 : index
    %c0_60 = arith.constant 0 : index
    %88 = vector.load %arg32[%c0_59, %c0_60] : memref<256x32xf32, #tpu.memory_space<vmem>>, vector<256x32xf32>
    %89 = arith.truncf %88 : vector<256x32xf32> to vector<256x32xbf16>
    %c1 = arith.constant 1 : index
    %c0_61 = arith.constant 0 : index
    %c0_62 = arith.constant 0 : index
    %90 = vector.load %arg1[%c1, %c0_61, %c0_62] : memref<2x1x256xi32, #tpu.memory_space<vmem>>, vector<1x1x256xi32>
    %91 = vector.shape_cast %90 : vector<1x1x256xi32> to vector<1x256xi32>
    %c0_i32_63 = arith.constant 0 : i32
    %92 = vector.broadcast %c0_i32_63 : i32 to vector<1x256xi32>
    %93 = arith.cmpi sgt, %91, %92 : vector<1x256xi32>
    %94 = vector.extract_strided_slice %59 {offsets = [8, 0], sizes = [8, 32], strides = [1, 1]} : vector<32x32xbf16> to vector<8x32xbf16>
    %cst_64 = arith.constant dense<0.000000e+00> : vector<8x256xf32>
    %95 = tpu.matmul %94, %89, %cst_64 {dimension_numbers = #tpu.dot_dimension_numbers<[1], [1], [0], [0], [0, 0, 1, 0], [], []>} : vector<8x32xbf16>, vector<256x32xbf16>, vector<8x256xf32> -> vector<8x256xf32>
    %cst_65 = arith.constant 0xFF800000 : f32
    %96 = vector.shape_cast %93 : vector<1x256xi1> to vector<1x256xi1>
    %97 = vector.broadcast %96 : vector<1x256xi1> to vector<8x256xi1>
    %98 = vector.broadcast %cst_65 : f32 to vector<8x256xf32>
    %99 = arith.select %97, %95, %98 : vector<8x256xi1>, vector<8x256xf32>
    %c1_66 = arith.constant 1 : index
    %c0_67 = arith.constant 0 : index
    %c0_68 = arith.constant 0 : index
    %100 = vector.load %arg28[%c1_66, %c0_67, %c0_68] : memref<4x8x256xf32, #tpu.memory_space<vmem>>, vector<1x8x256xf32>
    %101 = vector.shape_cast %100 : vector<1x8x256xf32> to vector<8x256xf32>
    %102 = vector.shape_cast %99 : vector<8x256xf32> to vector<1x8x256xf32>
    tpu.vector_store %arg28[%c1_66, %c0_67, %c0_68], %102 {strides = array<i32>} : memref<4x8x256xf32, #tpu.memory_space<vmem>>, vector<1x8x256xf32>,
    %103 = vector.extract_strided_slice %59 {offsets = [24, 0], sizes = [8, 32], strides = [1, 1]} : vector<32x32xbf16> to vector<8x32xbf16>
    %cst_69 = arith.constant dense<0.000000e+00> : vector<8x256xf32>
    %104 = tpu.matmul %103, %89, %cst_69 {dimension_numbers = #tpu.dot_dimension_numbers<[1], [1], [0], [0], [0, 0, 1, 0], [], []>} : vector<8x32xbf16>, vector<256x32xbf16>, vector<8x256xf32> -> vector<8x256xf32>
    %cst_70 = arith.constant 0xFF800000 : f32
    %105 = vector.shape_cast %93 : vector<1x256xi1> to vector<1x256xi1>
    %106 = vector.broadcast %105 : vector<1x256xi1> to vector<8x256xi1>
    %107 = vector.broadcast %cst_70 : f32 to vector<8x256xf32>
    %108 = arith.select %106, %104, %107 : vector<8x256xi1>, vector<8x256xf32>
    %c3 = arith.constant 3 : index
    %c0_71 = arith.constant 0 : index
    %c0_72 = arith.constant 0 : index
    %109 = vector.load %arg28[%c3, %c0_71, %c0_72] : memref<4x8x256xf32, #tpu.memory_space<vmem>>, vector<1x8x256xf32>
    %110 = vector.shape_cast %109 : vector<1x8x256xf32> to vector<8x256xf32>
    %111 = vector.shape_cast %108 : vector<8x256xf32> to vector<1x8x256xf32>
    tpu.vector_store %arg28[%c3, %c0_71, %c0_72], %111 {strides = array<i32>} : memref<4x8x256xf32, #tpu.memory_space<vmem>>, vector<1x8x256xf32>,
    %c0_73 = arith.constant 0 : index
    %c0_74 = arith.constant 0 : index
    %112 = vector.load %arg12[%c0_73, %c0_74] : memref<32x64xf32, #tpu.memory_space<vmem>>, vector<32x64xf32>
    %113 = arith.truncf %112 : vector<32x64xf32> to vector<32x64xbf16>
    %c0_75 = arith.constant 0 : index
    %c0_76 = arith.constant 0 : index
    %114 = vector.load %arg17[%c0_75, %c0_76] : memref<32x256xf32, #tpu.memory_space<vmem>>, vector<32x256xf32>
    %115 = arith.truncf %114 : vector<32x256xf32> to vector<32x256xbf16>
    %c0_77 = arith.constant 0 : index
    %c0_78 = arith.constant 0 : index
    %116 = vector.load %arg18[%c0_77, %c0_78] : memref<32x512xf32, #tpu.memory_space<vmem>>, vector<32x512xf32>
    %117 = arith.truncf %116 : vector<32x512xf32> to vector<32x512xbf16>
    %c0_79 = arith.constant 0 : index
    %c0_80 = arith.constant 0 : index
    %118 = vector.load %arg19[%c0_79, %c0_80] : memref<32x1024xf32, #tpu.memory_space<vmem>>, vector<32x1024xf32>
    %119 = arith.truncf %118 : vector<32x1024xf32> to vector<32x1024xbf16>
    %c0_81 = arith.constant 0 : index
    %c0_82 = arith.constant 0 : index
    %120 = vector.load %arg15[%c0_81, %c0_82] : memref<32x1xf32, #tpu.memory_space<vmem>>, vector<32x1xf32>
    %c0_83 = arith.constant 0 : index
    %c0_84 = arith.constant 0 : index
    %121 = vector.load %arg16[%c0_83, %c0_84] : memref<32x1xf32, #tpu.memory_space<vmem>>, vector<32x1xf32>
    %c0_85 = arith.constant 0 : index
    %c0_86 = arith.constant 0 : index
    %c0_87 = arith.constant 0 : index
    %122 = vector.load %arg4[%c0_85, %c0_86, %c0_87] : memref<2x64x64xf32, #tpu.memory_space<vmem>>, vector<1x64x64xf32>
    %123 = vector.shape_cast %122 : vector<1x64x64xf32> to vector<64x64xf32>
    %124 = arith.truncf %123 : vector<64x64xf32> to vector<64x64xbf16>
    %cst_88 = arith.constant dense<0.000000e+00> : vector<32x64xf32>
    %125 = tpu.matmul %113, %124, %cst_88 {dimension_numbers = #tpu.dot_dimension_numbers<[1], [0], [0], [1], [0, 0, 1, 1], [], []>} : vector<32x64xbf16>, vector<64x64xbf16>, vector<32x64xf32> -> vector<32x64xf32>
    %c0_89 = arith.constant 0 : index
    %c0_90 = arith.constant 0 : index
    %126 = vector.load %arg13[%c0_89, %c0_90] : memref<32x1xf32, #tpu.memory_space<vmem>>, vector<32x1xf32>
    %127 = vector.broadcast %126 : vector<32x1xf32> to vector<32x64xf32>
    %128 = arith.addf %125, %127 : vector<32x64xf32>
    %cst_91 = arith.constant dense<0.000000e+00> : vector<32xf32>
    %129 = vector.multi_reduction <add>, %128, %cst_91 [1] : vector<32x64xf32> to vector<32xf32>
    %130 = vector.shape_cast %129 : vector<32xf32> to vector<32x1xf32>
    %cst_92 = arith.constant 6.400000e+01 : f32
    %131 = vector.broadcast %cst_92 : f32 to vector<32x1xf32>
    %132 = arith.divf %130, %131 : vector<32x1xf32>
    %133 = vector.broadcast %132 : vector<32x1xf32> to vector<32x64xf32>
    %134 = arith.subf %128, %133 : vector<32x64xf32>
    %135 = arith.mulf %134, %134 : vector<32x64xf32>
    %cst_93 = arith.constant dense<0.000000e+00> : vector<32xf32>
    %136 = vector.multi_reduction <add>, %135, %cst_93 [1] : vector<32x64xf32> to vector<32xf32>
    %137 = vector.shape_cast %136 : vector<32xf32> to vector<32x1xf32>
    %cst_94 = arith.constant 6.400000e+01 : f32
    %138 = vector.broadcast %cst_94 : f32 to vector<32x1xf32>
    %139 = arith.divf %137, %138 : vector<32x1xf32>
    %cst_95 = arith.constant 9.99999974E-6 : f32
    %140 = vector.broadcast %cst_95 : f32 to vector<32x1xf32>
    %141 = arith.addf %139, %140 : vector<32x1xf32>
    %142 = math.rsqrt %141 : vector<32x1xf32>
    %143 = vector.broadcast %142 : vector<32x1xf32> to vector<32x64xf32>
    %144 = arith.mulf %134, %143 : vector<32x64xf32>
    %145 = vector.broadcast %120 : vector<32x1xf32> to vector<32x64xf32>
    %146 = arith.mulf %144, %145 : vector<32x64xf32>
    %147 = vector.broadcast %121 : vector<32x1xf32> to vector<32x64xf32>
    %148 = arith.addf %146, %147 : vector<32x64xf32>
    %c0_96 = arith.constant 0 : index
    %c0_97 = arith.constant 0 : index
    %c0_98 = arith.constant 0 : index
    %149 = vector.load %arg30[%c0_96, %c0_97, %c0_98] : memref<2x32x64xf32, #tpu.memory_space<vmem>>, vector<1x32x64xf32>
    %150 = vector.shape_cast %149 : vector<1x32x64xf32> to vector<32x64xf32>
    %151 = vector.shape_cast %148 : vector<32x64xf32> to vector<1x32x64xf32>
    tpu.vector_store %arg30[%c0_96, %c0_97, %c0_98], %151 {strides = array<i32>} : memref<2x32x64xf32, #tpu.memory_space<vmem>>, vector<1x32x64xf32>,
    %c0_99 = arith.constant 0 : index
    %c0_100 = arith.constant 0 : index
    %c0_101 = arith.constant 0 : index
    %152 = vector.load %arg5[%c0_99, %c0_100, %c0_101] : memref<2x256x64xf32, #tpu.memory_space<vmem>>, vector<1x256x64xf32>
    %153 = vector.shape_cast %152 : vector<1x256x64xf32> to vector<256x64xf32>
    %154 = arith.truncf %153 : vector<256x64xf32> to vector<256x64xbf16>
    %cst_102 = arith.constant dense<0.000000e+00> : vector<32x64xf32>
    %155 = tpu.matmul %115, %154, %cst_102 {dimension_numbers = #tpu.dot_dimension_numbers<[1], [0], [0], [1], [0, 0, 1, 1], [], []>} : vector<32x256xbf16>, vector<256x64xbf16>, vector<32x64xf32> -> vector<32x64xf32>
    %c0_103 = arith.constant 0 : index
    %c0_104 = arith.constant 0 : index
    %c0_105 = arith.constant 0 : index
    %156 = vector.load %arg6[%c0_103, %c0_104, %c0_105] : memref<2x512x16xf32, #tpu.memory_space<vmem>>, vector<1x512x16xf32>
    %157 = vector.shape_cast %156 : vector<1x512x16xf32> to vector<512x16xf32>
    %158 = arith.truncf %157 : vector<512x16xf32> to vector<512x16xbf16>
    %cst_106 = arith.constant dense<0.000000e+00> : vector<32x16xf32>
    %159 = tpu.matmul %117, %158, %cst_106 {dimension_numbers = #tpu.dot_dimension_numbers<[1], [0], [0], [1], [0, 0, 1, 1], [], []>} : vector<32x512xbf16>, vector<512x16xbf16>, vector<32x16xf32> -> vector<32x16xf32>
    %c0_107 = arith.constant 0 : index
    %c0_108 = arith.constant 0 : index
    %c0_109 = arith.constant 0 : index
    %160 = vector.load %arg7[%c0_107, %c0_108, %c0_109] : memref<2x1024x4xf32, #tpu.memory_space<vmem>>, vector<1x1024x4xf32>
    %161 = vector.shape_cast %160 : vector<1x1024x4xf32> to vector<1024x4xf32>
    %162 = arith.truncf %161 : vector<1024x4xf32> to vector<1024x4xbf16>
    %cst_110 = arith.constant dense<0.000000e+00> : vector<32x4xf32>
    %163 = tpu.matmul %119, %162, %cst_110 {dimension_numbers = #tpu.dot_dimension_numbers<[1], [0], [0], [1], [0, 0, 1, 1], [], []>} : vector<32x1024xbf16>, vector<1024x4xbf16>, vector<32x4xf32> -> vector<32x4xf32>
    %c0_111 = arith.constant 0 : index
    %c0_112 = arith.constant 0 : index
    %164 = vector.load %arg8[%c0_111, %c0_112] : memref<16x64xf32, #tpu.memory_space<vmem>>, vector<16x64xf32>
    %cst_113 = arith.constant dense<0.000000e+00> : vector<32x64xf32>
    %165 = tpu.matmul %159, %164, %cst_113 {dimension_numbers = #tpu.dot_dimension_numbers<[1], [0], [0], [1], [0, 0, 1, 1], [], []>} : vector<32x16xf32>, vector<16x64xf32>, vector<32x64xf32> -> vector<32x64xf32>
    %c0_114 = arith.constant 0 : index
    %c0_115 = arith.constant 0 : index
    %166 = vector.load %arg9[%c0_114, %c0_115] : memref<4x64xf32, #tpu.memory_space<vmem>>, vector<4x64xf32>
    %cst_116 = arith.constant dense<0.000000e+00> : vector<32x64xf32>
    %167 = tpu.matmul %163, %166, %cst_116 {dimension_numbers = #tpu.dot_dimension_numbers<[1], [0], [0], [1], [0, 0, 1, 1], [], []>} : vector<32x4xf32>, vector<4x64xf32>, vector<32x64xf32> -> vector<32x64xf32>
    %168 = arith.addf %155, %165 : vector<32x64xf32>
    %169 = arith.addf %168, %167 : vector<32x64xf32>
    %c0_117 = arith.constant 0 : index
    %c0_118 = arith.constant 0 : index
    %170 = vector.load %arg20[%c0_117, %c0_118] : memref<32x1xf32, #tpu.memory_space<vmem>>, vector<32x1xf32>
    %171 = vector.broadcast %170 : vector<32x1xf32> to vector<32x64xf32>
    %172 = arith.addf %169, %171 : vector<32x64xf32>
    %c0_119 = arith.constant 0 : index
    %c0_120 = arith.constant 0 : index
    %c0_121 = arith.constant 0 : index
    %173 = vector.load %arg31[%c0_119, %c0_120, %c0_121] : memref<2x32x64xf32, #tpu.memory_space<vmem>>, vector<1x32x64xf32>
    %174 = vector.shape_cast %173 : vector<1x32x64xf32> to vector<32x64xf32>
    %175 = vector.shape_cast %172 : vector<32x64xf32> to vector<1x32x64xf32>
    tpu.vector_store %arg31[%c0_119, %c0_120, %c0_121], %175 {strides = array<i32>} : memref<2x32x64xf32, #tpu.memory_space<vmem>>, vector<1x32x64xf32>,
    %c1_122 = arith.constant 1 : index
    %c0_123 = arith.constant 0 : index
    %c0_124 = arith.constant 0 : index
    %176 = vector.load %arg4[%c1_122, %c0_123, %c0_124] : memref<2x64x64xf32, #tpu.memory_space<vmem>>, vector<1x64x64xf32>
    %177 = vector.shape_cast %176 : vector<1x64x64xf32> to vector<64x64xf32>
    %178 = arith.truncf %177 : vector<64x64xf32> to vector<64x64xbf16>
    %cst_125 = arith.constant dense<0.000000e+00> : vector<32x64xf32>
    %179 = tpu.matmul %113, %178, %cst_125 {dimension_numbers = #tpu.dot_dimension_numbers<[1], [0], [0], [1], [0, 0, 1, 1], [], []>} : vector<32x64xbf16>, vector<64x64xbf16>, vector<32x64xf32> -> vector<32x64xf32>
    %c0_126 = arith.constant 0 : index
    %c0_127 = arith.constant 0 : index
    %180 = vector.load %arg13[%c0_126, %c0_127] : memref<32x1xf32, #tpu.memory_space<vmem>>, vector<32x1xf32>
    %181 = vector.broadcast %180 : vector<32x1xf32> to vector<32x64xf32>
    %182 = arith.addf %179, %181 : vector<32x64xf32>
    %cst_128 = arith.constant dense<0.000000e+00> : vector<32xf32>
    %183 = vector.multi_reduction <add>, %182, %cst_128 [1] : vector<32x64xf32> to vector<32xf32>
    %184 = vector.shape_cast %183 : vector<32xf32> to vector<32x1xf32>
    %cst_129 = arith.constant 6.400000e+01 : f32
    %185 = vector.broadcast %cst_129 : f32 to vector<32x1xf32>
    %186 = arith.divf %184, %185 : vector<32x1xf32>
    %187 = vector.broadcast %186 : vector<32x1xf32> to vector<32x64xf32>
    %188 = arith.subf %182, %187 : vector<32x64xf32>
    %189 = arith.mulf %188, %188 : vector<32x64xf32>
    %cst_130 = arith.constant dense<0.000000e+00> : vector<32xf32>
    %190 = vector.multi_reduction <add>, %189, %cst_130 [1] : vector<32x64xf32> to vector<32xf32>
    %191 = vector.shape_cast %190 : vector<32xf32> to vector<32x1xf32>
    %cst_131 = arith.constant 6.400000e+01 : f32
    %192 = vector.broadcast %cst_131 : f32 to vector<32x1xf32>
    %193 = arith.divf %191, %192 : vector<32x1xf32>
    %cst_132 = arith.constant 9.99999974E-6 : f32
    %194 = vector.broadcast %cst_132 : f32 to vector<32x1xf32>
    %195 = arith.addf %193, %194 : vector<32x1xf32>
    %196 = math.rsqrt %195 : vector<32x1xf32>
    %197 = vector.broadcast %196 : vector<32x1xf32> to vector<32x64xf32>
    %198 = arith.mulf %188, %197 : vector<32x64xf32>
    %199 = vector.broadcast %120 : vector<32x1xf32> to vector<32x64xf32>
    %200 = arith.mulf %198, %199 : vector<32x64xf32>
    %201 = vector.broadcast %121 : vector<32x1xf32> to vector<32x64xf32>
    %202 = arith.addf %200, %201 : vector<32x64xf32>
    %c1_133 = arith.constant 1 : index
    %c0_134 = arith.constant 0 : index
    %c0_135 = arith.constant 0 : index
    %203 = vector.load %arg30[%c1_133, %c0_134, %c0_135] : memref<2x32x64xf32, #tpu.memory_space<vmem>>, vector<1x32x64xf32>
    %204 = vector.shape_cast %203 : vector<1x32x64xf32> to vector<32x64xf32>
    %205 = vector.shape_cast %202 : vector<32x64xf32> to vector<1x32x64xf32>
    tpu.vector_store %arg30[%c1_133, %c0_134, %c0_135], %205 {strides = array<i32>} : memref<2x32x64xf32, #tpu.memory_space<vmem>>, vector<1x32x64xf32>,
    %c1_136 = arith.constant 1 : index
    %c0_137 = arith.constant 0 : index
    %c0_138 = arith.constant 0 : index
    %206 = vector.load %arg5[%c1_136, %c0_137, %c0_138] : memref<2x256x64xf32, #tpu.memory_space<vmem>>, vector<1x256x64xf32>
    %207 = vector.shape_cast %206 : vector<1x256x64xf32> to vector<256x64xf32>
    %208 = arith.truncf %207 : vector<256x64xf32> to vector<256x64xbf16>
    %cst_139 = arith.constant dense<0.000000e+00> : vector<32x64xf32>
    %209 = tpu.matmul %115, %208, %cst_139 {dimension_numbers = #tpu.dot_dimension_numbers<[1], [0], [0], [1], [0, 0, 1, 1], [], []>} : vector<32x256xbf16>, vector<256x64xbf16>, vector<32x64xf32> -> vector<32x64xf32>
    %c1_140 = arith.constant 1 : index
    %c0_141 = arith.constant 0 : index
    %c0_142 = arith.constant 0 : index
    %210 = vector.load %arg6[%c1_140, %c0_141, %c0_142] : memref<2x512x16xf32, #tpu.memory_space<vmem>>, vector<1x512x16xf32>
    %211 = vector.shape_cast %210 : vector<1x512x16xf32> to vector<512x16xf32>
    %212 = arith.truncf %211 : vector<512x16xf32> to vector<512x16xbf16>
    %cst_143 = arith.constant dense<0.000000e+00> : vector<32x16xf32>
    %213 = tpu.matmul %117, %212, %cst_143 {dimension_numbers = #tpu.dot_dimension_numbers<[1], [0], [0], [1], [0, 0, 1, 1], [], []>} : vector<32x512xbf16>, vector<512x16xbf16>, vector<32x16xf32> -> vector<32x16xf32>
    %c1_144 = arith.constant 1 : index
    %c0_145 = arith.constant 0 : index
    %c0_146 = arith.constant 0 : index
    %214 = vector.load %arg7[%c1_144, %c0_145, %c0_146] : memref<2x1024x4xf32, #tpu.memory_space<vmem>>, vector<1x1024x4xf32>
    %215 = vector.shape_cast %214 : vector<1x1024x4xf32> to vector<1024x4xf32>
    %216 = arith.truncf %215 : vector<1024x4xf32> to vector<1024x4xbf16>
    %cst_147 = arith.constant dense<0.000000e+00> : vector<32x4xf32>
    %217 = tpu.matmul %119, %216, %cst_147 {dimension_numbers = #tpu.dot_dimension_numbers<[1], [0], [0], [1], [0, 0, 1, 1], [], []>} : vector<32x1024xbf16>, vector<1024x4xbf16>, vector<32x4xf32> -> vector<32x4xf32>
    %c0_148 = arith.constant 0 : index
    %c0_149 = arith.constant 0 : index
    %218 = vector.load %arg8[%c0_148, %c0_149] : memref<16x64xf32, #tpu.memory_space<vmem>>, vector<16x64xf32>
    %cst_150 = arith.constant dense<0.000000e+00> : vector<32x64xf32>
    %219 = tpu.matmul %213, %218, %cst_150 {dimension_numbers = #tpu.dot_dimension_numbers<[1], [0], [0], [1], [0, 0, 1, 1], [], []>} : vector<32x16xf32>, vector<16x64xf32>, vector<32x64xf32> -> vector<32x64xf32>
    %c0_151 = arith.constant 0 : index
    %c0_152 = arith.constant 0 : index
    %220 = vector.load %arg9[%c0_151, %c0_152] : memref<4x64xf32, #tpu.memory_space<vmem>>, vector<4x64xf32>
    %cst_153 = arith.constant dense<0.000000e+00> : vector<32x64xf32>
    %221 = tpu.matmul %217, %220, %cst_153 {dimension_numbers = #tpu.dot_dimension_numbers<[1], [0], [0], [1], [0, 0, 1, 1], [], []>} : vector<32x4xf32>, vector<4x64xf32>, vector<32x64xf32> -> vector<32x64xf32>
    %222 = arith.addf %209, %219 : vector<32x64xf32>
    %223 = arith.addf %222, %221 : vector<32x64xf32>
    %c0_154 = arith.constant 0 : index
    %c0_155 = arith.constant 0 : index
    %224 = vector.load %arg20[%c0_154, %c0_155] : memref<32x1xf32, #tpu.memory_space<vmem>>, vector<32x1xf32>
    %225 = vector.broadcast %224 : vector<32x1xf32> to vector<32x64xf32>
    %226 = arith.addf %223, %225 : vector<32x64xf32>
    %c1_156 = arith.constant 1 : index
    %c0_157 = arith.constant 0 : index
    %c0_158 = arith.constant 0 : index
    %227 = vector.load %arg31[%c1_156, %c0_157, %c0_158] : memref<2x32x64xf32, #tpu.memory_space<vmem>>, vector<1x32x64xf32>
    %228 = vector.shape_cast %227 : vector<1x32x64xf32> to vector<32x64xf32>
    %229 = vector.shape_cast %226 : vector<32x64xf32> to vector<1x32x64xf32>
    tpu.vector_store %arg31[%c1_156, %c0_157, %c0_158], %229 {strides = array<i32>} : memref<2x32x64xf32, #tpu.memory_space<vmem>>, vector<1x32x64xf32>,
    return
  }
}

</mosaic_0001>

<llo_original>
// kernel: grounding_dino_forward.1
$region0: #{grounding_dino_forward.1}
  #allocation0 [shape = 'u32[]', space=smem, size = 0x4, offset = 0x4, fixed_abs, tag = 'smem constant byte address 0x4 - core index']
  #allocation1 [shape = 'u32[72,128]{1,0:T(1,128)}', space=vmem, size = 0x9000, scoped, tag = 'internal scratch']
  #allocation2 [shape = 'f32[256,32]{1,0:T(8,128)}', space=vmem, size = 0x20000, scoped, tag = 'scratch operand']
  %s0 = inlined_call_operand.smem [shape: u32[32], index: -1, kind: input, shape index: {}]
  %s1 = sld [smem:[%s0]]
  %s2 = scalar_lea.smem %s0, 1
  %s3 = sld [smem:[%s2]]
  %s4 = scalar_lea.smem %s0, 2
  %s5 = sld [smem:[%s4]]
  %s6 = scalar_lea.smem %s0, 3
  %s7 = sld [smem:[%s6]]
  %s8 = scalar_lea.smem %s0, 4
  %s9 = sld [smem:[%s8]]
  %s10 = scalar_lea.smem %s0, 5
  %s11 = sld [smem:[%s10]]
  %s12 = scalar_lea.smem %s0, 6
  %s13 = sld [smem:[%s12]]
  %s14 = scalar_lea.smem %s0, 7
  %s15 = sld [smem:[%s14]]
  %s16 = scalar_lea.smem %s0, 8
  %s17 = sld [smem:[%s16]]
  %s18 = scalar_lea.smem %s0, 9
  %s19 = sld [smem:[%s18]]
  %s20 = scalar_lea.smem %s0, 10
  %s21 = sld [smem:[%s20]]
  %s22 = scalar_lea.smem %s0, 11
  %s23 = sld [smem:[%s22]]
  %s24 = scalar_lea.smem %s0, 12
  %s25 = sld [smem:[%s24]]
  %s26 = scalar_lea.smem %s0, 13
  %s27 = sld [smem:[%s26]]
  %s28 = scalar_lea.smem %s0, 14
  %s29 = sld [smem:[%s28]]
  %s30 = scalar_lea.smem %s0, 15
  %s31 = sld [smem:[%s30]]
  %s32 = scalar_lea.smem %s0, 16
  %s33 = sld [smem:[%s32]]
  %s34 = scalar_lea.smem %s0, 17
  %s35 = sld [smem:[%s34]]
  %s36 = scalar_lea.smem %s0, 18
  %s37 = sld [smem:[%s36]]
  %s38 = scalar_lea.smem %s0, 19
  %s39 = sld [smem:[%s38]]
  %s40 = scalar_lea.smem %s0, 20
  %s41 = sld [smem:[%s40]]
  %s42 = scalar_lea.smem %s0, 21
  %s43 = sld [smem:[%s42]]
  %s44 = scalar_lea.smem %s0, 22
  %s45 = sld [smem:[%s44]]
  %s46 = scalar_lea.smem %s0, 23
  %s47 = sld [smem:[%s46]]
  %s48 = scalar_lea.smem %s0, 24
  %s49 = sld [smem:[%s48]]
  %s50 = scalar_lea.smem %s0, 25
  %s51 = sld [smem:[%s50]]
  %s52 = scalar_lea.smem %s0, 26
  %s53 = sld [smem:[%s52]]
  %s54 = scalar_lea.smem %s0, 27
  %s55 = sld [smem:[%s54]]
  %s56 = scalar_lea.smem %s0, 28
  %s57 = sld [smem:[%s56]]
  %s58 = scalar_lea.smem %s0, 29
  %s59 = sld [smem:[%s58]]
  %s60 = scalar_lea.smem %s0, 30
  %s61 = sld [smem:[%s60]]
  %s62 = scalar_lea.smem %s0, 31
  %s63 = sld [smem:[%s62]]
  %64 = xla_tuple %s55, %s57, %s59, %s61, %s63
  %s65 = sld [smem:[#allocation0]]
  $region150: #{grounding_dino_forward.1} parent=0
    _
  %s67 = ssub.s32 1, %s65
  %s68 = scalar_select 0, %s67, %s65
  $region1: #{grounding_dino_forward.1} parent=0
    #allocation3 [shape = 'u8[8192]{0}', space=vmem, size = 0x2000, scoped, tag = 'output window, operand 0, single buffered']
    #allocation4 [shape = 's32[1]{0}', space=sflag, size = 0x4, scoped, tag = 'scoped memory for grounding_dino_forward.1']
    %69 = vsyncpa [#allocation4], 0
    // Predicated region
    $region2: #{grounding_dino_forward.1} parent=1 // pred_check
      _
    $region3: #{grounding_dino_forward.1} parent=1 // pred_check_branch
      %71 = sbr.rel (0) target = $region5
    $region4: #{grounding_dino_forward.1} parent=1 // pred_region
      _
    $region5: #{grounding_dino_forward.1} parent=1 // pred_fallthru
      _
    // Predicated region
    $region6: #{grounding_dino_forward.1} parent=1 // pred_check
      _
    $region7: #{grounding_dino_forward.1} parent=1 // pred_check_branch
      %73 = sbr.rel (0) target = $region9
    $region8: #{grounding_dino_forward.1} parent=1 // pred_region
      _
    $region9: #{grounding_dino_forward.1} parent=1 // pred_fallthru
      _
    // Predicated region
    $region10: #{grounding_dino_forward.1} parent=1 // pred_check
      _
    $region11: #{grounding_dino_forward.1} parent=1 // pred_check_branch
      %75 = sbr.rel (0) target = $region13
    $region12: #{grounding_dino_forward.1} parent=1 // pred_region
      _
    $region13: #{grounding_dino_forward.1} parent=1 // pred_fallthru
      _
    // Predicated region
    $region14: #{grounding_dino_forward.1} parent=1 // pred_check
      _
    $region15: #{grounding_dino_forward.1} parent=1 // pred_check_branch
      %77 = sbr.rel (0) target = $region17
    $region16: #{grounding_dino_forward.1} parent=1 // pred_region
      _
    $region17: #{grounding_dino_forward.1} parent=1 // pred_fallthru
      _
    // Predicated region
    $region18: #{grounding_dino_forward.1} parent=1 // pred_check
      _
    $region19: #{grounding_dino_forward.1} parent=1 // pred_check_branch
      %79 = sbr.rel (0) target = $region21
    $region20: #{grounding_dino_forward.1} parent=1 // pred_region
      _
    $region21: #{grounding_dino_forward.1} parent=1 // pred_fallthru
      _
    // Predicated region
    $region22: #{grounding_dino_forward.1} parent=1 // pred_check
      _
    $region23: #{grounding_dino_forward.1} parent=1 // pred_check_branch
      %81 = sbr.rel (0) target = $region25
    $region24: #{grounding_dino_forward.1} parent=1 // pred_region
      _
    $region25: #{grounding_dino_forward.1} parent=1 // pred_fallthru
      _
    // Predicated region
    $region26: #{grounding_dino_forward.1} parent=1 // pred_check
      _
    $region27: #{grounding_dino_forward.1} parent=1 // pred_check_branch
      %83 = sbr.rel (0) target = $region29
    $region28: #{grounding_dino_forward.1} parent=1 // pred_region
      _
    $region29: #{grounding_dino_forward.1} parent=1 // pred_fallthru
      _
    // Predicated region
    $region30: #{grounding_dino_forward.1} parent=1 // pred_check
      _
    $region31: #{grounding_dino_forward.1} parent=1 // pred_check_branch
      %85 = sbr.rel (0) target = $region33
    $region32: #{grounding_dino_forward.1} parent=1 // pred_region
      _
    $region33: #{grounding_dino_forward.1} parent=1 // pred_fallthru
      _
    // Predicated region
    $region34: #{grounding_dino_forward.1} parent=1 // pred_check
      _
    $region35: #{grounding_dino_forward.1} parent=1 // pred_check_branch
      %87 = sbr.rel (0) target = $region37
    $region36: #{grounding_dino_forward.1} parent=1 // pred_region
      _
    $region37: #{grounding_dino_forward.1} parent=1 // pred_fallthru
      _
    // Predicated region
    $region38: #{grounding_dino_forward.1} parent=1 // pred_check
      _
    $region39: #{grounding_dino_forward.1} parent=1 // pred_check_branch
      %89 = sbr.rel (0) target = $region41
    $region40: #{grounding_dino_forward.1} parent=1 // pred_region
      _
    $region41: #{grounding_dino_forward.1} parent=1 // pred_fallthru
      _
    // Predicated region
    $region42: #{grounding_dino_forward.1} parent=1 // pred_check
      _
    $region43: #{grounding_dino_forward.1} parent=1 // pred_check_branch
      %91 = sbr.rel (0) target = $region45
    $region44: #{grounding_dino_forward.1} parent=1 // pred_region
      _
    $region45: #{grounding_dino_forward.1} parent=1 // pred_fallthru
      _
    // Predicated region
    $region46: #{grounding_dino_forward.1} parent=1 // pred_check
      _
    $region47: #{grounding_dino_forward.1} parent=1 // pred_check_branch
      %93 = sbr.rel (0) target = $region49
    $region48: #{grounding_dino_forward.1} parent=1 // pred_region
      _
    $region49: #{grounding_dino_forward.1} parent=1 // pred_fallthru
      _
    // Predicated region
    $region50: #{grounding_dino_forward.1} parent=1 // pred_check
      _
    $region51: #{grounding_dino_forward.1} parent=1 // pred_check_branch
      %95 = sbr.rel (0) target = $region53
    $region52: #{grounding_dino_forward.1} parent=1 // pred_region
      _
    $region53: #{grounding_dino_forward.1} parent=1 // pred_fallthru
      _
    // Predicated region
    $region54: #{grounding_dino_forward.1} parent=1 // pred_check
      _
    $region55: #{grounding_dino_forward.1} parent=1 // pred_check_branch
      %97 = sbr.rel (0) target = $region57
    $region56: #{grounding_dino_forward.1} parent=1 // pred_region
      _
    $region57: #{grounding_dino_forward.1} parent=1 // pred_fallthru
      _
    // Predicated region
    $region58: #{grounding_dino_forward.1} parent=1 // pred_check
      _
    $region59: #{grounding_dino_forward.1} parent=1 // pred_check_branch
      %99 = sbr.rel (0) target = $region61
    $region60: #{grounding_dino_forward.1} parent=1 // pred_region
      _
    $region61: #{grounding_dino_forward.1} parent=1 // pred_fallthru
      _
    // Predicated region
    $region62: #{grounding_dino_forward.1} parent=1 // pred_check
      _
    $region63: #{grounding_dino_forward.1} parent=1 // pred_check_branch
      %101 = sbr.rel (0) target = $region65
    $region64: #{grounding_dino_forward.1} parent=1 // pred_region
      _
    $region65: #{grounding_dino_forward.1} parent=1 // pred_fallthru
      _
    // Predicated region
    $region66: #{grounding_dino_forward.1} parent=1 // pred_check
      _
    $region67: #{grounding_dino_forward.1} parent=1 // pred_check_branch
      %103 = sbr.rel (0) target = $region69
    $region68: #{grounding_dino_forward.1} parent=1 // pred_region
      _
    $region69: #{grounding_dino_forward.1} parent=1 // pred_fallthru
      _
    // Predicated region
    $region70: #{grounding_dino_forward.1} parent=1 // pred_check
      _
    $region71: #{grounding_dino_forward.1} parent=1 // pred_check_branch
      %105 = sbr.rel (0) target = $region73
    $region72: #{grounding_dino_forward.1} parent=1 // pred_region
      _
    $region73: #{grounding_dino_forward.1} parent=1 // pred_fallthru
      _
    // Predicated region
    $region74: #{grounding_dino_forward.1} parent=1 // pred_check
      _
    $region75: #{grounding_dino_forward.1} parent=1 // pred_check_branch
      %107 = sbr.rel (0) target = $region77
    $region76: #{grounding_dino_forward.1} parent=1 // pred_region
      _
    $region77: #{grounding_dino_forward.1} parent=1 // pred_fallthru
      _
    // Predicated region
    $region78: #{grounding_dino_forward.1} parent=1 // pred_check
      _
    $region79: #{grounding_dino_forward.1} parent=1 // pred_check_branch
      %109 = sbr.rel (0) target = $region81
    $region80: #{grounding_dino_forward.1} parent=1 // pred_region
      _
    $region81: #{grounding_dino_forward.1} parent=1 // pred_fallthru
      _
    // Predicated region
    $region82: #{grounding_dino_forward.1} parent=1 // pred_check
      _
    $region83: #{grounding_dino_forward.1} parent=1 // pred_check_branch
      %111 = sbr.rel (0) target = $region85
    $region84: #{grounding_dino_forward.1} parent=1 // pred_region
      _
    $region85: #{grounding_dino_forward.1} parent=1 // pred_fallthru
      _
    // Predicated region
    $region86: #{grounding_dino_forward.1} parent=1 // pred_check
      _
    $region87: #{grounding_dino_forward.1} parent=1 // pred_check_branch
      %113 = sbr.rel (0) target = $region89
    $region88: #{grounding_dino_forward.1} parent=1 // pred_region
      _
    $region89: #{grounding_dino_forward.1} parent=1 // pred_fallthru
      _
    // Predicated region
    $region90: #{grounding_dino_forward.1} parent=1 // pred_check
      _
    $region91: #{grounding_dino_forward.1} parent=1 // pred_check_branch
      %115 = sbr.rel (0) target = $region93
    $region92: #{grounding_dino_forward.1} parent=1 // pred_region
      _
    $region93: #{grounding_dino_forward.1} parent=1 // pred_fallthru
      _
    // Predicated region
    $region94: #{grounding_dino_forward.1} parent=1 // pred_check
      _
    $region95: #{grounding_dino_forward.1} parent=1 // pred_check_branch
      %117 = sbr.rel (0) target = $region97
    $region96: #{grounding_dino_forward.1} parent=1 // pred_region
      _
    $region97: #{grounding_dino_forward.1} parent=1 // pred_fallthru
      _
    // Predicated region
    $region98: #{grounding_dino_forward.1} parent=1 // pred_check
      _
    $region99: #{grounding_dino_forward.1} parent=1 // pred_check_branch
      %119 = sbr.rel (0) target = $region101
    $region100: #{grounding_dino_forward.1} parent=1 // pred_region
      _
    $region101: #{grounding_dino_forward.1} parent=1 // pred_fallthru
      _
    // Predicated region
    $region102: #{grounding_dino_forward.1} parent=1 // pred_check
      _
    $region103: #{grounding_dino_forward.1} parent=1 // pred_check_branch
      %121 = sbr.rel (0) target = $region105
    $region104: #{grounding_dino_forward.1} parent=1 // pred_region
      _
    $region105: #{grounding_dino_forward.1} parent=1 // pred_fallthru
      _
    // Predicated region
    $region106: #{grounding_dino_forward.1} parent=1 // pred_check
      _
    $region107: #{grounding_dino_forward.1} parent=1 // pred_check_branch
      %123 = sbr.rel (0) target = $region109
    $region108: #{grounding_dino_forward.1} parent=1 // pred_region
      _
    $region109: #{grounding_dino_forward.1} parent=1 // pred_fallthru
      _
    %v125 = vld [vmem:[%s1] sm:$0xff]
    %v126 = vld [vmem:[%s1 + $0x8] sm:$0xff]
    %v127 = vpack.c.bf16 %v126, %v125
    %v128 = vld [vmem:[%s21] sm:$0xff]
    %v129 = vld [vmem:[%s21 + $0x8] sm:$0xff]
    %v130 = vld [vmem:[%s21 + $0x10] sm:$0xff]
    %v131 = vld [vmem:[%s21 + $0x18] sm:$0xff]
    %v132 = vld [vmem:[%s21 + $0x20] sm:$0xff]
    %v133 = vld [vmem:[%s21 + $0x28] sm:$0xff]
    %v134 = vld [vmem:[%s21 + $0x30] sm:$0xff]
    %v135 = vld [vmem:[%s21 + $0x38] sm:$0xff]
    %v136 = vpack.c.bf16 %v129, %v128
    %v137 = vpack.c.bf16 %v131, %v130
    %v138 = vpack.c.bf16 %v133, %v132
    %v139 = vpack.c.bf16 %v135, %v134
    %v140 = vld [vmem:[%s23] sm:$0x1]
    %v142 = vperm.slane %v140, 0
    %vm144 = vcmask 523264
    %v146 = vsel %vm144, %v127, 0
    %148 = vmatpush.bf16.msra.mxu0 0
    %149 = vmatpush.bf16.msra.mxu0 0
    %150 = vmatpush.bf16.msra.mxu0 0
    %151 = vmatpush.bf16.msra.mxu0 0
    %152 = vmatpush.bf16.msra.mxu0 %v139
    %153 = vmatpush.bf16.msra.mxu0 %v138
    %154 = vmatpush.bf16.msra.mxu0 %v137
    %155 = vmatpush.bf16.msra.mxu0 %v136
    %156 = vmatmul.bf16.gmra.mxu0 %v146
    %v157 = vpop.f32.mrf.mxu0
    %v158 = vadd.f32 %v142, %v157
    %v159 = vpop.f32.mrf.mxu0
    %v160 = vadd.f32 %v142, %v159
    %161 = vdwg.mxu0
    %vm162 = vcmask 261120
    %163 = vst.msk [vmem:[#allocation3] sm:$0xff] %vm162, %v158
    %164 = vst.msk [vmem:[#allocation3 + $0x8] sm:$0xff] %vm162, %v160
    %v165 = vld [vmem:[%s5] sm:$0xff]
    %v166 = vld [vmem:[%s5 + $0x8] sm:$0xff]
    %v167 = vld [vmem:[%s5 + $0x10] sm:$0xff]
    %v168 = vld [vmem:[%s5 + $0x18] sm:$0xff]
    %v169 = vpack.c.bf16 %v165, %v165
    %v170 = vpack.c.bf16 %v166, %v166
    %v171 = vpack.c.bf16 %v167, %v167
    %v172 = vpack.c.bf16 %v168, %v168
    %v173 = vld [vmem:[%s43] sm:$0xff]
    %v174 = vld [vmem:[%s43 + $0x8] sm:$0xff]
    %v175 = vld [vmem:[%s43 + $0x10] sm:$0xff]
    %v176 = vld [vmem:[%s43 + $0x18] sm:$0xff]
    %v177 = vpack.c.bf16 %v174, %v173
    %v178 = vpack.c.bf16 %v176, %v175
    %v179 = vld [vmem:[%s45] sm:$0x1]
    %v181 = vperm.slane %v179, 0
    %v187 = vunpack.c.l.b16 %v169
    %v188 = vunpack.c.l.b16 %v170
    %v189 = vunpack.c.l.b16 %v171
    %v190 = vunpack.c.l.b16 %v172
    %v191 = vpack.c.b16 %v188, %v187
    %v192 = vpack.c.b16 %v190, %v189
    %v194 = vsel %vm162, %v191, 0
    %v197 = vsel %vm162, %v192, 0
    %199 = vmatpush.bf16.msra.mxu0 0
    %200 = vmatpush.bf16.msra.mxu0 0
    %201 = vmatpush.bf16.msra.mxu0 0
    %202 = vmatpush.bf16.msra.mxu0 0
    %203 = vmatpush.bf16.msra.mxu0 0
    %204 = vmatpush.bf16.msra.mxu0 0
    %205 = vmatpush.bf16.msra.mxu0 %v178
    %206 = vmatpush.bf16.msra.mxu0 %v177
    %207 = vmatmul.bf16.gmra.mxu0 %v194
    %v208 = vpop.f32.mrf.mxu0
    %v209 = vadd.f32 %v181, %v208
    %v210 = vpop.f32.mrf.mxu0
    %v211 = vadd.f32 %v181, %v210
    %212 = vmatmul.bf16.gmra.mxu0 %v197
    %v213 = vpop.f32.mrf.mxu0
    %v214 = vadd.f32 %v181, %v213
    %v215 = vpop.f32.mrf.mxu0
    %v216 = vadd.f32 %v181, %v215
    %217 = vdwg.mxu0
    %v218 = vmax.f32 %v209, 0.0
    %v219 = vmax.f32 %v211, 0.0
    %v220 = vmax.f32 %v214, 0.0
    %v221 = vmax.f32 %v216, 0.0
    %v222 = vpack.c.bf16 %v219, %v218
    %v223 = vpack.c.bf16 %v221, %v220
    %v224 = vld [vmem:[%s47] sm:$0xff]
    %v225 = vld [vmem:[%s47 + $0x8] sm:$0xff]
    %v226 = vld [vmem:[%s47 + $0x10] sm:$0xff]
    %v227 = vld [vmem:[%s47 + $0x18] sm:$0xff]
    %v228 = vpack.c.bf16 %v225, %v224
    %v229 = vpack.c.bf16 %v227, %v226
    %v230 = vld [vmem:[%s49] sm:$0x1]
    %v232 = vperm.slane %v230, 0
    %v235 = vsel %vm162, %v222, 0
    %v238 = vsel %vm162, %v223, 0
    %240 = vmatpush.bf16.msra.mxu0 0
    %241 = vmatpush.bf16.msra.mxu0 0
    %242 = vmatpush.bf16.msra.mxu0 0
    %243 = vmatpush.bf16.msra.mxu0 0
    %244 = vmatpush.bf16.msra.mxu0 0
    %245 = vmatpush.bf16.msra.mxu0 0
    %246 = vmatpush.bf16.msra.mxu0 %v229
    %247 = vmatpush.bf16.msra.mxu0 %v228
    %248 = vmatmul.bf16.gmra.mxu0 %v235
    %v249 = vpop.f32.mrf.mxu0
    %v250 = vadd.f32 %v232, %v249
    %v251 = vpop.f32.mrf.mxu0
    %v252 = vadd.f32 %v232, %v251
    %253 = vmatmul.bf16.gmra.mxu0 %v238
    %v254 = vpop.f32.mrf.mxu0
    %v255 = vadd.f32 %v232, %v254
    %v256 = vpop.f32.mrf.mxu0
    %v257 = vadd.f32 %v232, %v256
    %258 = vdwg.mxu0
    %v259 = vmax.f32 %v250, 0.0
    %v260 = vmax.f32 %v252, 0.0
    %v261 = vmax.f32 %v255, 0.0
    %v262 = vmax.f32 %v257, 0.0
    %v263 = vpack.c.bf16 %v260, %v259
    %v264 = vpack.c.bf16 %v262, %v261
    %v265 = vld [vmem:[%s51] sm:$0xff]
    %v266 = vld [vmem:[%s51 + $0x8] sm:$0xff]
    %v267 = vld [vmem:[%s51 + $0x10] sm:$0xff]
    %v268 = vld [vmem:[%s51 + $0x18] sm:$0xff]
    %v269 = vpack.c.bf16 %v266, %v265
    %v270 = vpack.c.bf16 %v268, %v267
    %v271 = vld [vmem:[%s53] sm:$0x1]
    %v273 = vperm.slane %v271, 0
    %v276 = vsel %vm162, %v263, 0
    %v279 = vsel %vm162, %v264, 0
    %281 = vmatpush.bf16.msra.mxu0 0
    %282 = vmatpush.bf16.msra.mxu0 0
    %283 = vmatpush.bf16.msra.mxu0 0
    %284 = vmatpush.bf16.msra.mxu0 0
    %285 = vmatpush.bf16.msra.mxu0 0
    %286 = vmatpush.bf16.msra.mxu0 0
    %287 = vmatpush.bf16.msra.mxu0 %v270
    %288 = vmatpush.bf16.msra.mxu0 %v269
    %289 = vmatmul.bf16.gmra.mxu0 %v276
    %v290 = vpop.f32.mrf.mxu0
    %v291 = vadd.f32 %v273, %v290
    %v292 = vpop.f32.mrf.mxu0
    %v293 = vadd.f32 %v273, %v292
    %294 = vmatmul.bf16.gmra.mxu0 %v279
    %v295 = vpop.f32.mrf.mxu0
    %v296 = vadd.f32 %v273, %v295
    %v297 = vpop.f32.mrf.mxu0
    %v298 = vadd.f32 %v273, %v297
    %299 = vdwg.mxu0
    %v300 = vld [vmem:[%s7] sm:$0xff]
    %v301 = vld [vmem:[%s7 + $0x8] sm:$0xff]
    %v302 = vld [vmem:[%s7 + $0x10] sm:$0xff]
    %v303 = vld [vmem:[%s7 + $0x18] sm:$0xff]
    %v304 = vmax.f32 %v300, 0.0
    %v305 = vmax.f32 %v301, 0.0
    %v306 = vmax.f32 %v302, 0.0
    %v307 = vmax.f32 %v303, 0.0
    %v308 = vmin.f32 %v304, 1.0
    %v309 = vmin.f32 %v305, 1.0
    %v310 = vmin.f32 %v306, 1.0
    %v311 = vmin.f32 %v307, 1.0
    %v312 = vmax.f32 %v308, 0.001
    %v313 = vmax.f32 %v309, 0.001
    %v314 = vmax.f32 %v310, 0.001
    %v315 = vmax.f32 %v311, 0.001
    %v316 = vsub.f32 1.0, %v308
    %v317 = vsub.f32 1.0, %v309
    %v318 = vsub.f32 1.0, %v310
    %v319 = vsub.f32 1.0, %v311
    %v320 = vmax.f32 %v316, 0.001
    %v321 = vmax.f32 %v317, 0.001
    %v322 = vmax.f32 %v318, 0.001
    %v323 = vmax.f32 %v319, 0.001
    %v324 = vrcp.pop %v320
    %v325 = vmul.f32 %v320, %v324
    %v326 = vsub.f32 1.0, %v325
    %v327 = vmul.f32 %v324, %v326
    %v328 = vadd.f32 %v324, %v327
    %vm329 = vweird.f32 %v320
    %vm330 = vweird.f32 %v324
    %vm331 = vmor %vm329, %vm330
    %v332 = vsel %vm331, %v324, %v328
    %v333 = vand.u32 2147483647, %v320
    %vm334 = vcmp.eq.f32.partialorder %v333, 8.507059e+37
    %v335 = vand.u32 %v320, 2147483648
    %v336 = vor.u32 1.1754944e-38, %v335
    %v337 = vsel %vm334, %v336, %v332
    %v338 = vmul.f32 %v312, %v337
    %v339 = vrcp.pop %v321
    %v340 = vmul.f32 %v321, %v339
    %v341 = vsub.f32 1.0, %v340
    %v342 = vmul.f32 %v339, %v341
    %v343 = vadd.f32 %v339, %v342
    %vm344 = vweird.f32 %v321
    %vm345 = vweird.f32 %v339
    %vm346 = vmor %vm344, %vm345
    %v347 = vsel %vm346, %v339, %v343
    %v348 = vand.u32 2147483647, %v321
    %vm349 = vcmp.eq.f32.partialorder %v348, 8.507059e+37
    %v350 = vand.u32 %v321, 2147483648
    %v351 = vor.u32 1.1754944e-38, %v350
    %v352 = vsel %vm349, %v351, %v347
    %v353 = vmul.f32 %v313, %v352
    %v354 = vrcp.pop %v322
    %v355 = vmul.f32 %v322, %v354
    %v356 = vsub.f32 1.0, %v355
    %v357 = vmul.f32 %v354, %v356
    %v358 = vadd.f32 %v354, %v357
    %vm359 = vweird.f32 %v322
    %vm360 = vweird.f32 %v354
    %vm361 = vmor %vm359, %vm360
    %v362 = vsel %vm361, %v354, %v358
    %v363 = vand.u32 2147483647, %v322
    %vm364 = vcmp.eq.f32.partialorder %v363, 8.507059e+37
    %v365 = vand.u32 %v322, 2147483648
    %v366 = vor.u32 1.1754944e-38, %v365
    %v367 = vsel %vm364, %v366, %v362
    %v368 = vmul.f32 %v314, %v367
    %v369 = vrcp.pop %v323
    %v370 = vmul.f32 %v323, %v369
    %v371 = vsub.f32 1.0, %v370
    %v372 = vmul.f32 %v369, %v371
    %v373 = vadd.f32 %v369, %v372
    %vm374 = vweird.f32 %v323
    %vm375 = vweird.f32 %v369
    %vm376 = vmor %vm374, %vm375
    %v377 = vsel %vm376, %v369, %v373
    %v378 = vand.u32 2147483647, %v323
    %vm379 = vcmp.eq.f32.partialorder %v378, 8.507059e+37
    %v380 = vand.u32 %v323, 2147483648
    %v381 = vor.u32 1.1754944e-38, %v380
    %v382 = vsel %vm379, %v381, %v377
    %v383 = vmul.f32 %v315, %v382
    %v384 = vlog2.pop %v338
    %v385 = vmul.f32 %v384, 0.6931472
    %v386 = vlog2.pop %v353
    %v387 = vmul.f32 %v386, 0.6931472
    %v388 = vlog2.pop %v368
    %v389 = vmul.f32 %v388, 0.6931472
    %v390 = vlog2.pop %v383
    %v391 = vmul.f32 %v390, 0.6931472
    %v392 = vadd.f32 %v291, %v385
    %v393 = vadd.f32 %v293, %v387
    %v394 = vadd.f32 %v296, %v389
    %v395 = vadd.f32 %v298, %v391
    %v396 = vsub.f32 0.0, %v392
    %v397 = vsub.f32 0.0, %v393
    %v398 = vsub.f32 0.0, %v394
    %v399 = vsub.f32 0.0, %v395
    %v400 = vmul.f32 %v396, 1.442695
    %v401 = vpow.pop %v400
    %v402 = vmul.f32 %v397, 1.442695
    %v403 = vpow.pop %v402
    %v404 = vmul.f32 %v398, 1.442695
    %v405 = vpow.pop %v404
    %v406 = vmul.f32 %v399, 1.442695
    %v407 = vpow.pop %v406
    %v408 = vadd.f32 %v401, 1.0
    %v409 = vadd.f32 %v403, 1.0
    %v410 = vadd.f32 %v405, 1.0
    %v411 = vadd.f32 %v407, 1.0
    %v412 = vrcp.pop %v408
    %v413 = vmul.f32 %v408, %v412
    %v414 = vsub.f32 1.0, %v413
    %v415 = vmul.f32 %v412, %v414
    %v416 = vadd.f32 %v412, %v415
    %vm417 = vweird.f32 %v408
    %vm418 = vweird.f32 %v412
    %vm419 = vmor %vm417, %vm418
    %v420 = vsel %vm419, %v412, %v416
    %v421 = vand.u32 2147483647, %v408
    %vm422 = vcmp.eq.f32.partialorder %v421, 8.507059e+37
    %v423 = vand.u32 %v408, 2147483648
    %v424 = vor.u32 1.1754944e-38, %v423
    %v425 = vsel %vm422, %v424, %v420
    %v426 = vmul.f32 1.0, %v425
    %v427 = vrcp.pop %v409
    %v428 = vmul.f32 %v409, %v427
    %v429 = vsub.f32 1.0, %v428
    %v430 = vmul.f32 %v427, %v429
    %v431 = vadd.f32 %v427, %v430
    %vm432 = vweird.f32 %v409
    %vm433 = vweird.f32 %v427
    %vm434 = vmor %vm432, %vm433
    %v435 = vsel %vm434, %v427, %v431
    %v436 = vand.u32 2147483647, %v409
    %vm437 = vcmp.eq.f32.partialorder %v436, 8.507059e+37
    %v438 = vand.u32 %v409, 2147483648
    %v439 = vor.u32 1.1754944e-38, %v438
    %v440 = vsel %vm437, %v439, %v435
    %v441 = vmul.f32 1.0, %v440
    %v442 = vrcp.pop %v410
    %v443 = vmul.f32 %v410, %v442
    %v444 = vsub.f32 1.0, %v443
    %v445 = vmul.f32 %v442, %v444
    %v446 = vadd.f32 %v442, %v445
    %vm447 = vweird.f32 %v410
    %vm448 = vweird.f32 %v442
    %vm449 = vmor %vm447, %vm448
    %v450 = vsel %vm449, %v442, %v446
    %v451 = vand.u32 2147483647, %v410
    %vm452 = vcmp.eq.f32.partialorder %v451, 8.507059e+37
    %v453 = vand.u32 %v410, 2147483648
    %v454 = vor.u32 1.1754944e-38, %v453
    %v455 = vsel %vm452, %v454, %v450
    %v456 = vmul.f32 1.0, %v455
    %v457 = vrcp.pop %v411
    %v458 = vmul.f32 %v411, %v457
    %v459 = vsub.f32 1.0, %v458
    %v460 = vmul.f32 %v457, %v459
    %v461 = vadd.f32 %v457, %v460
    %vm462 = vweird.f32 %v411
    %vm463 = vweird.f32 %v457
    %vm464 = vmor %vm462, %vm463
    %v465 = vsel %vm464, %v457, %v461
    %v466 = vand.u32 2147483647, %v411
    %vm467 = vcmp.eq.f32.partialorder %v466, 8.507059e+37
    %v468 = vand.u32 %v411, 2147483648
    %v469 = vor.u32 1.1754944e-38, %v468
    %v470 = vsel %vm467, %v469, %v465
    %v471 = vmul.f32 1.0, %v470
    %vm472 = vcmask 31744
    %473 = vst.msk [vmem:[%s59] sm:$0xff] %vm472, %v426
    %474 = vst.msk [vmem:[%s59 + $0x8] sm:$0xff] %vm472, %v441
    %475 = vst.msk [vmem:[%s59 + $0x10] sm:$0xff] %vm472, %v456
    %476 = vst.msk [vmem:[%s59 + $0x18] sm:$0xff] %vm472, %v471
    %477 = vst.msk [vmem:[#allocation2] sm:$0xff] %vm162, 0.0
    %478 = vst.msk [vmem:[#allocation2 + $0x8] sm:$0xff] %vm162, 0.0
    %479 = vst.msk [vmem:[#allocation2 + $0x10] sm:$0xff] %vm162, 0.0
    %480 = vst.msk [vmem:[#allocation2 + $0x18] sm:$0xff] %vm162, 0.0
    %481 = vst.msk [vmem:[#allocation2 + $0x20] sm:$0xff] %vm162, 0.0
    %482 = vst.msk [vmem:[#allocation2 + $0x28] sm:$0xff] %vm162, 0.0
    %483 = vst.msk [vmem:[#allocation2 + $0x30] sm:$0xff] %vm162, 0.0
    %484 = vst.msk [vmem:[#allocation2 + $0x38] sm:$0xff] %vm162, 0.0
    %485 = vst.msk [vmem:[#allocation2 + $0x40] sm:$0xff] %vm162, 0.0
    %486 = vst.msk [vmem:[#allocation2 + $0x48] sm:$0xff] %vm162, 0.0
    %487 = vst.msk [vmem:[#allocation2 + $0x50] sm:$0xff] %vm162, 0.0
    %488 = vst.msk [vmem:[#allocation2 + $0x58] sm:$0xff] %vm162, 0.0
    %489 = vst.msk [vmem:[#allocation2 + $0x60] sm:$0xff] %vm162, 0.0
    %490 = vst.msk [vmem:[#allocation2 + $0x68] sm:$0xff] %vm162, 0.0
    %491 = vst.msk [vmem:[#allocation2 + $0x70] sm:$0xff] %vm162, 0.0
    %492 = vst.msk [vmem:[#allocation2 + $0x78] sm:$0xff] %vm162, 0.0
    %493 = vst.msk [vmem:[#allocation2 + $0x80] sm:$0xff] %vm162, 0.0
    %494 = vst.msk [vmem:[#allocation2 + $0x88] sm:$0xff] %vm162, 0.0
    %495 = vst.msk [vmem:[#allocation2 + $0x90] sm:$0xff] %vm162, 0.0
    %496 = vst.msk [vmem:[#allocation2 + $0x98] sm:$0xff] %vm162, 0.0
    %497 = vst.msk [vmem:[#allocation2 + $0xa0] sm:$0xff] %vm162, 0.0
    %498 = vst.msk [vmem:[#allocation2 + $0xa8] sm:$0xff] %vm162, 0.0
    %499 = vst.msk [vmem:[#allocation2 + $0xb0] sm:$0xff] %vm162, 0.0
    %500 = vst.msk [vmem:[#allocation2 + $0xb8] sm:$0xff] %vm162, 0.0
    %501 = vst.msk [vmem:[#allocation2 + $0xc0] sm:$0xff] %vm162, 0.0
    %502 = vst.msk [vmem:[#allocation2 + $0xc8] sm:$0xff] %vm162, 0.0
    %503 = vst.msk [vmem:[#allocation2 + $0xd0] sm:$0xff] %vm162, 0.0
    %504 = vst.msk [vmem:[#allocation2 + $0xd8] sm:$0xff] %vm162, 0.0
    %505 = vst.msk [vmem:[#allocation2 + $0xe0] sm:$0xff] %vm162, 0.0
    %506 = vst.msk [vmem:[#allocation2 + $0xe8] sm:$0xff] %vm162, 0.0
    %507 = vst.msk [vmem:[#allocation2 + $0xf0] sm:$0xff] %vm162, 0.0
    %508 = vst.msk [vmem:[#allocation2 + $0xf8] sm:$0xff] %vm162, 0.0
    %509 = vst.msk [vmem:[#allocation2] sm:$0xff] %vm162, %v158
    %v510 = vld [vmem:[#allocation2] sm:$0xff]
    %v511 = vld [vmem:[#allocation2 + $0x8] sm:$0xff]
    %v512 = vld [vmem:[#allocation2 + $0x10] sm:$0xff]
    %v513 = vld [vmem:[#allocation2 + $0x18] sm:$0xff]
    %v514 = vld [vmem:[#allocation2 + $0x20] sm:$0xff]
    %v515 = vld [vmem:[#allocation2 + $0x28] sm:$0xff]
    %v516 = vld [vmem:[#allocation2 + $0x30] sm:$0xff]
    %v517 = vld [vmem:[#allocation2 + $0x38] sm:$0xff]
    %v518 = vld [vmem:[#allocation2 + $0x40] sm:$0xff]
    %v519 = vld [vmem:[#allocation2 + $0x48] sm:$0xff]
    %v520 = vld [vmem:[#allocation2 + $0x50] sm:$0xff]
    %v521 = vld [vmem:[#allocation2 + $0x58] sm:$0xff]
    %v522 = vld [vmem:[#allocation2 + $0x60] sm:$0xff]
    %v523 = vld [vmem:[#allocation2 + $0x68] sm:$0xff]
    %v524 = vld [vmem:[#allocation2 + $0x70] sm:$0xff]
    %v525 = vld [vmem:[#allocation2 + $0x78] sm:$0xff]
    %v526 = vld [vmem:[#allocation2 + $0x80] sm:$0xff]
    %v527 = vld [vmem:[#allocation2 + $0x88] sm:$0xff]
    %v528 = vld [vmem:[#allocation2 + $0x90] sm:$0xff]
    %v529 = vld [vmem:[#allocation2 + $0x98] sm:$0xff]
    %v530 = vld [vmem:[#allocation2 + $0xa0] sm:$0xff]
    %v531 = vld [vmem:[#allocation2 + $0xa8] sm:$0xff]
    %v532 = vld [vmem:[#allocation2 + $0xb0] sm:$0xff]
    %v533 = vld [vmem:[#allocation2 + $0xb8] sm:$0xff]
    %v534 = vld [vmem:[#allocation2 + $0xc0] sm:$0xff]
    %v535 = vld [vmem:[#allocation2 + $0xc8] sm:$0xff]
    %v536 = vld [vmem:[#allocation2 + $0xd0] sm:$0xff]
    %v537 = vld [vmem:[#allocation2 + $0xd8] sm:$0xff]
    %v538 = vld [vmem:[#allocation2 + $0xe0] sm:$0xff]
    %v539 = vld [vmem:[#allocation2 + $0xe8] sm:$0xff]
    %v540 = vld [vmem:[#allocation2 + $0xf0] sm:$0xff]
    %v541 = vld [vmem:[#allocation2 + $0xf8] sm:$0xff]
    %v542 = vpack.c.bf16 %v511, %v510
    %v543 = vpack.c.bf16 %v513, %v512
    %v544 = vpack.c.bf16 %v515, %v514
    %v545 = vpack.c.bf16 %v517, %v516
    %v546 = vpack.c.bf16 %v519, %v518
    %v547 = vpack.c.bf16 %v521, %v520
    %v548 = vpack.c.bf16 %v523, %v522
    %v549 = vpack.c.bf16 %v525, %v524
    %v550 = vpack.c.bf16 %v527, %v526
    %v551 = vpack.c.bf16 %v529, %v528
    %v552 = vpack.c.bf16 %v531, %v530
    %v553 = vpack.c.bf16 %v533, %v532
    %v554 = vpack.c.bf16 %v535, %v534
    %v555 = vpack.c.bf16 %v537, %v536
    %v556 = vpack.c.bf16 %v539, %v538
    %v557 = vpack.c.bf16 %v541, %v540
    %v558 = vld [vmem:[%s3] sm:$0x3]
    %vm559 = vcmp.gt.s32.totalorder %v558, 0
    %v561 = vsel %vm162, %v169, 0
    %v564 = vsel %vm162, %v542, 0
    %v567 = vsel %vm162, %v543, 0
    %v570 = vsel %vm162, %v544, 0
    %v573 = vsel %vm162, %v545, 0
    %v576 = vsel %vm162, %v546, 0
    %v579 = vsel %vm162, %v547, 0
    %v582 = vsel %vm162, %v548, 0
    %v585 = vsel %vm162, %v549, 0
    %v588 = vsel %vm162, %v550, 0
    %v591 = vsel %vm162, %v551, 0
    %v594 = vsel %vm162, %v552, 0
    %v597 = vsel %vm162, %v553, 0
    %v600 = vsel %vm162, %v554, 0
    %v603 = vsel %vm162, %v555, 0
    %v606 = vsel %vm162, %v556, 0
    %v609 = vsel %vm162, %v557, 0
    %611 = vmatpush.bf16.xpose.msra.mxu0 %v585
    %612 = vmatpush.bf16.xpose.msra.mxu0 %v582
    %613 = vmatpush.bf16.xpose.msra.mxu0 %v579
    %614 = vmatpush.bf16.xpose.msra.mxu0 %v576
    %615 = vmatpush.bf16.xpose.msra.mxu0 %v573
    %616 = vmatpush.bf16.xpose.msra.mxu0 %v570
    %617 = vmatpush.bf16.xpose.msra.mxu0 %v567
    %618 = vmatpush.bf16.xpose.msra.mxu0 %v564
    %619 = vmatmul.bf16.gmra.mxu0 %v561
    %v620 = vpop.f32.mrf.mxu0
    %v621 = vadd.f32 0.0, %v620
    %v622 = vpop.f32.mrf.mxu0
    %623 = vdwg.mxu0
    %624 = vmatpush.bf16.xpose.msra.mxu0 %v609
    %625 = vmatpush.bf16.xpose.msra.mxu0 %v606
    %626 = vmatpush.bf16.xpose.msra.mxu0 %v603
    %627 = vmatpush.bf16.xpose.msra.mxu0 %v600
    %628 = vmatpush.bf16.xpose.msra.mxu0 %v597
    %629 = vmatpush.bf16.xpose.msra.mxu0 %v594
    %630 = vmatpush.bf16.xpose.msra.mxu0 %v591
    %631 = vmatpush.bf16.xpose.msra.mxu0 %v588
    %632 = vmatmul.bf16.gmra.mxu0 %v561
    %v633 = vpop.f32.mrf.mxu0
    %v634 = vadd.f32 0.0, %v633
    %v635 = vpop.f32.mrf.mxu0
    %636 = vdwg.mxu0
    %v637 = vsel %vm559, 1, 0
    %v638 = vperm.slane %v637, 0
    %v639 = vperm.slane %v637, 1
    %vm640 = vcmp.eq.s32.totalorder %v638, 1
    %vm641 = vcmp.eq.s32.totalorder %v639, 1
    %v642 = vsel %vm640, %v621, -inf
    %v643 = vsel %vm641, %v634, -inf
    %644 = vst [vmem:[%s57] sm:$0xff] %v642
    %645 = vst [vmem:[%s57 + $0x8] sm:$0xff] %v643
    %v647 = vsel %vm162, %v171, 0
    %649 = vmatpush.bf16.xpose.msra.mxu0 %v585
    %650 = vmatpush.bf16.xpose.msra.mxu0 %v582
    %651 = vmatpush.bf16.xpose.msra.mxu0 %v579
    %652 = vmatpush.bf16.xpose.msra.mxu0 %v576
    %653 = vmatpush.bf16.xpose.msra.mxu0 %v573
    %654 = vmatpush.bf16.xpose.msra.mxu0 %v570
    %655 = vmatpush.bf16.xpose.msra.mxu0 %v567
    %656 = vmatpush.bf16.xpose.msra.mxu0 %v564
    %657 = vmatmul.bf16.gmra.mxu0 %v647
    %v658 = vpop.f32.mrf.mxu0
    %v659 = vadd.f32 0.0, %v658
    %v660 = vpop.f32.mrf.mxu0
    %661 = vdwg.mxu0
    %662 = vmatpush.bf16.xpose.msra.mxu0 %v609
    %663 = vmatpush.bf16.xpose.msra.mxu0 %v606
    %664 = vmatpush.bf16.xpose.msra.mxu0 %v603
    %665 = vmatpush.bf16.xpose.msra.mxu0 %v600
    %666 = vmatpush.bf16.xpose.msra.mxu0 %v597
    %667 = vmatpush.bf16.xpose.msra.mxu0 %v594
    %668 = vmatpush.bf16.xpose.msra.mxu0 %v591
    %669 = vmatpush.bf16.xpose.msra.mxu0 %v588
    %670 = vmatmul.bf16.gmra.mxu0 %v647
    %v671 = vpop.f32.mrf.mxu0
    %v672 = vadd.f32 0.0, %v671
    %v673 = vpop.f32.mrf.mxu0
    %674 = vdwg.mxu0
    %v675 = vsel %vm640, %v659, -inf
    %v676 = vsel %vm641, %v672, -inf
    %s677 = scalar_lea.vmem %s57, 32
    %678 = vst [vmem:[%s677] sm:$0xff] %v675
    %679 = vst [vmem:[%s677 + $0x8] sm:$0xff] %v676
    %680 = vst.msk [vmem:[#allocation2] sm:$0xff] %vm162, %v160
    %v681 = vld [vmem:[#allocation2] sm:$0xff]
    %v682 = vld [vmem:[#allocation2 + $0x8] sm:$0xff]
    %v683 = vld [vmem:[#allocation2 + $0x10] sm:$0xff]
    %v684 = vld [vmem:[#allocation2 + $0x18] sm:$0xff]
    %v685 = vld [vmem:[#allocation2 + $0x20] sm:$0xff]
    %v686 = vld [vmem:[#allocation2 + $0x28] sm:$0xff]
    %v687 = vld [vmem:[#allocation2 + $0x30] sm:$0xff]
    %v688 = vld [vmem:[#allocation2 + $0x38] sm:$0xff]
    %v689 = vld [vmem:[#allocation2 + $0x40] sm:$0xff]
    %v690 = vld [vmem:[#allocation2 + $0x48] sm:$0xff]
    %v691 = vld [vmem:[#allocation2 + $0x50] sm:$0xff]
    %v692 = vld [vmem:[#allocation2 + $0x58] sm:$0xff]
    %v693 = vld [vmem:[#allocation2 + $0x60] sm:$0xff]
    %v694 = vld [vmem:[#allocation2 + $0x68] sm:$0xff]
    %v695 = vld [vmem:[#allocation2 + $0x70] sm:$0xff]
    %v696 = vld [vmem:[#allocation2 + $0x78] sm:$0xff]
    %v697 = vld [vmem:[#allocation2 + $0x80] sm:$0xff]
    %v698 = vld [vmem:[#allocation2 + $0x88] sm:$0xff]
    %v699 = vld [vmem:[#allocation2 + $0x90] sm:$0xff]
    %v700 = vld [vmem:[#allocation2 + $0x98] sm:$0xff]
    %v701 = vld [vmem:[#allocation2 + $0xa0] sm:$0xff]
    %v702 = vld [vmem:[#allocation2 + $0xa8] sm:$0xff]
    %v703 = vld [vmem:[#allocation2 + $0xb0] sm:$0xff]
    %v704 = vld [vmem:[#allocation2 + $0xb8] sm:$0xff]
    %v705 = vld [vmem:[#allocation2 + $0xc0] sm:$0xff]
    %v706 = vld [vmem:[#allocation2 + $0xc8] sm:$0xff]
    %v707 = vld [vmem:[#allocation2 + $0xd0] sm:$0xff]
    %v708 = vld [vmem:[#allocation2 + $0xd8] sm:$0xff]
    %v709 = vld [vmem:[#allocation2 + $0xe0] sm:$0xff]
    %v710 = vld [vmem:[#allocation2 + $0xe8] sm:$0xff]
    %v711 = vld [vmem:[#allocation2 + $0xf0] sm:$0xff]
    %v712 = vld [vmem:[#allocation2 + $0xf8] sm:$0xff]
    %v713 = vpack.c.bf16 %v682, %v681
    %v714 = vpack.c.bf16 %v684, %v683
    %v715 = vpack.c.bf16 %v686, %v685
    %v716 = vpack.c.bf16 %v688, %v687
    %v717 = vpack.c.bf16 %v690, %v689
    %v718 = vpack.c.bf16 %v692, %v691
    %v719 = vpack.c.bf16 %v694, %v693
    %v720 = vpack.c.bf16 %v696, %v695
    %v721 = vpack.c.bf16 %v698, %v697
    %v722 = vpack.c.bf16 %v700, %v699
    %v723 = vpack.c.bf16 %v702, %v701
    %v724 = vpack.c.bf16 %v704, %v703
    %v725 = vpack.c.bf16 %v706, %v705
    %v726 = vpack.c.bf16 %v708, %v707
    %v727 = vpack.c.bf16 %v710, %v709
    %v728 = vpack.c.bf16 %v712, %v711
    %s729 = scalar_lea.vmem %s3, 2
    %v730 = vld [vmem:[%s729] sm:$0x3]
    %vm731 = vcmp.gt.s32.totalorder %v730, 0
    %v733 = vsel %vm162, %v170, 0
    %v736 = vsel %vm162, %v713, 0
    %v739 = vsel %vm162, %v714, 0
    %v742 = vsel %vm162, %v715, 0
    %v745 = vsel %vm162, %v716, 0
    %v748 = vsel %vm162, %v717, 0
    %v751 = vsel %vm162, %v718, 0
    %v754 = vsel %vm162, %v719, 0
    %v757 = vsel %vm162, %v720, 0
    %v760 = vsel %vm162, %v721, 0
    %v763 = vsel %vm162, %v722, 0
    %v766 = vsel %vm162, %v723, 0
    %v769 = vsel %vm162, %v724, 0
    %v772 = vsel %vm162, %v725, 0
    %v775 = vsel %vm162, %v726, 0
    %v778 = vsel %vm162, %v727, 0
    %v781 = vsel %vm162, %v728, 0
    %783 = vmatpush.bf16.xpose.msra.mxu0 %v757
    %784 = vmatpush.bf16.xpose.msra.mxu0 %v754
    %785 = vmatpush.bf16.xpose.msra.mxu0 %v751
    %786 = vmatpush.bf16.xpose.msra.mxu0 %v748
    %787 = vmatpush.bf16.xpose.msra.mxu0 %v745
    %788 = vmatpush.bf16.xpose.msra.mxu0 %v742
    %789 = vmatpush.bf16.xpose.msra.mxu0 %v739
    %790 = vmatpush.bf16.xpose.msra.mxu0 %v736
    %791 = vmatmul.bf16.gmra.mxu0 %v733
    %v792 = vpop.f32.mrf.mxu0
    %v793 = vadd.f32 0.0, %v792
    %v794 = vpop.f32.mrf.mxu0
    %795 = vdwg.mxu0
    %796 = vmatpush.bf16.xpose.msra.mxu0 %v781
    %797 = vmatpush.bf16.xpose.msra.mxu0 %v778
    %798 = vmatpush.bf16.xpose.msra.mxu0 %v775
    %799 = vmatpush.bf16.xpose.msra.mxu0 %v772
    %800 = vmatpush.bf16.xpose.msra.mxu0 %v769
    %801 = vmatpush.bf16.xpose.msra.mxu0 %v766
    %802 = vmatpush.bf16.xpose.msra.mxu0 %v763
    %803 = vmatpush.bf16.xpose.msra.mxu0 %v760
    %804 = vmatmul.bf16.gmra.mxu0 %v733
    %v805 = vpop.f32.mrf.mxu0
    %v806 = vadd.f32 0.0, %v805
    %v807 = vpop.f32.mrf.mxu0
    %808 = vdwg.mxu0
    %v809 = vsel %vm731, 1, 0
    %v810 = vperm.slane %v809, 0
    %v811 = vperm.slane %v809, 1
    %vm812 = vcmp.eq.s32.totalorder %v810, 1
    %vm813 = vcmp.eq.s32.totalorder %v811, 1
    %v814 = vsel %vm812, %v793, -inf
    %v815 = vsel %vm813, %v806, -inf
    %s816 = scalar_lea.vmem %s57, 16
    %817 = vst [vmem:[%s816] sm:$0xff] %v814
    %818 = vst [vmem:[%s816 + $0x8] sm:$0xff] %v815
    %v820 = vsel %vm162, %v172, 0
    %822 = vmatpush.bf16.xpose.msra.mxu0 %v757
    %823 = vmatpush.bf16.xpose.msra.mxu0 %v754
    %824 = vmatpush.bf16.xpose.msra.mxu0 %v751
    %825 = vmatpush.bf16.xpose.msra.mxu0 %v748
    %826 = vmatpush.bf16.xpose.msra.mxu0 %v745
    %827 = vmatpush.bf16.xpose.msra.mxu0 %v742
    %828 = vmatpush.bf16.xpose.msra.mxu0 %v739
    %829 = vmatpush.bf16.xpose.msra.mxu0 %v736
    %830 = vmatmul.bf16.gmra.mxu0 %v820
    %v831 = vpop.f32.mrf.mxu0
    %v832 = vadd.f32 0.0, %v831
    %v833 = vpop.f32.mrf.mxu0
    %834 = vdwg.mxu0
    %835 = vmatpush.bf16.xpose.msra.mxu0 %v781
    %836 = vmatpush.bf16.xpose.msra.mxu0 %v778
    %837 = vmatpush.bf16.xpose.msra.mxu0 %v775
    %838 = vmatpush.bf16.xpose.msra.mxu0 %v772
    %839 = vmatpush.bf16.xpose.msra.mxu0 %v769
    %840 = vmatpush.bf16.xpose.msra.mxu0 %v766
    %841 = vmatpush.bf16.xpose.msra.mxu0 %v763
    %842 = vmatpush.bf16.xpose.msra.mxu0 %v760
    %843 = vmatmul.bf16.gmra.mxu0 %v820
    %v844 = vpop.f32.mrf.mxu0
    %v845 = vadd.f32 0.0, %v844
    %v846 = vpop.f32.mrf.mxu0
    %847 = vdwg.mxu0
    %v848 = vsel %vm812, %v832, -inf
    %v849 = vsel %vm813, %v845, -inf
    %s850 = scalar_lea.vmem %s57, 48
    %851 = vst [vmem:[%s850] sm:$0xff] %v848
    %852 = vst [vmem:[%s850 + $0x8] sm:$0xff] %v849
    %v853 = vld [vmem:[%s25] sm:$0xff]
    %v854 = vld [vmem:[%s25 + $0x8] sm:$0xff]
    %v855 = vld [vmem:[%s25 + $0x10] sm:$0xff]
    %v856 = vld [vmem:[%s25 + $0x18] sm:$0xff]
    %v857 = vpack.c.bf16 %v854, %v853
    %v858 = vpack.c.bf16 %v856, %v855
    %v859 = vld [vmem:[%s35] sm:$0xff]
    %v860 = vld [vmem:[%s35 + $0x8] sm:$0xff]
    %v861 = vld [vmem:[%s35 + $0x10] sm:$0xff]
    %v862 = vld [vmem:[%s35 + $0x18] sm:$0xff]
    %v863 = vld [vmem:[%s35 + $0x20] sm:$0xff]
    %v864 = vld [vmem:[%s35 + $0x28] sm:$0xff]
    %v865 = vld [vmem:[%s35 + $0x30] sm:$0xff]
    %v866 = vld [vmem:[%s35 + $0x38] sm:$0xff]
    %v867 = vpack.c.bf16 %v861, %v859
    %v868 = vpack.c.bf16 %v862, %v860
    %v869 = vpack.c.bf16 %v865, %v863
    %v870 = vpack.c.bf16 %v866, %v864
    %v871 = vld [vmem:[%s37] sm:$0xff]
    %v872 = vld [vmem:[%s37 + $0x8] sm:$0xff]
    %v873 = vld [vmem:[%s37 + $0x10] sm:$0xff]
    %v874 = vld [vmem:[%s37 + $0x18] sm:$0xff]
    %v875 = vld [vmem:[%s37 + $0x20] sm:$0xff]
    %v876 = vld [vmem:[%s37 + $0x28] sm:$0xff]
    %v877 = vld [vmem:[%s37 + $0x30] sm:$0xff]
    %v878 = vld [vmem:[%s37 + $0x38] sm:$0xff]
    %v879 = vld [vmem:[%s37 + $0x40] sm:$0xff]
    %v880 = vld [vmem:[%s37 + $0x48] sm:$0xff]
    %v881 = vld [vmem:[%s37 + $0x50] sm:$0xff]
    %v882 = vld [vmem:[%s37 + $0x58] sm:$0xff]
    %v883 = vld [vmem:[%s37 + $0x60] sm:$0xff]
    %v884 = vld [vmem:[%s37 + $0x68] sm:$0xff]
    %v885 = vld [vmem:[%s37 + $0x70] sm:$0xff]
    %v886 = vld [vmem:[%s37 + $0x78] sm:$0xff]
    %v887 = vpack.c.bf16 %v875, %v871
    %v888 = vpack.c.bf16 %v876, %v872
    %v889 = vpack.c.bf16 %v877, %v873
    %v890 = vpack.c.bf16 %v878, %v874
    %v891 = vpack.c.bf16 %v883, %v879
    %v892 = vpack.c.bf16 %v884, %v880
    %v893 = vpack.c.bf16 %v885, %v881
    %v894 = vpack.c.bf16 %v886, %v882
    %v895 = vld [vmem:[%s39] sm:$0xff]
    %v896 = vld [vmem:[%s39 + $0x8] sm:$0xff]
    %v897 = vld [vmem:[%s39 + $0x10] sm:$0xff]
    %v898 = vld [vmem:[%s39 + $0x18] sm:$0xff]
    %v899 = vld [vmem:[%s39 + $0x20] sm:$0xff]
    %v900 = vld [vmem:[%s39 + $0x28] sm:$0xff]
    %v901 = vld [vmem:[%s39 + $0x30] sm:$0xff]
    %v902 = vld [vmem:[%s39 + $0x38] sm:$0xff]
    %v903 = vld [vmem:[%s39 + $0x40] sm:$0xff]
    %v904 = vld [vmem:[%s39 + $0x48] sm:$0xff]
    %v905 = vld [vmem:[%s39 + $0x50] sm:$0xff]
    %v906 = vld [vmem:[%s39 + $0x58] sm:$0xff]
    %v907 = vld [vmem:[%s39 + $0x60] sm:$0xff]
    %v908 = vld [vmem:[%s39 + $0x68] sm:$0xff]
    %v909 = vld [vmem:[%s39 + $0x70] sm:$0xff]
    %v910 = vld [vmem:[%s39 + $0x78] sm:$0xff]
    %v911 = vld [vmem:[%s39 + $0x80] sm:$0xff]
    %v912 = vld [vmem:[%s39 + $0x88] sm:$0xff]
    %v913 = vld [vmem:[%s39 + $0x90] sm:$0xff]
    %v914 = vld [vmem:[%s39 + $0x98] sm:$0xff]
    %v915 = vld [vmem:[%s39 + $0xa0] sm:$0xff]
    %v916 = vld [vmem:[%s39 + $0xa8] sm:$0xff]
    %v917 = vld [vmem:[%s39 + $0xb0] sm:$0xff]
    %v918 = vld [vmem:[%s39 + $0xb8] sm:$0xff]
    %v919 = vld [vmem:[%s39 + $0xc0] sm:$0xff]
    %v920 = vld [vmem:[%s39 + $0xc8] sm:$0xff]
    %v921 = vld [vmem:[%s39 + $0xd0] sm:$0xff]
    %v922 = vld [vmem:[%s39 + $0xd8] sm:$0xff]
    %v923 = vld [vmem:[%s39 + $0xe0] sm:$0xff]
    %v924 = vld [vmem:[%s39 + $0xe8] sm:$0xff]
    %v925 = vld [vmem:[%s39 + $0xf0] sm:$0xff]
    %v926 = vld [vmem:[%s39 + $0xf8] sm:$0xff]
    %v927 = vpack.c.bf16 %v903, %v895
    %v928 = vpack.c.bf16 %v904, %v896
    %v929 = vpack.c.bf16 %v905, %v897
    %v930 = vpack.c.bf16 %v906, %v898
    %v931 = vpack.c.bf16 %v907, %v899
    %v932 = vpack.c.bf16 %v908, %v900
    %v933 = vpack.c.bf16 %v909, %v901
    %v934 = vpack.c.bf16 %v910, %v902
    %v935 = vpack.c.bf16 %v919, %v911
    %v936 = vpack.c.bf16 %v920, %v912
    %v937 = vpack.c.bf16 %v921, %v913
    %v938 = vpack.c.bf16 %v922, %v914
    %v939 = vpack.c.bf16 %v923, %v915
    %v940 = vpack.c.bf16 %v924, %v916
    %v941 = vpack.c.bf16 %v925, %v917
    %v942 = vpack.c.bf16 %v926, %v918
    %v943 = vld [vmem:[%s31] sm:$0xff]
    %v944 = vld [vmem:[%s31 + $0x8] sm:$0xff]
    %v945 = vld [vmem:[%s31 + $0x10] sm:$0xff]
    %v946 = vld [vmem:[%s31 + $0x18] sm:$0xff]
    %v947 = vld [vmem:[%s33] sm:$0xff]
    %v948 = vld [vmem:[%s33 + $0x8] sm:$0xff]
    %v949 = vld [vmem:[%s33 + $0x10] sm:$0xff]
    %v950 = vld [vmem:[%s33 + $0x18] sm:$0xff]
    %v951 = vld [vmem:[%s9] sm:$0xff]
    %v952 = vld [vmem:[%s9 + $0x8] sm:$0xff]
    %v953 = vld [vmem:[%s9 + $0x10] sm:$0xff]
    %v954 = vld [vmem:[%s9 + $0x18] sm:$0xff]
    %v955 = vld [vmem:[%s9 + $0x20] sm:$0xff]
    %v956 = vld [vmem:[%s9 + $0x28] sm:$0xff]
    %v957 = vld [vmem:[%s9 + $0x30] sm:$0xff]
    %v958 = vld [vmem:[%s9 + $0x38] sm:$0xff]
    %v959 = vpack.c.bf16 %v952, %v951
    %v960 = vpack.c.bf16 %v954, %v953
    %v961 = vpack.c.bf16 %v956, %v955
    %v962 = vpack.c.bf16 %v958, %v957
    %v963 = vld [vmem:[%s27] sm:$0xff]
    %v964 = vld [vmem:[%s27 + $0x8] sm:$0xff]
    %v965 = vld [vmem:[%s27 + $0x10] sm:$0xff]
    %v966 = vld [vmem:[%s27 + $0x18] sm:$0xff]
    %968 = vset.pattern.permute.xlu0 0
    %969 = vperm.xlu0 %968, %v963
    %v970 = vpop.permute.xlu0 %969
    %973 = vset.pattern.permute.xlu0 0
    %974 = vperm.xlu0 %973, %v964
    %v975 = vpop.permute.xlu0 %974
    %978 = vset.pattern.permute.xlu0 0
    %979 = vperm.xlu0 %978, %v965
    %v980 = vpop.permute.xlu0 %979
    %983 = vset.pattern.permute.xlu0 0
    %984 = vperm.xlu0 %983, %v966
    %v985 = vpop.permute.xlu0 %984
    %v988 = vsel %vm144, %v857, 0
    %v991 = vsel %vm144, %v858, 0
    %993 = vmatpush.bf16.msra.mxu0 0
    %994 = vmatpush.bf16.msra.mxu0 0
    %995 = vmatpush.bf16.msra.mxu0 0
    %996 = vmatpush.bf16.msra.mxu0 0
    %997 = vmatpush.bf16.msra.mxu0 %v962
    %998 = vmatpush.bf16.msra.mxu0 %v961
    %999 = vmatpush.bf16.msra.mxu0 %v960
    %1000 = vmatpush.bf16.msra.mxu0 %v959
    %1001 = vmatmul.bf16.gmra.mxu0 %v988
    %v1002 = vpop.f32.mrf.mxu0
    %v1003 = vadd.f32 %v970, %v1002
    %v1004 = vpop.f32.mrf.mxu0
    %v1005 = vadd.f32 %v975, %v1004
    %1006 = vmatmul.bf16.gmra.mxu0 %v991
    %v1007 = vpop.f32.mrf.mxu0
    %v1008 = vadd.f32 %v980, %v1007
    %v1009 = vpop.f32.mrf.mxu0
    %v1010 = vadd.f32 %v985, %v1009
    %1011 = vdwg.mxu0
    %v1012 = vsel %vm144, %v1003, 0.0
    %1013 = vadd.xlane.f32.xlu0 %v1012
    %v1014 = vpop.xlane.xlu0 %1013
    %v1015 = vsel %vm144, %v1005, 0.0
    %1016 = vadd.xlane.f32.xlu0 %v1015
    %v1017 = vpop.xlane.xlu0 %1016
    %v1018 = vsel %vm144, %v1008, 0.0
    %1019 = vadd.xlane.f32.xlu0 %v1018
    %v1020 = vpop.xlane.xlu0 %1019
    %v1021 = vsel %vm144, %v1010, 0.0
    %1022 = vadd.xlane.f32.xlu0 %v1021
    %v1023 = vpop.xlane.xlu0 %1022
    %v1024 = vrcp.pop 64.0
    %v1025 = vmul.f32 64.0, %v1024
    %v1026 = vsub.f32 1.0, %v1025
    %v1027 = vmul.f32 %v1024, %v1026
    %v1028 = vadd.f32 %v1024, %v1027
    %vm1029 = vweird.f32 %v1024
    %v1030 = vsel %vm1029, %v1024, %v1028
    %v1031 = vmul.f32 %v1014, %v1030
    %v1032 = vmul.f32 %v1017, %v1030
    %v1033 = vmul.f32 %v1020, %v1030
    %v1034 = vmul.f32 %v1023, %v1030
    %v1035 = vsub.f32 %v1003, %v1031
    %v1036 = vsub.f32 %v1005, %v1032
    %v1037 = vsub.f32 %v1008, %v1033
    %v1038 = vsub.f32 %v1010, %v1034
    %v1039 = vmul.f32 %v1035, %v1035
    %v1040 = vmul.f32 %v1036, %v1036
    %v1041 = vmul.f32 %v1037, %v1037
    %v1042 = vmul.f32 %v1038, %v1038
    %v1043 = vsel %vm144, %v1039, 0.0
    %1044 = vadd.xlane.f32.xlu0 %v1043
    %v1045 = vpop.xlane.xlu0 %1044
    %v1046 = vsel %vm144, %v1040, 0.0
    %1047 = vadd.xlane.f32.xlu0 %v1046
    %v1048 = vpop.xlane.xlu0 %1047
    %v1049 = vsel %vm144, %v1041, 0.0
    %1050 = vadd.xlane.f32.xlu0 %v1049
    %v1051 = vpop.xlane.xlu0 %1050
    %v1052 = vsel %vm144, %v1042, 0.0
    %1053 = vadd.xlane.f32.xlu0 %v1052
    %v1054 = vpop.xlane.xlu0 %1053
    %v1055 = vmul.f32 %v1045, %v1030
    %v1056 = vmul.f32 %v1048, %v1030
    %v1057 = vmul.f32 %v1051, %v1030
    %v1058 = vmul.f32 %v1054, %v1030
    %v1059 = vadd.f32 %v1055, 1e-05
    %v1060 = vadd.f32 %v1056, 1e-05
    %v1061 = vadd.f32 %v1057, 1e-05
    %v1062 = vadd.f32 %v1058, 1e-05
    %v1063 = vrsqrt.pop %v1059
    %v1064 = vmul.f32 %v1063, %v1059
    %v1065 = vmul.f32 %v1064, %v1063
    %v1066 = vmul.f32 0.5, %v1065
    %v1067 = vsub.f32 1.5, %v1066
    %v1068 = vmul.f32 %v1063, %v1067
    %vm1069 = vweird.f32 %v1059
    %vm1070 = vweird.f32 %v1063
    %vm1071 = vmor %vm1069, %vm1070
    %v1072 = vsel %vm1071, %v1063, %v1068
    %v1073 = vrsqrt.pop %v1060
    %v1074 = vmul.f32 %v1073, %v1060
    %v1075 = vmul.f32 %v1074, %v1073
    %v1076 = vmul.f32 0.5, %v1075
    %v1077 = vsub.f32 1.5, %v1076
    %v1078 = vmul.f32 %v1073, %v1077
    %vm1079 = vweird.f32 %v1060
    %vm1080 = vweird.f32 %v1073
    %vm1081 = vmor %vm1079, %vm1080
    %v1082 = vsel %vm1081, %v1073, %v1078
    %v1083 = vrsqrt.pop %v1061
    %v1084 = vmul.f32 %v1083, %v1061
    %v1085 = vmul.f32 %v1084, %v1083
    %v1086 = vmul.f32 0.5, %v1085
    %v1087 = vsub.f32 1.5, %v1086
    %v1088 = vmul.f32 %v1083, %v1087
    %vm1089 = vweird.f32 %v1061
    %vm1090 = vweird.f32 %v1083
    %vm1091 = vmor %vm1089, %vm1090
    %v1092 = vsel %vm1091, %v1083, %v1088
    %v1093 = vrsqrt.pop %v1062
    %v1094 = vmul.f32 %v1093, %v1062
    %v1095 = vmul.f32 %v1094, %v1093
    %v1096 = vmul.f32 0.5, %v1095
    %v1097 = vsub.f32 1.5, %v1096
    %v1098 = vmul.f32 %v1093, %v1097
    %vm1099 = vweird.f32 %v1062
    %vm1100 = vweird.f32 %v1093
    %vm1101 = vmor %vm1099, %vm1100
    %v1102 = vsel %vm1101, %v1093, %v1098
    %v1103 = vmul.f32 %v1035, %v1072
    %v1104 = vmul.f32 %v1036, %v1082
    %v1105 = vmul.f32 %v1037, %v1092
    %v1106 = vmul.f32 %v1038, %v1102
    %1108 = vset.pattern.permute.xlu0 0
    %1109 = vperm.xlu0 %1108, %v943
    %v1110 = vpop.permute.xlu0 %1109
    %1113 = vset.pattern.permute.xlu0 0
    %1114 = vperm.xlu0 %1113, %v944
    %v1115 = vpop.permute.xlu0 %1114
    %1118 = vset.pattern.permute.xlu0 0
    %1119 = vperm.xlu0 %1118, %v945
    %v1120 = vpop.permute.xlu0 %1119
    %1123 = vset.pattern.permute.xlu0 0
    %1124 = vperm.xlu0 %1123, %v946
    %v1125 = vpop.permute.xlu0 %1124
    %v1127 = vmul.f32 %v1103, %v1110
    %v1128 = vmul.f32 %v1104, %v1115
    %v1129 = vmul.f32 %v1105, %v1120
    %v1130 = vmul.f32 %v1106, %v1125
    %1132 = vset.pattern.permute.xlu0 0
    %1133 = vperm.xlu0 %1132, %v947
    %v1134 = vpop.permute.xlu0 %1133
    %1137 = vset.pattern.permute.xlu0 0
    %1138 = vperm.xlu0 %1137, %v948
    %v1139 = vpop.permute.xlu0 %1138
    %1142 = vset.pattern.permute.xlu0 0
    %1143 = vperm.xlu0 %1142, %v949
    %v1144 = vpop.permute.xlu0 %1143
    %1147 = vset.pattern.permute.xlu0 0
    %1148 = vperm.xlu0 %1147, %v950
    %v1149 = vpop.permute.xlu0 %1148
    %v1151 = vadd.f32 %v1127, %v1134
    %v1152 = vadd.f32 %v1128, %v1139
    %v1153 = vadd.f32 %v1129, %v1144
    %v1154 = vadd.f32 %v1130, %v1149
    %1155 = vst.msk [vmem:[%s61] sm:$0xff] %vm144, %v1151
    %1156 = vst.msk [vmem:[%s61 + $0x8] sm:$0xff] %vm144, %v1152
    %1157 = vst.msk [vmem:[%s61 + $0x10] sm:$0xff] %vm144, %v1153
    %1158 = vst.msk [vmem:[%s61 + $0x18] sm:$0xff] %vm144, %v1154
    %v1159 = vld [vmem:[%s11] sm:$0xff]
    %v1160 = vld [vmem:[%s11 + $0x8] sm:$0xff]
    %v1161 = vld [vmem:[%s11 + $0x10] sm:$0xff]
    %v1162 = vld [vmem:[%s11 + $0x18] sm:$0xff]
    %v1163 = vld [vmem:[%s11 + $0x20] sm:$0xff]
    %v1164 = vld [vmem:[%s11 + $0x28] sm:$0xff]
    %v1165 = vld [vmem:[%s11 + $0x30] sm:$0xff]
    %v1166 = vld [vmem:[%s11 + $0x38] sm:$0xff]
    %v1167 = vld [vmem:[%s11 + $0x40] sm:$0xff]
    %v1168 = vld [vmem:[%s11 + $0x48] sm:$0xff]
    %v1169 = vld [vmem:[%s11 + $0x50] sm:$0xff]
    %v1170 = vld [vmem:[%s11 + $0x58] sm:$0xff]
    %v1171 = vld [vmem:[%s11 + $0x60] sm:$0xff]
    %v1172 = vld [vmem:[%s11 + $0x68] sm:$0xff]
    %v1173 = vld [vmem:[%s11 + $0x70] sm:$0xff]
    %v1174 = vld [vmem:[%s11 + $0x78] sm:$0xff]
    %v1175 = vld [vmem:[%s11 + $0x80] sm:$0xff]
    %v1176 = vld [vmem:[%s11 + $0x88] sm:$0xff]
    %v1177 = vld [vmem:[%s11 + $0x90] sm:$0xff]
    %v1178 = vld [vmem:[%s11 + $0x98] sm:$0xff]
    %v1179 = vld [vmem:[%s11 + $0xa0] sm:$0xff]
    %v1180 = vld [vmem:[%s11 + $0xa8] sm:$0xff]
    %v1181 = vld [vmem:[%s11 + $0xb0] sm:$0xff]
    %v1182 = vld [vmem:[%s11 + $0xb8] sm:$0xff]
    %v1183 = vld [vmem:[%s11 + $0xc0] sm:$0xff]
    %v1184 = vld [vmem:[%s11 + $0xc8] sm:$0xff]
    %v1185 = vld [vmem:[%s11 + $0xd0] sm:$0xff]
    %v1186 = vld [vmem:[%s11 + $0xd8] sm:$0xff]
    %v1187 = vld [vmem:[%s11 + $0xe0] sm:$0xff]
    %v1188 = vld [vmem:[%s11 + $0xe8] sm:$0xff]
    %v1189 = vld [vmem:[%s11 + $0xf0] sm:$0xff]
    %v1190 = vld [vmem:[%s11 + $0xf8] sm:$0xff]
    %v1191 = vpack.c.bf16 %v1160, %v1159
    %v1192 = vpack.c.bf16 %v1162, %v1161
    %v1193 = vpack.c.bf16 %v1164, %v1163
    %v1194 = vpack.c.bf16 %v1166, %v1165
    %v1195 = vpack.c.bf16 %v1168, %v1167
    %v1196 = vpack.c.bf16 %v1170, %v1169
    %v1197 = vpack.c.bf16 %v1172, %v1171
    %v1198 = vpack.c.bf16 %v1174, %v1173
    %v1199 = vpack.c.bf16 %v1176, %v1175
    %v1200 = vpack.c.bf16 %v1178, %v1177
    %v1201 = vpack.c.bf16 %v1180, %v1179
    %v1202 = vpack.c.bf16 %v1182, %v1181
    %v1203 = vpack.c.bf16 %v1184, %v1183
    %v1204 = vpack.c.bf16 %v1186, %v1185
    %v1205 = vpack.c.bf16 %v1188, %v1187
    %v1206 = vpack.c.bf16 %v1190, %v1189
    %v1207 = vld [vmem:[%s13] sm:$0xff]
    %v1208 = vld [vmem:[%s13 + $0x8] sm:$0xff]
    %v1209 = vld [vmem:[%s13 + $0x10] sm:$0xff]
    %v1210 = vld [vmem:[%s13 + $0x18] sm:$0xff]
    %v1211 = vld [vmem:[%s13 + $0x20] sm:$0xff]
    %v1212 = vld [vmem:[%s13 + $0x28] sm:$0xff]
    %v1213 = vld [vmem:[%s13 + $0x30] sm:$0xff]
    %v1214 = vld [vmem:[%s13 + $0x38] sm:$0xff]
    %v1215 = vld [vmem:[%s13 + $0x40] sm:$0xff]
    %v1216 = vld [vmem:[%s13 + $0x48] sm:$0xff]
    %v1217 = vld [vmem:[%s13 + $0x50] sm:$0xff]
    %v1218 = vld [vmem:[%s13 + $0x58] sm:$0xff]
    %v1219 = vld [vmem:[%s13 + $0x60] sm:$0xff]
    %v1220 = vld [vmem:[%s13 + $0x68] sm:$0xff]
    %v1221 = vld [vmem:[%s13 + $0x70] sm:$0xff]
    %v1222 = vld [vmem:[%s13 + $0x78] sm:$0xff]
    %v1223 = vld [vmem:[%s13 + $0x80] sm:$0xff]
    %v1224 = vld [vmem:[%s13 + $0x88] sm:$0xff]
    %v1225 = vld [vmem:[%s13 + $0x90] sm:$0xff]
    %v1226 = vld [vmem:[%s13 + $0x98] sm:$0xff]
    %v1227 = vld [vmem:[%s13 + $0xa0] sm:$0xff]
    %v1228 = vld [vmem:[%s13 + $0xa8] sm:$0xff]
    %v1229 = vld [vmem:[%s13 + $0xb0] sm:$0xff]
    %v1230 = vld [vmem:[%s13 + $0xb8] sm:$0xff]
    %v1231 = vld [vmem:[%s13 + $0xc0] sm:$0xff]
    %v1232 = vld [vmem:[%s13 + $0xc8] sm:$0xff]
    %v1233 = vld [vmem:[%s13 + $0xd0] sm:$0xff]
    %v1234 = vld [vmem:[%s13 + $0xd8] sm:$0xff]
    %v1235 = vld [vmem:[%s13 + $0xe0] sm:$0xff]
    %v1236 = vld [vmem:[%s13 + $0xe8] sm:$0xff]
    %v1237 = vld [vmem:[%s13 + $0xf0] sm:$0xff]
    %v1238 = vld [vmem:[%s13 + $0xf8] sm:$0xff]
    %v1239 = vld [vmem:[%s13 + $0x100] sm:$0xff]
    %v1240 = vld [vmem:[%s13 + $0x108] sm:$0xff]
    %v1241 = vld [vmem:[%s13 + $0x110] sm:$0xff]
    %v1242 = vld [vmem:[%s13 + $0x118] sm:$0xff]
    %v1243 = vld [vmem:[%s13 + $0x120] sm:$0xff]
    %v1244 = vld [vmem:[%s13 + $0x128] sm:$0xff]
    %v1245 = vld [vmem:[%s13 + $0x130] sm:$0xff]
    %v1246 = vld [vmem:[%s13 + $0x138] sm:$0xff]
    %v1247 = vld [vmem:[%s13 + $0x140] sm:$0xff]
    %v1248 = vld [vmem:[%s13 + $0x148] sm:$0xff]
    %v1249 = vld [vmem:[%s13 + $0x150] sm:$0xff]
    %v1250 = vld [vmem:[%s13 + $0x158] sm:$0xff]
    %v1251 = vld [vmem:[%s13 + $0x160] sm:$0xff]
    %v1252 = vld [vmem:[%s13 + $0x168] sm:$0xff]
    %v1253 = vld [vmem:[%s13 + $0x170] sm:$0xff]
    %v1254 = vld [vmem:[%s13 + $0x178] sm:$0xff]
    %v1255 = vld [vmem:[%s13 + $0x180] sm:$0xff]
    %v1256 = vld [vmem:[%s13 + $0x188] sm:$0xff]
    %v1257 = vld [vmem:[%s13 + $0x190] sm:$0xff]
    %v1258 = vld [vmem:[%s13 + $0x198] sm:$0xff]
    %v1259 = vld [vmem:[%s13 + $0x1a0] sm:$0xff]
    %v1260 = vld [vmem:[%s13 + $0x1a8] sm:$0xff]
    %v1261 = vld [vmem:[%s13 + $0x1b0] sm:$0xff]
    %v1262 = vld [vmem:[%s13 + $0x1b8] sm:$0xff]
    %v1263 = vld [vmem:[%s13 + $0x1c0] sm:$0xff]
    %v1264 = vld [vmem:[%s13 + $0x1c8] sm:$0xff]
    %v1265 = vld [vmem:[%s13 + $0x1d0] sm:$0xff]
    %v1266 = vld [vmem:[%s13 + $0x1d8] sm:$0xff]
    %v1267 = vld [vmem:[%s13 + $0x1e0] sm:$0xff]
    %v1268 = vld [vmem:[%s13 + $0x1e8] sm:$0xff]
    %v1269 = vld [vmem:[%s13 + $0x1f0] sm:$0xff]
    %v1270 = vld [vmem:[%s13 + $0x1f8] sm:$0xff]
    %v1271 = vpack.c.bf16 %v1208, %v1207
    %v1272 = vpack.c.bf16 %v1210, %v1209
    %v1273 = vpack.c.bf16 %v1212, %v1211
    %v1274 = vpack.c.bf16 %v1214, %v1213
    %v1275 = vpack.c.bf16 %v1216, %v1215
    %v1276 = vpack.c.bf16 %v1218, %v1217
    %v1277 = vpack.c.bf16 %v1220, %v1219
    %v1278 = vpack.c.bf16 %v1222, %v1221
    %v1279 = vpack.c.bf16 %v1224, %v1223
    %v1280 = vpack.c.bf16 %v1226, %v1225
    %v1281 = vpack.c.bf16 %v1228, %v1227
    %v1282 = vpack.c.bf16 %v1230, %v1229
    %v1283 = vpack.c.bf16 %v1232, %v1231
    %v1284 = vpack.c.bf16 %v1234, %v1233
    %v1285 = vpack.c.bf16 %v1236, %v1235
    %v1286 = vpack.c.bf16 %v1238, %v1237
    %v1287 = vpack.c.bf16 %v1240, %v1239
    %v1288 = vpack.c.bf16 %v1242, %v1241
    %v1289 = vpack.c.bf16 %v1244, %v1243
    %v1290 = vpack.c.bf16 %v1246, %v1245
    %v1291 = vpack.c.bf16 %v1248, %v1247
    %v1292 = vpack.c.bf16 %v1250, %v1249
    %v1293 = vpack.c.bf16 %v1252, %v1251
    %v1294 = vpack.c.bf16 %v1254, %v1253
    %v1295 = vpack.c.bf16 %v1256, %v1255
    %v1296 = vpack.c.bf16 %v1258, %v1257
    %v1297 = vpack.c.bf16 %v1260, %v1259
    %v1298 = vpack.c.bf16 %v1262, %v1261
    %v1299 = vpack.c.bf16 %v1264, %v1263
    %v1300 = vpack.c.bf16 %v1266, %v1265
    %v1301 = vpack.c.bf16 %v1268, %v1267
    %v1302 = vpack.c.bf16 %v1270, %v1269
    %1303 = vmatpush.bf16.msra.mxu0 %v1278
    %1304 = vmatpush.bf16.msra.mxu0 %v1277
    %1305 = vmatpush.bf16.msra.mxu0 %v1276
    %1306 = vmatpush.bf16.msra.mxu0 %v1275
    %1307 = vmatpush.bf16.msra.mxu0 %v1274
    %1308 = vmatpush.bf16.msra.mxu0 %v1273
    %1309 = vmatpush.bf16.msra.mxu0 %v1272
    %1310 = vmatpush.bf16.msra.mxu0 %v1271
    %1311 = vmatmul.bf16.gmra.mxu0 %v887
    %v1312 = vpop.f32.mrf.mxu0
    %v1313 = vadd.f32 0.0, %v1312
    %v1314 = vpop.f32.mrf.mxu0
    %v1315 = vadd.f32 0.0, %v1314
    %1316 = vmatmul.bf16.gmra.mxu0 %v891
    %v1317 = vpop.f32.mrf.mxu0
    %v1318 = vadd.f32 0.0, %v1317
    %v1319 = vpop.f32.mrf.mxu0
    %v1320 = vadd.f32 0.0, %v1319
    %1321 = vdwg.mxu0
    %1322 = vmatpush.bf16.msra.mxu0 %v1286
    %1323 = vmatpush.bf16.msra.mxu0 %v1285
    %1324 = vmatpush.bf16.msra.mxu0 %v1284
    %1325 = vmatpush.bf16.msra.mxu0 %v1283
    %1326 = vmatpush.bf16.msra.mxu0 %v1282
    %1327 = vmatpush.bf16.msra.mxu0 %v1281
    %1328 = vmatpush.bf16.msra.mxu0 %v1280
    %1329 = vmatpush.bf16.msra.mxu0 %v1279
    %1330 = vmatmul.bf16.gmra.mxu0 %v888
    %v1331 = vpop.f32.mrf.mxu0
    %v1332 = vadd.f32 %v1313, %v1331
    %v1333 = vpop.f32.mrf.mxu0
    %v1334 = vadd.f32 %v1315, %v1333
    %1335 = vmatmul.bf16.gmra.mxu0 %v892
    %v1336 = vpop.f32.mrf.mxu0
    %v1337 = vadd.f32 %v1318, %v1336
    %v1338 = vpop.f32.mrf.mxu0
    %v1339 = vadd.f32 %v1320, %v1338
    %1340 = vdwg.mxu0
    %1341 = vmatpush.bf16.msra.mxu0 %v1294
    %1342 = vmatpush.bf16.msra.mxu0 %v1293
    %1343 = vmatpush.bf16.msra.mxu0 %v1292
    %1344 = vmatpush.bf16.msra.mxu0 %v1291
    %1345 = vmatpush.bf16.msra.mxu0 %v1290
    %1346 = vmatpush.bf16.msra.mxu0 %v1289
    %1347 = vmatpush.bf16.msra.mxu0 %v1288
    %1348 = vmatpush.bf16.msra.mxu0 %v1287
    %1349 = vmatmul.bf16.gmra.mxu0 %v889
    %v1350 = vpop.f32.mrf.mxu0
    %v1351 = vadd.f32 %v1332, %v1350
    %v1352 = vpop.f32.mrf.mxu0
    %v1353 = vadd.f32 %v1334, %v1352
    %1354 = vmatmul.bf16.gmra.mxu0 %v893
    %v1355 = vpop.f32.mrf.mxu0
    %v1356 = vadd.f32 %v1337, %v1355
    %v1357 = vpop.f32.mrf.mxu0
    %v1358 = vadd.f32 %v1339, %v1357
    %1359 = vdwg.mxu0
    %1360 = vmatpush.bf16.msra.mxu0 %v1302
    %1361 = vmatpush.bf16.msra.mxu0 %v1301
    %1362 = vmatpush.bf16.msra.mxu0 %v1300
    %1363 = vmatpush.bf16.msra.mxu0 %v1299
    %1364 = vmatpush.bf16.msra.mxu0 %v1298
    %1365 = vmatpush.bf16.msra.mxu0 %v1297
    %1366 = vmatpush.bf16.msra.mxu0 %v1296
    %1367 = vmatpush.bf16.msra.mxu0 %v1295
    %1368 = vmatmul.bf16.gmra.mxu0 %v890
    %v1369 = vpop.f32.mrf.mxu0
    %v1370 = vadd.f32 %v1351, %v1369
    %v1371 = vpop.f32.mrf.mxu0
    %v1372 = vadd.f32 %v1353, %v1371
    %1373 = vmatmul.bf16.gmra.mxu0 %v894
    %v1374 = vpop.f32.mrf.mxu0
    %v1375 = vadd.f32 %v1356, %v1374
    %v1376 = vpop.f32.mrf.mxu0
    %v1377 = vadd.f32 %v1358, %v1376
    %1378 = vdwg.mxu0
    %v1379 = vld [vmem:[%s15] sm:$0xff]
    %v1380 = vld [vmem:[%s15 + $0x8] sm:$0xff]
    %v1381 = vld [vmem:[%s15 + $0x10] sm:$0xff]
    %v1382 = vld [vmem:[%s15 + $0x18] sm:$0xff]
    %v1383 = vld [vmem:[%s15 + $0x20] sm:$0xff]
    %v1384 = vld [vmem:[%s15 + $0x28] sm:$0xff]
    %v1385 = vld [vmem:[%s15 + $0x30] sm:$0xff]
    %v1386 = vld [vmem:[%s15 + $0x38] sm:$0xff]
    %v1387 = vld [vmem:[%s15 + $0x40] sm:$0xff]
    %v1388 = vld [vmem:[%s15 + $0x48] sm:$0xff]
    %v1389 = vld [vmem:[%s15 + $0x50] sm:$0xff]
    %v1390 = vld [vmem:[%s15 + $0x58] sm:$0xff]
    %v1391 = vld [vmem:[%s15 + $0x60] sm:$0xff]
    %v1392 = vld [vmem:[%s15 + $0x68] sm:$0xff]
    %v1393 = vld [vmem:[%s15 + $0x70] sm:$0xff]
    %v1394 = vld [vmem:[%s15 + $0x78] sm:$0xff]
    %v1395 = vld [vmem:[%s15 + $0x80] sm:$0xff]
    %v1396 = vld [vmem:[%s15 + $0x88] sm:$0xff]
    %v1397 = vld [vmem:[%s15 + $0x90] sm:$0xff]
    %v1398 = vld [vmem:[%s15 + $0x98] sm:$0xff]
    %v1399 = vld [vmem:[%s15 + $0xa0] sm:$0xff]
    %v1400 = vld [vmem:[%s15 + $0xa8] sm:$0xff]
    %v1401 = vld [vmem:[%s15 + $0xb0] sm:$0xff]
    %v1402 = vld [vmem:[%s15 + $0xb8] sm:$0xff]
    %v1403 = vld [vmem:[%s15 + $0xc0] sm:$0xff]
    %v1404 = vld [vmem:[%s15 + $0xc8] sm:$0xff]
    %v1405 = vld [vmem:[%s15 + $0xd0] sm:$0xff]
    %v1406 = vld [vmem:[%s15 + $0xd8] sm:$0xff]
    %v1407 = vld [vmem:[%s15 + $0xe0] sm:$0xff]
    %v1408 = vld [vmem:[%s15 + $0xe8] sm:$0xff]
    %v1409 = vld [vmem:[%s15 + $0xf0] sm:$0xff]
    %v1410 = vld [vmem:[%s15 + $0xf8] sm:$0xff]
    %v1411 = vld [vmem:[%s15 + $0x100] sm:$0xff]
    %v1412 = vld [vmem:[%s15 + $0x108] sm:$0xff]
    %v1413 = vld [vmem:[%s15 + $0x110] sm:$0xff]
    %v1414 = vld [vmem:[%s15 + $0x118] sm:$0xff]
    %v1415 = vld [vmem:[%s15 + $0x120] sm:$0xff]
    %v1416 = vld [vmem:[%s15 + $0x128] sm:$0xff]
    %v1417 = vld [vmem:[%s15 + $0x130] sm:$0xff]
    %v1418 = vld [vmem:[%s15 + $0x138] sm:$0xff]
    %v1419 = vld [vmem:[%s15 + $0x140] sm:$0xff]
    %v1420 = vld [vmem:[%s15 + $0x148] sm:$0xff]
    %v1421 = vld [vmem:[%s15 + $0x150] sm:$0xff]
    %v1422 = vld [vmem:[%s15 + $0x158] sm:$0xff]
    %v1423 = vld [vmem:[%s15 + $0x160] sm:$0xff]
    %v1424 = vld [vmem:[%s15 + $0x168] sm:$0xff]
    %v1425 = vld [vmem:[%s15 + $0x170] sm:$0xff]
    %v1426 = vld [vmem:[%s15 + $0x178] sm:$0xff]
    %v1427 = vld [vmem:[%s15 + $0x180] sm:$0xff]
    %v1428 = vld [vmem:[%s15 + $0x188] sm:$0xff]
    %v1429 = vld [vmem:[%s15 + $0x190] sm:$0xff]
    %v1430 = vld [vmem:[%s15 + $0x198] sm:$0xff]
    %v1431 = vld [vmem:[%s15 + $0x1a0] sm:$0xff]
    %v1432 = vld [vmem:[%s15 + $0x1a8] sm:$0xff]
    %v1433 = vld [vmem:[%s15 + $0x1b0] sm:$0xff]
    %v1434 = vld [vmem:[%s15 + $0x1b8] sm:$0xff]
    %v1435 = vld [vmem:[%s15 + $0x1c0] sm:$0xff]
    %v1436 = vld [vmem:[%s15 + $0x1c8] sm:$0xff]
    %v1437 = vld [vmem:[%s15 + $0x1d0] sm:$0xff]
    %v1438 = vld [vmem:[%s15 + $0x1d8] sm:$0xff]
    %v1439 = vld [vmem:[%s15 + $0x1e0] sm:$0xff]
    %v1440 = vld [vmem:[%s15 + $0x1e8] sm:$0xff]
    %v1441 = vld [vmem:[%s15 + $0x1f0] sm:$0xff]
    %v1442 = vld [vmem:[%s15 + $0x1f8] sm:$0xff]
    %v1443 = vld [vmem:[%s15 + $0x200] sm:$0xff]
    %v1444 = vld [vmem:[%s15 + $0x208] sm:$0xff]
    %v1445 = vld [vmem:[%s15 + $0x210] sm:$0xff]
    %v1446 = vld [vmem:[%s15 + $0x218] sm:$0xff]
    %v1447 = vld [vmem:[%s15 + $0x220] sm:$0xff]
    %v1448 = vld [vmem:[%s15 + $0x228] sm:$0xff]
    %v1449 = vld [vmem:[%s15 + $0x230] sm:$0xff]
    %v1450 = vld [vmem:[%s15 + $0x238] sm:$0xff]
    %v1451 = vld [vmem:[%s15 + $0x240] sm:$0xff]
    %v1452 = vld [vmem:[%s15 + $0x248] sm:$0xff]
    %v1453 = vld [vmem:[%s15 + $0x250] sm:$0xff]
    %v1454 = vld [vmem:[%s15 + $0x258] sm:$0xff]
    %v1455 = vld [vmem:[%s15 + $0x260] sm:$0xff]
    %v1456 = vld [vmem:[%s15 + $0x268] sm:$0xff]
    %v1457 = vld [vmem:[%s15 + $0x270] sm:$0xff]
    %v1458 = vld [vmem:[%s15 + $0x278] sm:$0xff]
    %v1459 = vld [vmem:[%s15 + $0x280] sm:$0xff]
    %v1460 = vld [vmem:[%s15 + $0x288] sm:$0xff]
    %v1461 = vld [vmem:[%s15 + $0x290] sm:$0xff]
    %v1462 = vld [vmem:[%s15 + $0x298] sm:$0xff]
    %v1463 = vld [vmem:[%s15 + $0x2a0] sm:$0xff]
    %v1464 = vld [vmem:[%s15 + $0x2a8] sm:$0xff]
    %v1465 = vld [vmem:[%s15 + $0x2b0] sm:$0xff]
    %v1466 = vld [vmem:[%s15 + $0x2b8] sm:$0xff]
    %v1467 = vld [vmem:[%s15 + $0x2c0] sm:$0xff]
    %v1468 = vld [vmem:[%s15 + $0x2c8] sm:$0xff]
    %v1469 = vld [vmem:[%s15 + $0x2d0] sm:$0xff]
    %v1470 = vld [vmem:[%s15 + $0x2d8] sm:$0xff]
    %v1471 = vld [vmem:[%s15 + $0x2e0] sm:$0xff]
    %v1472 = vld [vmem:[%s15 + $0x2e8] sm:$0xff]
    %v1473 = vld [vmem:[%s15 + $0x2f0] sm:$0xff]
    %v1474 = vld [vmem:[%s15 + $0x2f8] sm:$0xff]
    %v1475 = vld [vmem:[%s15 + $0x300] sm:$0xff]
    %v1476 = vld [vmem:[%s15 + $0x308] sm:$0xff]
    %v1477 = vld [vmem:[%s15 + $0x310] sm:$0xff]
    %v1478 = vld [vmem:[%s15 + $0x318] sm:$0xff]
    %v1479 = vld [vmem:[%s15 + $0x320] sm:$0xff]
    %v1480 = vld [vmem:[%s15 + $0x328] sm:$0xff]
    %v1481 = vld [vmem:[%s15 + $0x330] sm:$0xff]
    %v1482 = vld [vmem:[%s15 + $0x338] sm:$0xff]
    %v1483 = vld [vmem:[%s15 + $0x340] sm:$0xff]
    %v1484 = vld [vmem:[%s15 + $0x348] sm:$0xff]
    %v1485 = vld [vmem:[%s15 + $0x350] sm:$0xff]
    %v1486 = vld [vmem:[%s15 + $0x358] sm:$0xff]
    %v1487 = vld [vmem:[%s15 + $0x360] sm:$0xff]
    %v1488 = vld [vmem:[%s15 + $0x368] sm:$0xff]
    %v1489 = vld [vmem:[%s15 + $0x370] sm:$0xff]
    %v1490 = vld [vmem:[%s15 + $0x378] sm:$0xff]
    %v1491 = vld [vmem:[%s15 + $0x380] sm:$0xff]
    %v1492 = vld [vmem:[%s15 + $0x388] sm:$0xff]
    %v1493 = vld [vmem:[%s15 + $0x390] sm:$0xff]
    %v1494 = vld [vmem:[%s15 + $0x398] sm:$0xff]
    %v1495 = vld [vmem:[%s15 + $0x3a0] sm:$0xff]
    %v1496 = vld [vmem:[%s15 + $0x3a8] sm:$0xff]
    %v1497 = vld [vmem:[%s15 + $0x3b0] sm:$0xff]
    %v1498 = vld [vmem:[%s15 + $0x3b8] sm:$0xff]
    %v1499 = vld [vmem:[%s15 + $0x3c0] sm:$0xff]
    %v1500 = vld [vmem:[%s15 + $0x3c8] sm:$0xff]
    %v1501 = vld [vmem:[%s15 + $0x3d0] sm:$0xff]
    %v1502 = vld [vmem:[%s15 + $0x3d8] sm:$0xff]
    %v1503 = vld [vmem:[%s15 + $0x3e0] sm:$0xff]
    %v1504 = vld [vmem:[%s15 + $0x3e8] sm:$0xff]
    %v1505 = vld [vmem:[%s15 + $0x3f0] sm:$0xff]
    %v1506 = vld [vmem:[%s15 + $0x3f8] sm:$0xff]
    %v1507 = vpack.c.bf16 %v1380, %v1379
    %v1508 = vpack.c.bf16 %v1382, %v1381
    %v1509 = vpack.c.bf16 %v1384, %v1383
    %v1510 = vpack.c.bf16 %v1386, %v1385
    %v1511 = vpack.c.bf16 %v1388, %v1387
    %v1512 = vpack.c.bf16 %v1390, %v1389
    %v1513 = vpack.c.bf16 %v1392, %v1391
    %v1514 = vpack.c.bf16 %v1394, %v1393
    %v1515 = vpack.c.bf16 %v1396, %v1395
    %v1516 = vpack.c.bf16 %v1398, %v1397
    %v1517 = vpack.c.bf16 %v1400, %v1399
    %v1518 = vpack.c.bf16 %v1402, %v1401
    %v1519 = vpack.c.bf16 %v1404, %v1403
    %v1520 = vpack.c.bf16 %v1406, %v1405
    %v1521 = vpack.c.bf16 %v1408, %v1407
    %v1522 = vpack.c.bf16 %v1410, %v1409
    %v1523 = vpack.c.bf16 %v1412, %v1411
    %v1524 = vpack.c.bf16 %v1414, %v1413
    %v1525 = vpack.c.bf16 %v1416, %v1415
    %v1526 = vpack.c.bf16 %v1418, %v1417
    %v1527 = vpack.c.bf16 %v1420, %v1419
    %v1528 = vpack.c.bf16 %v1422, %v1421
    %v1529 = vpack.c.bf16 %v1424, %v1423
    %v1530 = vpack.c.bf16 %v1426, %v1425
    %v1531 = vpack.c.bf16 %v1428, %v1427
    %v1532 = vpack.c.bf16 %v1430, %v1429
    %v1533 = vpack.c.bf16 %v1432, %v1431
    %v1534 = vpack.c.bf16 %v1434, %v1433
    %v1535 = vpack.c.bf16 %v1436, %v1435
    %v1536 = vpack.c.bf16 %v1438, %v1437
    %v1537 = vpack.c.bf16 %v1440, %v1439
    %v1538 = vpack.c.bf16 %v1442, %v1441
    %v1539 = vpack.c.bf16 %v1444, %v1443
    %v1540 = vpack.c.bf16 %v1446, %v1445
    %v1541 = vpack.c.bf16 %v1448, %v1447
    %v1542 = vpack.c.bf16 %v1450, %v1449
    %v1543 = vpack.c.bf16 %v1452, %v1451
    %v1544 = vpack.c.bf16 %v1454, %v1453
    %v1545 = vpack.c.bf16 %v1456, %v1455
    %v1546 = vpack.c.bf16 %v1458, %v1457
    %v1547 = vpack.c.bf16 %v1460, %v1459
    %v1548 = vpack.c.bf16 %v1462, %v1461
    %v1549 = vpack.c.bf16 %v1464, %v1463
    %v1550 = vpack.c.bf16 %v1466, %v1465
    %v1551 = vpack.c.bf16 %v1468, %v1467
    %v1552 = vpack.c.bf16 %v1470, %v1469
    %v1553 = vpack.c.bf16 %v1472, %v1471
    %v1554 = vpack.c.bf16 %v1474, %v1473
    %v1555 = vpack.c.bf16 %v1476, %v1475
    %v1556 = vpack.c.bf16 %v1478, %v1477
    %v1557 = vpack.c.bf16 %v1480, %v1479
    %v1558 = vpack.c.bf16 %v1482, %v1481
    %v1559 = vpack.c.bf16 %v1484, %v1483
    %v1560 = vpack.c.bf16 %v1486, %v1485
    %v1561 = vpack.c.bf16 %v1488, %v1487
    %v1562 = vpack.c.bf16 %v1490, %v1489
    %v1563 = vpack.c.bf16 %v1492, %v1491
    %v1564 = vpack.c.bf16 %v1494, %v1493
    %v1565 = vpack.c.bf16 %v1496, %v1495
    %v1566 = vpack.c.bf16 %v1498, %v1497
    %v1567 = vpack.c.bf16 %v1500, %v1499
    %v1568 = vpack.c.bf16 %v1502, %v1501
    %v1569 = vpack.c.bf16 %v1504, %v1503
    %v1570 = vpack.c.bf16 %v1506, %v1505
    %1571 = vmatpush.bf16.msra.mxu0 %v1514
    %1572 = vmatpush.bf16.msra.mxu0 %v1513
    %1573 = vmatpush.bf16.msra.mxu0 %v1512
    %1574 = vmatpush.bf16.msra.mxu0 %v1511
    %1575 = vmatpush.bf16.msra.mxu0 %v1510
    %1576 = vmatpush.bf16.msra.mxu0 %v1509
    %1577 = vmatpush.bf16.msra.mxu0 %v1508
    %1578 = vmatpush.bf16.msra.mxu0 %v1507
    %1579 = vmatmul.bf16.gmra.mxu0 %v927
    %v1580 = vpop.f32.mrf.mxu0
    %v1581 = vadd.f32 0.0, %v1580
    %v1582 = vpop.f32.mrf.mxu0
    %v1583 = vadd.f32 0.0, %v1582
    %1584 = vmatmul.bf16.gmra.mxu0 %v935
    %v1585 = vpop.f32.mrf.mxu0
    %v1586 = vadd.f32 0.0, %v1585
    %v1587 = vpop.f32.mrf.mxu0
    %v1588 = vadd.f32 0.0, %v1587
    %1589 = vdwg.mxu0
    %1590 = vmatpush.bf16.msra.mxu0 %v1522
    %1591 = vmatpush.bf16.msra.mxu0 %v1521
    %1592 = vmatpush.bf16.msra.mxu0 %v1520
    %1593 = vmatpush.bf16.msra.mxu0 %v1519
    %1594 = vmatpush.bf16.msra.mxu0 %v1518
    %1595 = vmatpush.bf16.msra.mxu0 %v1517
    %1596 = vmatpush.bf16.msra.mxu0 %v1516
    %1597 = vmatpush.bf16.msra.mxu0 %v1515
    %1598 = vmatmul.bf16.gmra.mxu0 %v928
    %v1599 = vpop.f32.mrf.mxu0
    %v1600 = vadd.f32 %v1581, %v1599
    %v1601 = vpop.f32.mrf.mxu0
    %v1602 = vadd.f32 %v1583, %v1601
    %1603 = vmatmul.bf16.gmra.mxu0 %v936
    %v1604 = vpop.f32.mrf.mxu0
    %v1605 = vadd.f32 %v1586, %v1604
    %v1606 = vpop.f32.mrf.mxu0
    %v1607 = vadd.f32 %v1588, %v1606
    %1608 = vdwg.mxu0
    %1609 = vmatpush.bf16.msra.mxu0 %v1530
    %1610 = vmatpush.bf16.msra.mxu0 %v1529
    %1611 = vmatpush.bf16.msra.mxu0 %v1528
    %1612 = vmatpush.bf16.msra.mxu0 %v1527
    %1613 = vmatpush.bf16.msra.mxu0 %v1526
    %1614 = vmatpush.bf16.msra.mxu0 %v1525
    %1615 = vmatpush.bf16.msra.mxu0 %v1524
    %1616 = vmatpush.bf16.msra.mxu0 %v1523
    %1617 = vmatmul.bf16.gmra.mxu0 %v929
    %v1618 = vpop.f32.mrf.mxu0
    %v1619 = vadd.f32 %v1600, %v1618
    %v1620 = vpop.f32.mrf.mxu0
    %v1621 = vadd.f32 %v1602, %v1620
    %1622 = vmatmul.bf16.gmra.mxu0 %v937
    %v1623 = vpop.f32.mrf.mxu0
    %v1624 = vadd.f32 %v1605, %v1623
    %v1625 = vpop.f32.mrf.mxu0
    %v1626 = vadd.f32 %v1607, %v1625
    %1627 = vdwg.mxu0
    %1628 = vmatpush.bf16.msra.mxu0 %v1538
    %1629 = vmatpush.bf16.msra.mxu0 %v1537
    %1630 = vmatpush.bf16.msra.mxu0 %v1536
    %1631 = vmatpush.bf16.msra.mxu0 %v1535
    %1632 = vmatpush.bf16.msra.mxu0 %v1534
    %1633 = vmatpush.bf16.msra.mxu0 %v1533
    %1634 = vmatpush.bf16.msra.mxu0 %v1532
    %1635 = vmatpush.bf16.msra.mxu0 %v1531
    %1636 = vmatmul.bf16.gmra.mxu0 %v930
    %v1637 = vpop.f32.mrf.mxu0
    %v1638 = vadd.f32 %v1619, %v1637
    %v1639 = vpop.f32.mrf.mxu0
    %v1640 = vadd.f32 %v1621, %v1639
    %1641 = vmatmul.bf16.gmra.mxu0 %v938
    %v1642 = vpop.f32.mrf.mxu0
    %v1643 = vadd.f32 %v1624, %v1642
    %v1644 = vpop.f32.mrf.mxu0
    %v1645 = vadd.f32 %v1626, %v1644
    %1646 = vdwg.mxu0
    %1647 = vmatpush.bf16.msra.mxu0 %v1546
    %1648 = vmatpush.bf16.msra.mxu0 %v1545
    %1649 = vmatpush.bf16.msra.mxu0 %v1544
    %1650 = vmatpush.bf16.msra.mxu0 %v1543
    %1651 = vmatpush.bf16.msra.mxu0 %v1542
    %1652 = vmatpush.bf16.msra.mxu0 %v1541
    %1653 = vmatpush.bf16.msra.mxu0 %v1540
    %1654 = vmatpush.bf16.msra.mxu0 %v1539
    %1655 = vmatmul.bf16.gmra.mxu0 %v931
    %v1656 = vpop.f32.mrf.mxu0
    %v1657 = vadd.f32 %v1638, %v1656
    %v1658 = vpop.f32.mrf.mxu0
    %v1659 = vadd.f32 %v1640, %v1658
    %1660 = vmatmul.bf16.gmra.mxu0 %v939
    %v1661 = vpop.f32.mrf.mxu0
    %v1662 = vadd.f32 %v1643, %v1661
    %v1663 = vpop.f32.mrf.mxu0
    %v1664 = vadd.f32 %v1645, %v1663
    %1665 = vdwg.mxu0
    %1666 = vmatpush.bf16.msra.mxu0 %v1554
    %1667 = vmatpush.bf16.msra.mxu0 %v1553
    %1668 = vmatpush.bf16.msra.mxu0 %v1552
    %1669 = vmatpush.bf16.msra.mxu0 %v1551
    %1670 = vmatpush.bf16.msra.mxu0 %v1550
    %1671 = vmatpush.bf16.msra.mxu0 %v1549
    %1672 = vmatpush.bf16.msra.mxu0 %v1548
    %1673 = vmatpush.bf16.msra.mxu0 %v1547
    %1674 = vmatmul.bf16.gmra.mxu0 %v932
    %v1675 = vpop.f32.mrf.mxu0
    %v1676 = vadd.f32 %v1657, %v1675
    %v1677 = vpop.f32.mrf.mxu0
    %v1678 = vadd.f32 %v1659, %v1677
    %1679 = vmatmul.bf16.gmra.mxu0 %v940
    %v1680 = vpop.f32.mrf.mxu0
    %v1681 = vadd.f32 %v1662, %v1680
    %v1682 = vpop.f32.mrf.mxu0
    %v1683 = vadd.f32 %v1664, %v1682
    %1684 = vdwg.mxu0
    %1685 = vmatpush.bf16.msra.mxu0 %v1562
    %1686 = vmatpush.bf16.msra.mxu0 %v1561
    %1687 = vmatpush.bf16.msra.mxu0 %v1560
    %1688 = vmatpush.bf16.msra.mxu0 %v1559
    %1689 = vmatpush.bf16.msra.mxu0 %v1558
    %1690 = vmatpush.bf16.msra.mxu0 %v1557
    %1691 = vmatpush.bf16.msra.mxu0 %v1556
    %1692 = vmatpush.bf16.msra.mxu0 %v1555
    %1693 = vmatmul.bf16.gmra.mxu0 %v933
    %v1694 = vpop.f32.mrf.mxu0
    %v1695 = vadd.f32 %v1676, %v1694
    %v1696 = vpop.f32.mrf.mxu0
    %v1697 = vadd.f32 %v1678, %v1696
    %1698 = vmatmul.bf16.gmra.mxu0 %v941
    %v1699 = vpop.f32.mrf.mxu0
    %v1700 = vadd.f32 %v1681, %v1699
    %v1701 = vpop.f32.mrf.mxu0
    %v1702 = vadd.f32 %v1683, %v1701
    %1703 = vdwg.mxu0
    %1704 = vmatpush.bf16.msra.mxu0 %v1570
    %1705 = vmatpush.bf16.msra.mxu0 %v1569
    %1706 = vmatpush.bf16.msra.mxu0 %v1568
    %1707 = vmatpush.bf16.msra.mxu0 %v1567
    %1708 = vmatpush.bf16.msra.mxu0 %v1566
    %1709 = vmatpush.bf16.msra.mxu0 %v1565
    %1710 = vmatpush.bf16.msra.mxu0 %v1564
    %1711 = vmatpush.bf16.msra.mxu0 %v1563
    %1712 = vmatmul.bf16.gmra.mxu0 %v934
    %v1713 = vpop.f32.mrf.mxu0
    %v1714 = vadd.f32 %v1695, %v1713
    %v1715 = vpop.f32.mrf.mxu0
    %v1716 = vadd.f32 %v1697, %v1715
    %1717 = vmatmul.bf16.gmra.mxu0 %v942
    %v1718 = vpop.f32.mrf.mxu0
    %v1719 = vadd.f32 %v1700, %v1718
    %v1720 = vpop.f32.mrf.mxu0
    %v1721 = vadd.f32 %v1702, %v1720
    %1722 = vdwg.mxu0
    %v1723 = vld [vmem:[%s17] sm:$0xff]
    %v1724 = vld [vmem:[%s17 + $0x8] sm:$0xff]
    %vm1725 = vcmask 130048
    %v1727 = vsel %vm1725, %v1370, 0
    %v1730 = vsel %vm1725, %v1372, 0
    %v1733 = vsel %vm1725, %v1375, 0
    %v1736 = vsel %vm1725, %v1377, 0
    %1738 = vmatpush.msra.mxu0 0.0
    %1739 = vmatpush.msra.mxu0 0.0
    %1740 = vmatpush.msra.mxu0 0.0
    %1741 = vmatpush.msra.mxu0 0.0
    %1742 = vmatpush.msra.mxu0 0.0
    %1743 = vmatpush.msra.mxu0 0.0
    %1744 = vmatpush.msra.mxu0 0.0
    %1745 = vmatpush.msra.mxu0 0.0
    %1746 = vmatpush.msra.mxu0 0.0
    %1747 = vmatpush.msra.mxu0 0.0
    %1748 = vmatpush.msra.mxu0 0.0
    %1749 = vmatpush.msra.mxu0 0.0
    %1750 = vmatpush.msra.mxu0 0.0
    %1751 = vmatpush.msra.mxu0 0.0
    %1752 = vmatpush.msra.mxu0 %v1724
    %1753 = vmatpush.msra.mxu0 %v1723
    %1754 = vmatmul.f32.gmra.mxu0 %v1727
    %v1755 = vpop.f32.mrf.mxu0
    %v1756 = vadd.f32 0.0, %v1755
    %1757 = vmatmul.f32.gmra.mxu0 %v1730
    %v1758 = vpop.f32.mrf.mxu0
    %v1759 = vadd.f32 0.0, %v1758
    %1760 = vmatmul.f32.gmra.mxu0 %v1733
    %v1761 = vpop.f32.mrf.mxu0
    %v1762 = vadd.f32 0.0, %v1761
    %1763 = vmatmul.f32.gmra.mxu0 %v1736
    %v1764 = vpop.f32.mrf.mxu0
    %v1765 = vadd.f32 0.0, %v1764
    %1766 = vdwg.mxu0
    %v1767 = vld [vmem:[%s19] sm:$0xf]
    %v1769 = vsel %vm472, %v1714, 0
    %v1772 = vsel %vm472, %v1716, 0
    %v1775 = vsel %vm472, %v1719, 0
    %v1778 = vsel %vm472, %v1721, 0
    %vm1780 = vcmask 1043456
    %v1782 = vsel %vm1780, %v1767, 0
    %1784 = vmatpush.msra.mxu0 0.0
    %1785 = vmatpush.msra.mxu0 0.0
    %1786 = vmatpush.msra.mxu0 0.0
    %1787 = vmatpush.msra.mxu0 0.0
    %1788 = vmatpush.msra.mxu0 0.0
    %1789 = vmatpush.msra.mxu0 0.0
    %1790 = vmatpush.msra.mxu0 0.0
    %1791 = vmatpush.msra.mxu0 0.0
    %1792 = vmatpush.msra.mxu0 0.0
    %1793 = vmatpush.msra.mxu0 0.0
    %1794 = vmatpush.msra.mxu0 0.0
    %1795 = vmatpush.msra.mxu0 0.0
    %1796 = vmatpush.msra.mxu0 0.0
    %1797 = vmatpush.msra.mxu0 0.0
    %1798 = vmatpush.msra.mxu0 0.0
    %1799 = vmatpush.msra.mxu0 %v1782
    %1800 = vmatmul.f32.gmra.mxu0 %v1769
    %v1801 = vpop.f32.mrf.mxu0
    %v1802 = vadd.f32 0.0, %v1801
    %1803 = vmatmul.f32.gmra.mxu0 %v1772
    %v1804 = vpop.f32.mrf.mxu0
    %v1805 = vadd.f32 0.0, %v1804
    %1806 = vmatmul.f32.gmra.mxu0 %v1775
    %v1807 = vpop.f32.mrf.mxu0
    %v1808 = vadd.f32 0.0, %v1807
    %1809 = vmatmul.f32.gmra.mxu0 %v1778
    %v1810 = vpop.f32.mrf.mxu0
    %v1811 = vadd.f32 0.0, %v1810
    %1812 = vdwg.mxu0
    %1813 = vmatpush.bf16.msra.mxu0 %v1198
    %1814 = vmatpush.bf16.msra.mxu0 %v1197
    %1815 = vmatpush.bf16.msra.mxu0 %v1196
    %1816 = vmatpush.bf16.msra.mxu0 %v1195
    %1817 = vmatpush.bf16.msra.mxu0 %v1194
    %1818 = vmatpush.bf16.msra.mxu0 %v1193
    %1819 = vmatpush.bf16.msra.mxu0 %v1192
    %1820 = vmatpush.bf16.msra.mxu0 %v1191
    %1821 = vmatmul.bf16.gmra.mxu0 %v867
    %v1822 = vpop.f32.mrf.mxu0
    %v1823 = vadd.f32 %v1756, %v1822
    %v1824 = vpop.f32.mrf.mxu0
    %v1825 = vadd.f32 %v1759, %v1824
    %1826 = vmatmul.bf16.gmra.mxu0 %v869
    %v1827 = vpop.f32.mrf.mxu0
    %v1828 = vadd.f32 %v1762, %v1827
    %v1829 = vpop.f32.mrf.mxu0
    %v1830 = vadd.f32 %v1765, %v1829
    %1831 = vdwg.mxu0
    %1832 = vmatpush.bf16.msra.mxu0 %v1206
    %1833 = vmatpush.bf16.msra.mxu0 %v1205
    %1834 = vmatpush.bf16.msra.mxu0 %v1204
    %1835 = vmatpush.bf16.msra.mxu0 %v1203
    %1836 = vmatpush.bf16.msra.mxu0 %v1202
    %1837 = vmatpush.bf16.msra.mxu0 %v1201
    %1838 = vmatpush.bf16.msra.mxu0 %v1200
    %1839 = vmatpush.bf16.msra.mxu0 %v1199
    %1840 = vmatmul.bf16.gmra.mxu0 %v868
    %v1841 = vpop.f32.mrf.mxu0
    %v1842 = vadd.f32 %v1823, %v1841
    %v1843 = vpop.f32.mrf.mxu0
    %v1844 = vadd.f32 %v1825, %v1843
    %1845 = vmatmul.bf16.gmra.mxu0 %v870
    %v1846 = vpop.f32.mrf.mxu0
    %v1847 = vadd.f32 %v1828, %v1846
    %v1848 = vpop.f32.mrf.mxu0
    %v1849 = vadd.f32 %v1830, %v1848
    %1850 = vdwg.mxu0
    %v1851 = vadd.f32 %v1842, %v1802
    %v1852 = vadd.f32 %v1844, %v1805
    %v1853 = vadd.f32 %v1847, %v1808
    %v1854 = vadd.f32 %v1849, %v1811
    %v1855 = vld [vmem:[%s41] sm:$0xff]
    %v1856 = vld [vmem:[%s41 + $0x8] sm:$0xff]
    %v1857 = vld [vmem:[%s41 + $0x10] sm:$0xff]
    %v1858 = vld [vmem:[%s41 + $0x18] sm:$0xff]
    %1860 = vset.pattern.permute.xlu0 0
    %1861 = vperm.xlu0 %1860, %v1855
    %v1862 = vpop.permute.xlu0 %1861
    %1865 = vset.pattern.permute.xlu0 0
    %1866 = vperm.xlu0 %1865, %v1856
    %v1867 = vpop.permute.xlu0 %1866
    %1870 = vset.pattern.permute.xlu0 0
    %1871 = vperm.xlu0 %1870, %v1857
    %v1872 = vpop.permute.xlu0 %1871
    %1875 = vset.pattern.permute.xlu0 0
    %1876 = vperm.xlu0 %1875, %v1858
    %v1877 = vpop.permute.xlu0 %1876
    %v1879 = vadd.f32 %v1851, %v1862
    %v1880 = vadd.f32 %v1852, %v1867
    %v1881 = vadd.f32 %v1853, %v1872
    %v1882 = vadd.f32 %v1854, %v1877
    %1883 = vst.msk [vmem:[%s63] sm:$0xff] %vm144, %v1879
    %1884 = vst.msk [vmem:[%s63 + $0x8] sm:$0xff] %vm144, %v1880
    %1885 = vst.msk [vmem:[%s63 + $0x10] sm:$0xff] %vm144, %v1881
    %1886 = vst.msk [vmem:[%s63 + $0x18] sm:$0xff] %vm144, %v1882
    %s1887 = scalar_lea.vmem %s9, 64
    %v1888 = vld [vmem:[%s1887] sm:$0xff]
    %v1889 = vld [vmem:[%s1887 + $0x8] sm:$0xff]
    %v1890 = vld [vmem:[%s1887 + $0x10] sm:$0xff]
    %v1891 = vld [vmem:[%s1887 + $0x18] sm:$0xff]
    %v1892 = vld [vmem:[%s1887 + $0x20] sm:$0xff]
    %v1893 = vld [vmem:[%s1887 + $0x28] sm:$0xff]
    %v1894 = vld [vmem:[%s1887 + $0x30] sm:$0xff]
    %v1895 = vld [vmem:[%s1887 + $0x38] sm:$0xff]
    %v1896 = vpack.c.bf16 %v1889, %v1888
    %v1897 = vpack.c.bf16 %v1891, %v1890
    %v1898 = vpack.c.bf16 %v1893, %v1892
    %v1899 = vpack.c.bf16 %v1895, %v1894
    %v1900 = vld [vmem:[%s27] sm:$0xff]
    %v1901 = vld [vmem:[%s27 + $0x8] sm:$0xff]
    %v1902 = vld [vmem:[%s27 + $0x10] sm:$0xff]
    %v1903 = vld [vmem:[%s27 + $0x18] sm:$0xff]
    %1905 = vset.pattern.permute.xlu0 0
    %1906 = vperm.xlu0 %1905, %v1900
    %v1907 = vpop.permute.xlu0 %1906
    %1910 = vset.pattern.permute.xlu0 0
    %1911 = vperm.xlu0 %1910, %v1901
    %v1912 = vpop.permute.xlu0 %1911
    %1915 = vset.pattern.permute.xlu0 0
    %1916 = vperm.xlu0 %1915, %v1902
    %v1917 = vpop.permute.xlu0 %1916
    %1920 = vset.pattern.permute.xlu0 0
    %1921 = vperm.xlu0 %1920, %v1903
    %v1922 = vpop.permute.xlu0 %1921
    %1924 = vmatpush.bf16.msra.mxu0 0
    %1925 = vmatpush.bf16.msra.mxu0 0
    %1926 = vmatpush.bf16.msra.mxu0 0
    %1927 = vmatpush.bf16.msra.mxu0 0
    %1928 = vmatpush.bf16.msra.mxu0 %v1899
    %1929 = vmatpush.bf16.msra.mxu0 %v1898
    %1930 = vmatpush.bf16.msra.mxu0 %v1897
    %1931 = vmatpush.bf16.msra.mxu0 %v1896
    %1932 = vmatmul.bf16.gmra.mxu0 %v988
    %v1933 = vpop.f32.mrf.mxu0
    %v1934 = vadd.f32 %v1907, %v1933
    %v1935 = vpop.f32.mrf.mxu0
    %v1936 = vadd.f32 %v1912, %v1935
    %1937 = vmatmul.bf16.gmra.mxu0 %v991
    %v1938 = vpop.f32.mrf.mxu0
    %v1939 = vadd.f32 %v1917, %v1938
    %v1940 = vpop.f32.mrf.mxu0
    %v1941 = vadd.f32 %v1922, %v1940
    %1942 = vdwg.mxu0
    %v1943 = vsel %vm144, %v1934, 0.0
    %1944 = vadd.xlane.f32.xlu0 %v1943
    %v1945 = vpop.xlane.xlu0 %1944
    %v1946 = vsel %vm144, %v1936, 0.0
    %1947 = vadd.xlane.f32.xlu0 %v1946
    %v1948 = vpop.xlane.xlu0 %1947
    %v1949 = vsel %vm144, %v1939, 0.0
    %1950 = vadd.xlane.f32.xlu0 %v1949
    %v1951 = vpop.xlane.xlu0 %1950
    %v1952 = vsel %vm144, %v1941, 0.0
    %1953 = vadd.xlane.f32.xlu0 %v1952
    %v1954 = vpop.xlane.xlu0 %1953
    %v1955 = vmul.f32 %v1945, %v1030
    %v1956 = vmul.f32 %v1948, %v1030
    %v1957 = vmul.f32 %v1951, %v1030
    %v1958 = vmul.f32 %v1954, %v1030
    %v1959 = vsub.f32 %v1934, %v1955
    %v1960 = vsub.f32 %v1936, %v1956
    %v1961 = vsub.f32 %v1939, %v1957
    %v1962 = vsub.f32 %v1941, %v1958
    %v1963 = vmul.f32 %v1959, %v1959
    %v1964 = vmul.f32 %v1960, %v1960
    %v1965 = vmul.f32 %v1961, %v1961
    %v1966 = vmul.f32 %v1962, %v1962
    %v1967 = vsel %vm144, %v1963, 0.0
    %1968 = vadd.xlane.f32.xlu0 %v1967
    %v1969 = vpop.xlane.xlu0 %1968
    %v1970 = vsel %vm144, %v1964, 0.0
    %1971 = vadd.xlane.f32.xlu0 %v1970
    %v1972 = vpop.xlane.xlu0 %1971
    %v1973 = vsel %vm144, %v1965, 0.0
    %1974 = vadd.xlane.f32.xlu0 %v1973
    %v1975 = vpop.xlane.xlu0 %1974
    %v1976 = vsel %vm144, %v1966, 0.0
    %1977 = vadd.xlane.f32.xlu0 %v1976
    %v1978 = vpop.xlane.xlu0 %1977
    %v1979 = vmul.f32 %v1969, %v1030
    %v1980 = vmul.f32 %v1972, %v1030
    %v1981 = vmul.f32 %v1975, %v1030
    %v1982 = vmul.f32 %v1978, %v1030
    %v1983 = vadd.f32 %v1979, 1e-05
    %v1984 = vadd.f32 %v1980, 1e-05
    %v1985 = vadd.f32 %v1981, 1e-05
    %v1986 = vadd.f32 %v1982, 1e-05
    %v1987 = vrsqrt.pop %v1983
    %v1988 = vmul.f32 %v1987, %v1983
    %v1989 = vmul.f32 %v1988, %v1987
    %v1990 = vmul.f32 0.5, %v1989
    %v1991 = vsub.f32 1.5, %v1990
    %v1992 = vmul.f32 %v1987, %v1991
    %vm1993 = vweird.f32 %v1983
    %vm1994 = vweird.f32 %v1987
    %vm1995 = vmor %vm1993, %vm1994
    %v1996 = vsel %vm1995, %v1987, %v1992
    %v1997 = vrsqrt.pop %v1984
    %v1998 = vmul.f32 %v1997, %v1984
    %v1999 = vmul.f32 %v1998, %v1997
    %v2000 = vmul.f32 0.5, %v1999
    %v2001 = vsub.f32 1.5, %v2000
    %v2002 = vmul.f32 %v1997, %v2001
    %vm2003 = vweird.f32 %v1984
    %vm2004 = vweird.f32 %v1997
    %vm2005 = vmor %vm2003, %vm2004
    %v2006 = vsel %vm2005, %v1997, %v2002
    %v2007 = vrsqrt.pop %v1985
    %v2008 = vmul.f32 %v2007, %v1985
    %v2009 = vmul.f32 %v2008, %v2007
    %v2010 = vmul.f32 0.5, %v2009
    %v2011 = vsub.f32 1.5, %v2010
    %v2012 = vmul.f32 %v2007, %v2011
    %vm2013 = vweird.f32 %v1985
    %vm2014 = vweird.f32 %v2007
    %vm2015 = vmor %vm2013, %vm2014
    %v2016 = vsel %vm2015, %v2007, %v2012
    %v2017 = vrsqrt.pop %v1986
    %v2018 = vmul.f32 %v2017, %v1986
    %v2019 = vmul.f32 %v2018, %v2017
    %v2020 = vmul.f32 0.5, %v2019
    %v2021 = vsub.f32 1.5, %v2020
    %v2022 = vmul.f32 %v2017, %v2021
    %vm2023 = vweird.f32 %v1986
    %vm2024 = vweird.f32 %v2017
    %vm2025 = vmor %vm2023, %vm2024
    %v2026 = vsel %vm2025, %v2017, %v2022
    %v2027 = vmul.f32 %v1959, %v1996
    %v2028 = vmul.f32 %v1960, %v2006
    %v2029 = vmul.f32 %v1961, %v2016
    %v2030 = vmul.f32 %v1962, %v2026
    %v2031 = vmul.f32 %v2027, %v1110
    %v2032 = vmul.f32 %v2028, %v1115
    %v2033 = vmul.f32 %v2029, %v1120
    %v2034 = vmul.f32 %v2030, %v1125
    %v2035 = vadd.f32 %v2031, %v1134
    %v2036 = vadd.f32 %v2032, %v1139
    %v2037 = vadd.f32 %v2033, %v1144
    %v2038 = vadd.f32 %v2034, %v1149
    %s2039 = scalar_lea.vmem %s61, 32
    %2040 = vst.msk [vmem:[%s2039] sm:$0xff] %vm144, %v2035
    %2041 = vst.msk [vmem:[%s2039 + $0x8] sm:$0xff] %vm144, %v2036
    %2042 = vst.msk [vmem:[%s2039 + $0x10] sm:$0xff] %vm144, %v2037
    %2043 = vst.msk [vmem:[%s2039 + $0x18] sm:$0xff] %vm144, %v2038
    %s2044 = scalar_lea.vmem %s11, 256
    %v2045 = vld [vmem:[%s2044] sm:$0xff]
    %v2046 = vld [vmem:[%s2044 + $0x8] sm:$0xff]
    %v2047 = vld [vmem:[%s2044 + $0x10] sm:$0xff]
    %v2048 = vld [vmem:[%s2044 + $0x18] sm:$0xff]
    %v2049 = vld [vmem:[%s2044 + $0x20] sm:$0xff]
    %v2050 = vld [vmem:[%s2044 + $0x28] sm:$0xff]
    %v2051 = vld [vmem:[%s2044 + $0x30] sm:$0xff]
    %v2052 = vld [vmem:[%s2044 + $0x38] sm:$0xff]
    %v2053 = vld [vmem:[%s2044 + $0x40] sm:$0xff]
    %v2054 = vld [vmem:[%s2044 + $0x48] sm:$0xff]
    %v2055 = vld [vmem:[%s2044 + $0x50] sm:$0xff]
    %v2056 = vld [vmem:[%s2044 + $0x58] sm:$0xff]
    %v2057 = vld [vmem:[%s2044 + $0x60] sm:$0xff]
    %v2058 = vld [vmem:[%s2044 + $0x68] sm:$0xff]
    %v2059 = vld [vmem:[%s2044 + $0x70] sm:$0xff]
    %v2060 = vld [vmem:[%s2044 + $0x78] sm:$0xff]
    %v2061 = vld [vmem:[%s2044 + $0x80] sm:$0xff]
    %v2062 = vld [vmem:[%s2044 + $0x88] sm:$0xff]
    %v2063 = vld [vmem:[%s2044 + $0x90] sm:$0xff]
    %v2064 = vld [vmem:[%s2044 + $0x98] sm:$0xff]
    %v2065 = vld [vmem:[%s2044 + $0xa0] sm:$0xff]
    %v2066 = vld [vmem:[%s2044 + $0xa8] sm:$0xff]
    %v2067 = vld [vmem:[%s2044 + $0xb0] sm:$0xff]
    %v2068 = vld [vmem:[%s2044 + $0xb8] sm:$0xff]
    %v2069 = vld [vmem:[%s2044 + $0xc0] sm:$0xff]
    %v2070 = vld [vmem:[%s2044 + $0xc8] sm:$0xff]
    %v2071 = vld [vmem:[%s2044 + $0xd0] sm:$0xff]
    %v2072 = vld [vmem:[%s2044 + $0xd8] sm:$0xff]
    %v2073 = vld [vmem:[%s2044 + $0xe0] sm:$0xff]
    %v2074 = vld [vmem:[%s2044 + $0xe8] sm:$0xff]
    %v2075 = vld [vmem:[%s2044 + $0xf0] sm:$0xff]
    %v2076 = vld [vmem:[%s2044 + $0xf8] sm:$0xff]
    %v2077 = vpack.c.bf16 %v2046, %v2045
    %v2078 = vpack.c.bf16 %v2048, %v2047
    %v2079 = vpack.c.bf16 %v2050, %v2049
    %v2080 = vpack.c.bf16 %v2052, %v2051
    %v2081 = vpack.c.bf16 %v2054, %v2053
    %v2082 = vpack.c.bf16 %v2056, %v2055
    %v2083 = vpack.c.bf16 %v2058, %v2057
    %v2084 = vpack.c.bf16 %v2060, %v2059
    %v2085 = vpack.c.bf16 %v2062, %v2061
    %v2086 = vpack.c.bf16 %v2064, %v2063
    %v2087 = vpack.c.bf16 %v2066, %v2065
    %v2088 = vpack.c.bf16 %v2068, %v2067
    %v2089 = vpack.c.bf16 %v2070, %v2069
    %v2090 = vpack.c.bf16 %v2072, %v2071
    %v2091 = vpack.c.bf16 %v2074, %v2073
    %v2092 = vpack.c.bf16 %v2076, %v2075
    %s2093 = scalar_lea.vmem %s13, 512
    %v2094 = vld [vmem:[%s2093] sm:$0xff]
    %v2095 = vld [vmem:[%s2093 + $0x8] sm:$0xff]
    %v2096 = vld [vmem:[%s2093 + $0x10] sm:$0xff]
    %v2097 = vld [vmem:[%s2093 + $0x18] sm:$0xff]
    %v2098 = vld [vmem:[%s2093 + $0x20] sm:$0xff]
    %v2099 = vld [vmem:[%s2093 + $0x28] sm:$0xff]
    %v2100 = vld [vmem:[%s2093 + $0x30] sm:$0xff]
    %v2101 = vld [vmem:[%s2093 + $0x38] sm:$0xff]
    %v2102 = vld [vmem:[%s2093 + $0x40] sm:$0xff]
    %v2103 = vld [vmem:[%s2093 + $0x48] sm:$0xff]
    %v2104 = vld [vmem:[%s2093 + $0x50] sm:$0xff]
    %v2105 = vld [vmem:[%s2093 + $0x58] sm:$0xff]
    %v2106 = vld [vmem:[%s2093 + $0x60] sm:$0xff]
    %v2107 = vld [vmem:[%s2093 + $0x68] sm:$0xff]
    %v2108 = vld [vmem:[%s2093 + $0x70] sm:$0xff]
    %v2109 = vld [vmem:[%s2093 + $0x78] sm:$0xff]
    %v2110 = vld [vmem:[%s2093 + $0x80] sm:$0xff]
    %v2111 = vld [vmem:[%s2093 + $0x88] sm:$0xff]
    %v2112 = vld [vmem:[%s2093 + $0x90] sm:$0xff]
    %v2113 = vld [vmem:[%s2093 + $0x98] sm:$0xff]
    %v2114 = vld [vmem:[%s2093 + $0xa0] sm:$0xff]
    %v2115 = vld [vmem:[%s2093 + $0xa8] sm:$0xff]
    %v2116 = vld [vmem:[%s2093 + $0xb0] sm:$0xff]
    %v2117 = vld [vmem:[%s2093 + $0xb8] sm:$0xff]
    %v2118 = vld [vmem:[%s2093 + $0xc0] sm:$0xff]
    %v2119 = vld [vmem:[%s2093 + $0xc8] sm:$0xff]
    %v2120 = vld [vmem:[%s2093 + $0xd0] sm:$0xff]
    %v2121 = vld [vmem:[%s2093 + $0xd8] sm:$0xff]
    %v2122 = vld [vmem:[%s2093 + $0xe0] sm:$0xff]
    %v2123 = vld [vmem:[%s2093 + $0xe8] sm:$0xff]
    %v2124 = vld [vmem:[%s2093 + $0xf0] sm:$0xff]
    %v2125 = vld [vmem:[%s2093 + $0xf8] sm:$0xff]
    %v2126 = vld [vmem:[%s2093 + $0x100] sm:$0xff]
    %v2127 = vld [vmem:[%s2093 + $0x108] sm:$0xff]
    %v2128 = vld [vmem:[%s2093 + $0x110] sm:$0xff]
    %v2129 = vld [vmem:[%s2093 + $0x118] sm:$0xff]
    %v2130 = vld [vmem:[%s2093 + $0x120] sm:$0xff]
    %v2131 = vld [vmem:[%s2093 + $0x128] sm:$0xff]
    %v2132 = vld [vmem:[%s2093 + $0x130] sm:$0xff]
    %v2133 = vld [vmem:[%s2093 + $0x138] sm:$0xff]
    %v2134 = vld [vmem:[%s2093 + $0x140] sm:$0xff]
    %v2135 = vld [vmem:[%s2093 + $0x148] sm:$0xff]
    %v2136 = vld [vmem:[%s2093 + $0x150] sm:$0xff]
    %v2137 = vld [vmem:[%s2093 + $0x158] sm:$0xff]
    %v2138 = vld [vmem:[%s2093 + $0x160] sm:$0xff]
    %v2139 = vld [vmem:[%s2093 + $0x168] sm:$0xff]
    %v2140 = vld [vmem:[%s2093 + $0x170] sm:$0xff]
    %v2141 = vld [vmem:[%s2093 + $0x178] sm:$0xff]
    %v2142 = vld [vmem:[%s2093 + $0x180] sm:$0xff]
    %v2143 = vld [vmem:[%s2093 + $0x188] sm:$0xff]
    %v2144 = vld [vmem:[%s2093 + $0x190] sm:$0xff]
    %v2145 = vld [vmem:[%s2093 + $0x198] sm:$0xff]
    %v2146 = vld [vmem:[%s2093 + $0x1a0] sm:$0xff]
    %v2147 = vld [vmem:[%s2093 + $0x1a8] sm:$0xff]
    %v2148 = vld [vmem:[%s2093 + $0x1b0] sm:$0xff]
    %v2149 = vld [vmem:[%s2093 + $0x1b8] sm:$0xff]
    %v2150 = vld [vmem:[%s2093 + $0x1c0] sm:$0xff]
    %v2151 = vld [vmem:[%s2093 + $0x1c8] sm:$0xff]
    %v2152 = vld [vmem:[%s2093 + $0x1d0] sm:$0xff]
    %v2153 = vld [vmem:[%s2093 + $0x1d8] sm:$0xff]
    %v2154 = vld [vmem:[%s2093 + $0x1e0] sm:$0xff]
    %v2155 = vld [vmem:[%s2093 + $0x1e8] sm:$0xff]
    %v2156 = vld [vmem:[%s2093 + $0x1f0] sm:$0xff]
    %v2157 = vld [vmem:[%s2093 + $0x1f8] sm:$0xff]
    %v2158 = vpack.c.bf16 %v2095, %v2094
    %v2159 = vpack.c.bf16 %v2097, %v2096
    %v2160 = vpack.c.bf16 %v2099, %v2098
    %v2161 = vpack.c.bf16 %v2101, %v2100
    %v2162 = vpack.c.bf16 %v2103, %v2102
    %v2163 = vpack.c.bf16 %v2105, %v2104
    %v2164 = vpack.c.bf16 %v2107, %v2106
    %v2165 = vpack.c.bf16 %v2109, %v2108
    %v2166 = vpack.c.bf16 %v2111, %v2110
    %v2167 = vpack.c.bf16 %v2113, %v2112
    %v2168 = vpack.c.bf16 %v2115, %v2114
    %v2169 = vpack.c.bf16 %v2117, %v2116
    %v2170 = vpack.c.bf16 %v2119, %v2118
    %v2171 = vpack.c.bf16 %v2121, %v2120
    %v2172 = vpack.c.bf16 %v2123, %v2122
    %v2173 = vpack.c.bf16 %v2125, %v2124
    %v2174 = vpack.c.bf16 %v2127, %v2126
    %v2175 = vpack.c.bf16 %v2129, %v2128
    %v2176 = vpack.c.bf16 %v2131, %v2130
    %v2177 = vpack.c.bf16 %v2133, %v2132
    %v2178 = vpack.c.bf16 %v2135, %v2134
    %v2179 = vpack.c.bf16 %v2137, %v2136
    %v2180 = vpack.c.bf16 %v2139, %v2138
    %v2181 = vpack.c.bf16 %v2141, %v2140
    %v2182 = vpack.c.bf16 %v2143, %v2142
    %v2183 = vpack.c.bf16 %v2145, %v2144
    %v2184 = vpack.c.bf16 %v2147, %v2146
    %v2185 = vpack.c.bf16 %v2149, %v2148
    %v2186 = vpack.c.bf16 %v2151, %v2150
    %v2187 = vpack.c.bf16 %v2153, %v2152
    %v2188 = vpack.c.bf16 %v2155, %v2154
    %v2189 = vpack.c.bf16 %v2157, %v2156
    %2190 = vmatpush.bf16.msra.mxu0 %v2165
    %2191 = vmatpush.bf16.msra.mxu0 %v2164
    %2192 = vmatpush.bf16.msra.mxu0 %v2163
    %2193 = vmatpush.bf16.msra.mxu0 %v2162
    %2194 = vmatpush.bf16.msra.mxu0 %v2161
    %2195 = vmatpush.bf16.msra.mxu0 %v2160
    %2196 = vmatpush.bf16.msra.mxu0 %v2159
    %2197 = vmatpush.bf16.msra.mxu0 %v2158
    %2198 = vmatmul.bf16.gmra.mxu0 %v887
    %v2199 = vpop.f32.mrf.mxu0
    %v2200 = vadd.f32 0.0, %v2199
    %v2201 = vpop.f32.mrf.mxu0
    %v2202 = vadd.f32 0.0, %v2201
    %2203 = vmatmul.bf16.gmra.mxu0 %v891
    %v2204 = vpop.f32.mrf.mxu0
    %v2205 = vadd.f32 0.0, %v2204
    %v2206 = vpop.f32.mrf.mxu0
    %v2207 = vadd.f32 0.0, %v2206
    %2208 = vdwg.mxu0
    %2209 = vmatpush.bf16.msra.mxu0 %v2173
    %2210 = vmatpush.bf16.msra.mxu0 %v2172
    %2211 = vmatpush.bf16.msra.mxu0 %v2171
    %2212 = vmatpush.bf16.msra.mxu0 %v2170
    %2213 = vmatpush.bf16.msra.mxu0 %v2169
    %2214 = vmatpush.bf16.msra.mxu0 %v2168
    %2215 = vmatpush.bf16.msra.mxu0 %v2167
    %2216 = vmatpush.bf16.msra.mxu0 %v2166
    %2217 = vmatmul.bf16.gmra.mxu0 %v888
    %v2218 = vpop.f32.mrf.mxu0
    %v2219 = vadd.f32 %v2200, %v2218
    %v2220 = vpop.f32.mrf.mxu0
    %v2221 = vadd.f32 %v2202, %v2220
    %2222 = vmatmul.bf16.gmra.mxu0 %v892
    %v2223 = vpop.f32.mrf.mxu0
    %v2224 = vadd.f32 %v2205, %v2223
    %v2225 = vpop.f32.mrf.mxu0
    %v2226 = vadd.f32 %v2207, %v2225
    %2227 = vdwg.mxu0
    %2228 = vmatpush.bf16.msra.mxu0 %v2181
    %2229 = vmatpush.bf16.msra.mxu0 %v2180
    %2230 = vmatpush.bf16.msra.mxu0 %v2179
    %2231 = vmatpush.bf16.msra.mxu0 %v2178
    %2232 = vmatpush.bf16.msra.mxu0 %v2177
    %2233 = vmatpush.bf16.msra.mxu0 %v2176
    %2234 = vmatpush.bf16.msra.mxu0 %v2175
    %2235 = vmatpush.bf16.msra.mxu0 %v2174
    %2236 = vmatmul.bf16.gmra.mxu0 %v889
    %v2237 = vpop.f32.mrf.mxu0
    %v2238 = vadd.f32 %v2219, %v2237
    %v2239 = vpop.f32.mrf.mxu0
    %v2240 = vadd.f32 %v2221, %v2239
    %2241 = vmatmul.bf16.gmra.mxu0 %v893
    %v2242 = vpop.f32.mrf.mxu0
    %v2243 = vadd.f32 %v2224, %v2242
    %v2244 = vpop.f32.mrf.mxu0
    %v2245 = vadd.f32 %v2226, %v2244
    %2246 = vdwg.mxu0
    %2247 = vmatpush.bf16.msra.mxu0 %v2189
    %2248 = vmatpush.bf16.msra.mxu0 %v2188
    %2249 = vmatpush.bf16.msra.mxu0 %v2187
    %2250 = vmatpush.bf16.msra.mxu0 %v2186
    %2251 = vmatpush.bf16.msra.mxu0 %v2185
    %2252 = vmatpush.bf16.msra.mxu0 %v2184
    %2253 = vmatpush.bf16.msra.mxu0 %v2183
    %2254 = vmatpush.bf16.msra.mxu0 %v2182
    %2255 = vmatmul.bf16.gmra.mxu0 %v890
    %v2256 = vpop.f32.mrf.mxu0
    %v2257 = vadd.f32 %v2238, %v2256
    %v2258 = vpop.f32.mrf.mxu0
    %v2259 = vadd.f32 %v2240, %v2258
    %2260 = vmatmul.bf16.gmra.mxu0 %v894
    %v2261 = vpop.f32.mrf.mxu0
    %v2262 = vadd.f32 %v2243, %v2261
    %v2263 = vpop.f32.mrf.mxu0
    %v2264 = vadd.f32 %v2245, %v2263
    %2265 = vdwg.mxu0
    %s2266 = scalar_lea.vmem %s15, 1024
    %v2267 = vld [vmem:[%s2266] sm:$0xff]
    %v2268 = vld [vmem:[%s2266 + $0x8] sm:$0xff]
    %v2269 = vld [vmem:[%s2266 + $0x10] sm:$0xff]
    %v2270 = vld [vmem:[%s2266 + $0x18] sm:$0xff]
    %v2271 = vld [vmem:[%s2266 + $0x20] sm:$0xff]
    %v2272 = vld [vmem:[%s2266 + $0x28] sm:$0xff]
    %v2273 = vld [vmem:[%s2266 + $0x30] sm:$0xff]
    %v2274 = vld [vmem:[%s2266 + $0x38] sm:$0xff]
    %v2275 = vld [vmem:[%s2266 + $0x40] sm:$0xff]
    %v2276 = vld [vmem:[%s2266 + $0x48] sm:$0xff]
    %v2277 = vld [vmem:[%s2266 + $0x50] sm:$0xff]
    %v2278 = vld [vmem:[%s2266 + $0x58] sm:$0xff]
    %v2279 = vld [vmem:[%s2266 + $0x60] sm:$0xff]
    %v2280 = vld [vmem:[%s2266 + $0x68] sm:$0xff]
    %v2281 = vld [vmem:[%s2266 + $0x70] sm:$0xff]
    %v2282 = vld [vmem:[%s2266 + $0x78] sm:$0xff]
    %v2283 = vld [vmem:[%s2266 + $0x80] sm:$0xff]
    %v2284 = vld [vmem:[%s2266 + $0x88] sm:$0xff]
    %v2285 = vld [vmem:[%s2266 + $0x90] sm:$0xff]
    %v2286 = vld [vmem:[%s2266 + $0x98] sm:$0xff]
    %v2287 = vld [vmem:[%s2266 + $0xa0] sm:$0xff]
    %v2288 = vld [vmem:[%s2266 + $0xa8] sm:$0xff]
    %v2289 = vld [vmem:[%s2266 + $0xb0] sm:$0xff]
    %v2290 = vld [vmem:[%s2266 + $0xb8] sm:$0xff]
    %v2291 = vld [vmem:[%s2266 + $0xc0] sm:$0xff]
    %v2292 = vld [vmem:[%s2266 + $0xc8] sm:$0xff]
    %v2293 = vld [vmem:[%s2266 + $0xd0] sm:$0xff]
    %v2294 = vld [vmem:[%s2266 + $0xd8] sm:$0xff]
    %v2295 = vld [vmem:[%s2266 + $0xe0] sm:$0xff]
    %v2296 = vld [vmem:[%s2266 + $0xe8] sm:$0xff]
    %v2297 = vld [vmem:[%s2266 + $0xf0] sm:$0xff]
    %v2298 = vld [vmem:[%s2266 + $0xf8] sm:$0xff]
    %v2299 = vld [vmem:[%s2266 + $0x100] sm:$0xff]
    %v2300 = vld [vmem:[%s2266 + $0x108] sm:$0xff]
    %v2301 = vld [vmem:[%s2266 + $0x110] sm:$0xff]
    %v2302 = vld [vmem:[%s2266 + $0x118] sm:$0xff]
    %v2303 = vld [vmem:[%s2266 + $0x120] sm:$0xff]
    %v2304 = vld [vmem:[%s2266 + $0x128] sm:$0xff]
    %v2305 = vld [vmem:[%s2266 + $0x130] sm:$0xff]
    %v2306 = vld [vmem:[%s2266 + $0x138] sm:$0xff]
    %v2307 = vld [vmem:[%s2266 + $0x140] sm:$0xff]
    %v2308 = vld [vmem:[%s2266 + $0x148] sm:$0xff]
    %v2309 = vld [vmem:[%s2266 + $0x150] sm:$0xff]
    %v2310 = vld [vmem:[%s2266 + $0x158] sm:$0xff]
    %v2311 = vld [vmem:[%s2266 + $0x160] sm:$0xff]
    %v2312 = vld [vmem:[%s2266 + $0x168] sm:$0xff]
    %v2313 = vld [vmem:[%s2266 + $0x170] sm:$0xff]
    %v2314 = vld [vmem:[%s2266 + $0x178] sm:$0xff]
    %v2315 = vld [vmem:[%s2266 + $0x180] sm:$0xff]
    %v2316 = vld [vmem:[%s2266 + $0x188] sm:$0xff]
    %v2317 = vld [vmem:[%s2266 + $0x190] sm:$0xff]
    %v2318 = vld [vmem:[%s2266 + $0x198] sm:$0xff]
    %v2319 = vld [vmem:[%s2266 + $0x1a0] sm:$0xff]
    %v2320 = vld [vmem:[%s2266 + $0x1a8] sm:$0xff]
    %v2321 = vld [vmem:[%s2266 + $0x1b0] sm:$0xff]
    %v2322 = vld [vmem:[%s2266 + $0x1b8] sm:$0xff]
    %v2323 = vld [vmem:[%s2266 + $0x1c0] sm:$0xff]
    %v2324 = vld [vmem:[%s2266 + $0x1c8] sm:$0xff]
    %v2325 = vld [vmem:[%s2266 + $0x1d0] sm:$0xff]
    %v2326 = vld [vmem:[%s2266 + $0x1d8] sm:$0xff]
    %v2327 = vld [vmem:[%s2266 + $0x1e0] sm:$0xff]
    %v2328 = vld [vmem:[%s2266 + $0x1e8] sm:$0xff]
    %v2329 = vld [vmem:[%s2266 + $0x1f0] sm:$0xff]
    %v2330 = vld [vmem:[%s2266 + $0x1f8] sm:$0xff]
    %v2331 = vld [vmem:[%s2266 + $0x200] sm:$0xff]
    %v2332 = vld [vmem:[%s2266 + $0x208] sm:$0xff]
    %v2333 = vld [vmem:[%s2266 + $0x210] sm:$0xff]
    %v2334 = vld [vmem:[%s2266 + $0x218] sm:$0xff]
    %v2335 = vld [vmem:[%s2266 + $0x220] sm:$0xff]
    %v2336 = vld [vmem:[%s2266 + $0x228] sm:$0xff]
    %v2337 = vld [vmem:[%s2266 + $0x230] sm:$0xff]
    %v2338 = vld [vmem:[%s2266 + $0x238] sm:$0xff]
    %v2339 = vld [vmem:[%s2266 + $0x240] sm:$0xff]
    %v2340 = vld [vmem:[%s2266 + $0x248] sm:$0xff]
    %v2341 = vld [vmem:[%s2266 + $0x250] sm:$0xff]
    %v2342 = vld [vmem:[%s2266 + $0x258] sm:$0xff]
    %v2343 = vld [vmem:[%s2266 + $0x260] sm:$0xff]
    %v2344 = vld [vmem:[%s2266 + $0x268] sm:$0xff]
    %v2345 = vld [vmem:[%s2266 + $0x270] sm:$0xff]
    %v2346 = vld [vmem:[%s2266 + $0x278] sm:$0xff]
    %v2347 = vld [vmem:[%s2266 + $0x280] sm:$0xff]
    %v2348 = vld [vmem:[%s2266 + $0x288] sm:$0xff]
    %v2349 = vld [vmem:[%s2266 + $0x290] sm:$0xff]
    %v2350 = vld [vmem:[%s2266 + $0x298] sm:$0xff]
    %v2351 = vld [vmem:[%s2266 + $0x2a0] sm:$0xff]
    %v2352 = vld [vmem:[%s2266 + $0x2a8] sm:$0xff]
    %v2353 = vld [vmem:[%s2266 + $0x2b0] sm:$0xff]
    %v2354 = vld [vmem:[%s2266 + $0x2b8] sm:$0xff]
    %v2355 = vld [vmem:[%s2266 + $0x2c0] sm:$0xff]
    %v2356 = vld [vmem:[%s2266 + $0x2c8] sm:$0xff]
    %v2357 = vld [vmem:[%s2266 + $0x2d0] sm:$0xff]
    %v2358 = vld [vmem:[%s2266 + $0x2d8] sm:$0xff]
    %v2359 = vld [vmem:[%s2266 + $0x2e0] sm:$0xff]
    %v2360 = vld [vmem:[%s2266 + $0x2e8] sm:$0xff]
    %v2361 = vld [vmem:[%s2266 + $0x2f0] sm:$0xff]
    %v2362 = vld [vmem:[%s2266 + $0x2f8] sm:$0xff]
    %v2363 = vld [vmem:[%s2266 + $0x300] sm:$0xff]
    %v2364 = vld [vmem:[%s2266 + $0x308] sm:$0xff]
    %v2365 = vld [vmem:[%s2266 + $0x310] sm:$0xff]
    %v2366 = vld [vmem:[%s2266 + $0x318] sm:$0xff]
    %v2367 = vld [vmem:[%s2266 + $0x320] sm:$0xff]
    %v2368 = vld [vmem:[%s2266 + $0x328] sm:$0xff]
    %v2369 = vld [vmem:[%s2266 + $0x330] sm:$0xff]
    %v2370 = vld [vmem:[%s2266 + $0x338] sm:$0xff]
    %v2371 = vld [vmem:[%s2266 + $0x340] sm:$0xff]
    %v2372 = vld [vmem:[%s2266 + $0x348] sm:$0xff]
    %v2373 = vld [vmem:[%s2266 + $0x350] sm:$0xff]
    %v2374 = vld [vmem:[%s2266 + $0x358] sm:$0xff]
    %v2375 = vld [vmem:[%s2266 + $0x360] sm:$0xff]
    %v2376 = vld [vmem:[%s2266 + $0x368] sm:$0xff]
    %v2377 = vld [vmem:[%s2266 + $0x370] sm:$0xff]
    %v2378 = vld [vmem:[%s2266 + $0x378] sm:$0xff]
    %v2379 = vld [vmem:[%s2266 + $0x380] sm:$0xff]
    %v2380 = vld [vmem:[%s2266 + $0x388] sm:$0xff]
    %v2381 = vld [vmem:[%s2266 + $0x390] sm:$0xff]
    %v2382 = vld [vmem:[%s2266 + $0x398] sm:$0xff]
    %v2383 = vld [vmem:[%s2266 + $0x3a0] sm:$0xff]
    %v2384 = vld [vmem:[%s2266 + $0x3a8] sm:$0xff]
    %v2385 = vld [vmem:[%s2266 + $0x3b0] sm:$0xff]
    %v2386 = vld [vmem:[%s2266 + $0x3b8] sm:$0xff]
    %v2387 = vld [vmem:[%s2266 + $0x3c0] sm:$0xff]
    %v2388 = vld [vmem:[%s2266 + $0x3c8] sm:$0xff]
    %v2389 = vld [vmem:[%s2266 + $0x3d0] sm:$0xff]
    %v2390 = vld [vmem:[%s2266 + $0x3d8] sm:$0xff]
    %v2391 = vld [vmem:[%s2266 + $0x3e0] sm:$0xff]
    %v2392 = vld [vmem:[%s2266 + $0x3e8] sm:$0xff]
    %v2393 = vld [vmem:[%s2266 + $0x3f0] sm:$0xff]
    %v2394 = vld [vmem:[%s2266 + $0x3f8] sm:$0xff]
    %v2395 = vpack.c.bf16 %v2268, %v2267
    %v2396 = vpack.c.bf16 %v2270, %v2269
    %v2397 = vpack.c.bf16 %v2272, %v2271
    %v2398 = vpack.c.bf16 %v2274, %v2273
    %v2399 = vpack.c.bf16 %v2276, %v2275
    %v2400 = vpack.c.bf16 %v2278, %v2277
    %v2401 = vpack.c.bf16 %v2280, %v2279
    %v2402 = vpack.c.bf16 %v2282, %v2281
    %v2403 = vpack.c.bf16 %v2284, %v2283
    %v2404 = vpack.c.bf16 %v2286, %v2285
    %v2405 = vpack.c.bf16 %v2288, %v2287
    %v2406 = vpack.c.bf16 %v2290, %v2289
    %v2407 = vpack.c.bf16 %v2292, %v2291
    %v2408 = vpack.c.bf16 %v2294, %v2293
    %v2409 = vpack.c.bf16 %v2296, %v2295
    %v2410 = vpack.c.bf16 %v2298, %v2297
    %v2411 = vpack.c.bf16 %v2300, %v2299
    %v2412 = vpack.c.bf16 %v2302, %v2301
    %v2413 = vpack.c.bf16 %v2304, %v2303
    %v2414 = vpack.c.bf16 %v2306, %v2305
    %v2415 = vpack.c.bf16 %v2308, %v2307
    %v2416 = vpack.c.bf16 %v2310, %v2309
    %v2417 = vpack.c.bf16 %v2312, %v2311
    %v2418 = vpack.c.bf16 %v2314, %v2313
    %v2419 = vpack.c.bf16 %v2316, %v2315
    %v2420 = vpack.c.bf16 %v2318, %v2317
    %v2421 = vpack.c.bf16 %v2320, %v2319
    %v2422 = vpack.c.bf16 %v2322, %v2321
    %v2423 = vpack.c.bf16 %v2324, %v2323
    %v2424 = vpack.c.bf16 %v2326, %v2325
    %v2425 = vpack.c.bf16 %v2328, %v2327
    %v2426 = vpack.c.bf16 %v2330, %v2329
    %v2427 = vpack.c.bf16 %v2332, %v2331
    %v2428 = vpack.c.bf16 %v2334, %v2333
    %v2429 = vpack.c.bf16 %v2336, %v2335
    %v2430 = vpack.c.bf16 %v2338, %v2337
    %v2431 = vpack.c.bf16 %v2340, %v2339
    %v2432 = vpack.c.bf16 %v2342, %v2341
    %v2433 = vpack.c.bf16 %v2344, %v2343
    %v2434 = vpack.c.bf16 %v2346, %v2345
    %v2435 = vpack.c.bf16 %v2348, %v2347
    %v2436 = vpack.c.bf16 %v2350, %v2349
    %v2437 = vpack.c.bf16 %v2352, %v2351
    %v2438 = vpack.c.bf16 %v2354, %v2353
    %v2439 = vpack.c.bf16 %v2356, %v2355
    %v2440 = vpack.c.bf16 %v2358, %v2357
    %v2441 = vpack.c.bf16 %v2360, %v2359
    %v2442 = vpack.c.bf16 %v2362, %v2361
    %v2443 = vpack.c.bf16 %v2364, %v2363
    %v2444 = vpack.c.bf16 %v2366, %v2365
    %v2445 = vpack.c.bf16 %v2368, %v2367
    %v2446 = vpack.c.bf16 %v2370, %v2369
    %v2447 = vpack.c.bf16 %v2372, %v2371
    %v2448 = vpack.c.bf16 %v2374, %v2373
    %v2449 = vpack.c.bf16 %v2376, %v2375
    %v2450 = vpack.c.bf16 %v2378, %v2377
    %v2451 = vpack.c.bf16 %v2380, %v2379
    %v2452 = vpack.c.bf16 %v2382, %v2381
    %v2453 = vpack.c.bf16 %v2384, %v2383
    %v2454 = vpack.c.bf16 %v2386, %v2385
    %v2455 = vpack.c.bf16 %v2388, %v2387
    %v2456 = vpack.c.bf16 %v2390, %v2389
    %v2457 = vpack.c.bf16 %v2392, %v2391
    %v2458 = vpack.c.bf16 %v2394, %v2393
    %2459 = vmatpush.bf16.msra.mxu0 %v2402
    %2460 = vmatpush.bf16.msra.mxu0 %v2401
    %2461 = vmatpush.bf16.msra.mxu0 %v2400
    %2462 = vmatpush.bf16.msra.mxu0 %v2399
    %2463 = vmatpush.bf16.msra.mxu0 %v2398
    %2464 = vmatpush.bf16.msra.mxu0 %v2397
    %2465 = vmatpush.bf16.msra.mxu0 %v2396
    %2466 = vmatpush.bf16.msra.mxu0 %v2395
    %2467 = vmatmul.bf16.gmra.mxu0 %v927
    %v2468 = vpop.f32.mrf.mxu0
    %v2469 = vadd.f32 0.0, %v2468
    %v2470 = vpop.f32.mrf.mxu0
    %v2471 = vadd.f32 0.0, %v2470
    %2472 = vmatmul.bf16.gmra.mxu0 %v935
    %v2473 = vpop.f32.mrf.mxu0
    %v2474 = vadd.f32 0.0, %v2473
    %v2475 = vpop.f32.mrf.mxu0
    %v2476 = vadd.f32 0.0, %v2475
    %2477 = vdwg.mxu0
    %2478 = vmatpush.bf16.msra.mxu0 %v2410
    %2479 = vmatpush.bf16.msra.mxu0 %v2409
    %2480 = vmatpush.bf16.msra.mxu0 %v2408
    %2481 = vmatpush.bf16.msra.mxu0 %v2407
    %2482 = vmatpush.bf16.msra.mxu0 %v2406
    %2483 = vmatpush.bf16.msra.mxu0 %v2405
    %2484 = vmatpush.bf16.msra.mxu0 %v2404
    %2485 = vmatpush.bf16.msra.mxu0 %v2403
    %2486 = vmatmul.bf16.gmra.mxu0 %v928
    %v2487 = vpop.f32.mrf.mxu0
    %v2488 = vadd.f32 %v2469, %v2487
    %v2489 = vpop.f32.mrf.mxu0
    %v2490 = vadd.f32 %v2471, %v2489
    %2491 = vmatmul.bf16.gmra.mxu0 %v936
    %v2492 = vpop.f32.mrf.mxu0
    %v2493 = vadd.f32 %v2474, %v2492
    %v2494 = vpop.f32.mrf.mxu0
    %v2495 = vadd.f32 %v2476, %v2494
    %2496 = vdwg.mxu0
    %2497 = vmatpush.bf16.msra.mxu0 %v2418
    %2498 = vmatpush.bf16.msra.mxu0 %v2417
    %2499 = vmatpush.bf16.msra.mxu0 %v2416
    %2500 = vmatpush.bf16.msra.mxu0 %v2415
    %2501 = vmatpush.bf16.msra.mxu0 %v2414
    %2502 = vmatpush.bf16.msra.mxu0 %v2413
    %2503 = vmatpush.bf16.msra.mxu0 %v2412
    %2504 = vmatpush.bf16.msra.mxu0 %v2411
    %2505 = vmatmul.bf16.gmra.mxu0 %v929
    %v2506 = vpop.f32.mrf.mxu0
    %v2507 = vadd.f32 %v2488, %v2506
    %v2508 = vpop.f32.mrf.mxu0
    %v2509 = vadd.f32 %v2490, %v2508
    %2510 = vmatmul.bf16.gmra.mxu0 %v937
    %v2511 = vpop.f32.mrf.mxu0
    %v2512 = vadd.f32 %v2493, %v2511
    %v2513 = vpop.f32.mrf.mxu0
    %v2514 = vadd.f32 %v2495, %v2513
    %2515 = vdwg.mxu0
    %2516 = vmatpush.bf16.msra.mxu0 %v2426
    %2517 = vmatpush.bf16.msra.mxu0 %v2425
    %2518 = vmatpush.bf16.msra.mxu0 %v2424
    %2519 = vmatpush.bf16.msra.mxu0 %v2423
    %2520 = vmatpush.bf16.msra.mxu0 %v2422
    %2521 = vmatpush.bf16.msra.mxu0 %v2421
    %2522 = vmatpush.bf16.msra.mxu0 %v2420
    %2523 = vmatpush.bf16.msra.mxu0 %v2419
    %2524 = vmatmul.bf16.gmra.mxu0 %v930
    %v2525 = vpop.f32.mrf.mxu0
    %v2526 = vadd.f32 %v2507, %v2525
    %v2527 = vpop.f32.mrf.mxu0
    %v2528 = vadd.f32 %v2509, %v2527
    %2529 = vmatmul.bf16.gmra.mxu0 %v938
    %v2530 = vpop.f32.mrf.mxu0
    %v2531 = vadd.f32 %v2512, %v2530
    %v2532 = vpop.f32.mrf.mxu0
    %v2533 = vadd.f32 %v2514, %v2532
    %2534 = vdwg.mxu0
    %2535 = vmatpush.bf16.msra.mxu0 %v2434
    %2536 = vmatpush.bf16.msra.mxu0 %v2433
    %2537 = vmatpush.bf16.msra.mxu0 %v2432
    %2538 = vmatpush.bf16.msra.mxu0 %v2431
    %2539 = vmatpush.bf16.msra.mxu0 %v2430
    %2540 = vmatpush.bf16.msra.mxu0 %v2429
    %2541 = vmatpush.bf16.msra.mxu0 %v2428
    %2542 = vmatpush.bf16.msra.mxu0 %v2427
    %2543 = vmatmul.bf16.gmra.mxu0 %v931
    %v2544 = vpop.f32.mrf.mxu0
    %v2545 = vadd.f32 %v2526, %v2544
    %v2546 = vpop.f32.mrf.mxu0
    %v2547 = vadd.f32 %v2528, %v2546
    %2548 = vmatmul.bf16.gmra.mxu0 %v939
    %v2549 = vpop.f32.mrf.mxu0
    %v2550 = vadd.f32 %v2531, %v2549
    %v2551 = vpop.f32.mrf.mxu0
    %v2552 = vadd.f32 %v2533, %v2551
    %2553 = vdwg.mxu0
    %2554 = vmatpush.bf16.msra.mxu0 %v2442
    %2555 = vmatpush.bf16.msra.mxu0 %v2441
    %2556 = vmatpush.bf16.msra.mxu0 %v2440
    %2557 = vmatpush.bf16.msra.mxu0 %v2439
    %2558 = vmatpush.bf16.msra.mxu0 %v2438
    %2559 = vmatpush.bf16.msra.mxu0 %v2437
    %2560 = vmatpush.bf16.msra.mxu0 %v2436
    %2561 = vmatpush.bf16.msra.mxu0 %v2435
    %2562 = vmatmul.bf16.gmra.mxu0 %v932
    %v2563 = vpop.f32.mrf.mxu0
    %v2564 = vadd.f32 %v2545, %v2563
    %v2565 = vpop.f32.mrf.mxu0
    %v2566 = vadd.f32 %v2547, %v2565
    %2567 = vmatmul.bf16.gmra.mxu0 %v940
    %v2568 = vpop.f32.mrf.mxu0
    %v2569 = vadd.f32 %v2550, %v2568
    %v2570 = vpop.f32.mrf.mxu0
    %v2571 = vadd.f32 %v2552, %v2570
    %2572 = vdwg.mxu0
    %2573 = vmatpush.bf16.msra.mxu0 %v2450
    %2574 = vmatpush.bf16.msra.mxu0 %v2449
    %2575 = vmatpush.bf16.msra.mxu0 %v2448
    %2576 = vmatpush.bf16.msra.mxu0 %v2447
    %2577 = vmatpush.bf16.msra.mxu0 %v2446
    %2578 = vmatpush.bf16.msra.mxu0 %v2445
    %2579 = vmatpush.bf16.msra.mxu0 %v2444
    %2580 = vmatpush.bf16.msra.mxu0 %v2443
    %2581 = vmatmul.bf16.gmra.mxu0 %v933
    %v2582 = vpop.f32.mrf.mxu0
    %v2583 = vadd.f32 %v2564, %v2582
    %v2584 = vpop.f32.mrf.mxu0
    %v2585 = vadd.f32 %v2566, %v2584
    %2586 = vmatmul.bf16.gmra.mxu0 %v941
    %v2587 = vpop.f32.mrf.mxu0
    %v2588 = vadd.f32 %v2569, %v2587
    %v2589 = vpop.f32.mrf.mxu0
    %v2590 = vadd.f32 %v2571, %v2589
    %2591 = vdwg.mxu0
    %2592 = vmatpush.bf16.msra.mxu0 %v2458
    %2593 = vmatpush.bf16.msra.mxu0 %v2457
    %2594 = vmatpush.bf16.msra.mxu0 %v2456
    %2595 = vmatpush.bf16.msra.mxu0 %v2455
    %2596 = vmatpush.bf16.msra.mxu0 %v2454
    %2597 = vmatpush.bf16.msra.mxu0 %v2453
    %2598 = vmatpush.bf16.msra.mxu0 %v2452
    %2599 = vmatpush.bf16.msra.mxu0 %v2451
    %2600 = vmatmul.bf16.gmra.mxu0 %v934
    %v2601 = vpop.f32.mrf.mxu0
    %v2602 = vadd.f32 %v2583, %v2601
    %v2603 = vpop.f32.mrf.mxu0
    %v2604 = vadd.f32 %v2585, %v2603
    %2605 = vmatmul.bf16.gmra.mxu0 %v942
    %v2606 = vpop.f32.mrf.mxu0
    %v2607 = vadd.f32 %v2588, %v2606
    %v2608 = vpop.f32.mrf.mxu0
    %v2609 = vadd.f32 %v2590, %v2608
    %2610 = vdwg.mxu0
    %v2611 = vld [vmem:[%s17] sm:$0xff]
    %v2612 = vld [vmem:[%s17 + $0x8] sm:$0xff]
    %v2614 = vsel %vm1725, %v2257, 0
    %v2617 = vsel %vm1725, %v2259, 0
    %v2620 = vsel %vm1725, %v2262, 0
    %v2623 = vsel %vm1725, %v2264, 0
    %2625 = vmatpush.msra.mxu0 0.0
    %2626 = vmatpush.msra.mxu0 0.0
    %2627 = vmatpush.msra.mxu0 0.0
    %2628 = vmatpush.msra.mxu0 0.0
    %2629 = vmatpush.msra.mxu0 0.0
    %2630 = vmatpush.msra.mxu0 0.0
    %2631 = vmatpush.msra.mxu0 0.0
    %2632 = vmatpush.msra.mxu0 0.0
    %2633 = vmatpush.msra.mxu0 0.0
    %2634 = vmatpush.msra.mxu0 0.0
    %2635 = vmatpush.msra.mxu0 0.0
    %2636 = vmatpush.msra.mxu0 0.0
    %2637 = vmatpush.msra.mxu0 0.0
    %2638 = vmatpush.msra.mxu0 0.0
    %2639 = vmatpush.msra.mxu0 %v2612
    %2640 = vmatpush.msra.mxu0 %v2611
    %2641 = vmatmul.f32.gmra.mxu0 %v2614
    %v2642 = vpop.f32.mrf.mxu0
    %v2643 = vadd.f32 0.0, %v2642
    %2644 = vmatmul.f32.gmra.mxu0 %v2617
    %v2645 = vpop.f32.mrf.mxu0
    %v2646 = vadd.f32 0.0, %v2645
    %2647 = vmatmul.f32.gmra.mxu0 %v2620
    %v2648 = vpop.f32.mrf.mxu0
    %v2649 = vadd.f32 0.0, %v2648
    %2650 = vmatmul.f32.gmra.mxu0 %v2623
    %v2651 = vpop.f32.mrf.mxu0
    %v2652 = vadd.f32 0.0, %v2651
    %2653 = vdwg.mxu0
    %v2654 = vld [vmem:[%s19] sm:$0xf]
    %v2656 = vsel %vm472, %v2602, 0
    %v2659 = vsel %vm472, %v2604, 0
    %v2662 = vsel %vm472, %v2607, 0
    %v2665 = vsel %vm472, %v2609, 0
    %v2668 = vsel %vm1780, %v2654, 0
    %2670 = vmatpush.msra.mxu0 0.0
    %2671 = vmatpush.msra.mxu0 0.0
    %2672 = vmatpush.msra.mxu0 0.0
    %2673 = vmatpush.msra.mxu0 0.0
    %2674 = vmatpush.msra.mxu0 0.0
    %2675 = vmatpush.msra.mxu0 0.0
    %2676 = vmatpush.msra.mxu0 0.0
    %2677 = vmatpush.msra.mxu0 0.0
    %2678 = vmatpush.msra.mxu0 0.0
    %2679 = vmatpush.msra.mxu0 0.0
    %2680 = vmatpush.msra.mxu0 0.0
    %2681 = vmatpush.msra.mxu0 0.0
    %2682 = vmatpush.msra.mxu0 0.0
    %2683 = vmatpush.msra.mxu0 0.0
    %2684 = vmatpush.msra.mxu0 0.0
    %2685 = vmatpush.msra.mxu0 %v2668
    %2686 = vmatmul.f32.gmra.mxu0 %v2656
    %v2687 = vpop.f32.mrf.mxu0
    %v2688 = vadd.f32 0.0, %v2687
    %2689 = vmatmul.f32.gmra.mxu0 %v2659
    %v2690 = vpop.f32.mrf.mxu0
    %v2691 = vadd.f32 0.0, %v2690
    %2692 = vmatmul.f32.gmra.mxu0 %v2662
    %v2693 = vpop.f32.mrf.mxu0
    %v2694 = vadd.f32 0.0, %v2693
    %2695 = vmatmul.f32.gmra.mxu0 %v2665
    %v2696 = vpop.f32.mrf.mxu0
    %v2697 = vadd.f32 0.0, %v2696
    %2698 = vdwg.mxu0
    %2699 = vmatpush.bf16.msra.mxu0 %v2084
    %2700 = vmatpush.bf16.msra.mxu0 %v2083
    %2701 = vmatpush.bf16.msra.mxu0 %v2082
    %2702 = vmatpush.bf16.msra.mxu0 %v2081
    %2703 = vmatpush.bf16.msra.mxu0 %v2080
    %2704 = vmatpush.bf16.msra.mxu0 %v2079
    %2705 = vmatpush.bf16.msra.mxu0 %v2078
    %2706 = vmatpush.bf16.msra.mxu0 %v2077
    %2707 = vmatmul.bf16.gmra.mxu0 %v867
    %v2708 = vpop.f32.mrf.mxu0
    %v2709 = vadd.f32 %v2643, %v2708
    %v2710 = vpop.f32.mrf.mxu0
    %v2711 = vadd.f32 %v2646, %v2710
    %2712 = vmatmul.bf16.gmra.mxu0 %v869
    %v2713 = vpop.f32.mrf.mxu0
    %v2714 = vadd.f32 %v2649, %v2713
    %v2715 = vpop.f32.mrf.mxu0
    %v2716 = vadd.f32 %v2652, %v2715
    %2717 = vdwg.mxu0
    %2718 = vmatpush.bf16.msra.mxu0 %v2092
    %2719 = vmatpush.bf16.msra.mxu0 %v2091
    %2720 = vmatpush.bf16.msra.mxu0 %v2090
    %2721 = vmatpush.bf16.msra.mxu0 %v2089
    %2722 = vmatpush.bf16.msra.mxu0 %v2088
    %2723 = vmatpush.bf16.msra.mxu0 %v2087
    %2724 = vmatpush.bf16.msra.mxu0 %v2086
    %2725 = vmatpush.bf16.msra.mxu0 %v2085
    %2726 = vmatmul.bf16.gmra.mxu0 %v868
    %v2727 = vpop.f32.mrf.mxu0
    %v2728 = vadd.f32 %v2709, %v2727
    %v2729 = vpop.f32.mrf.mxu0
    %v2730 = vadd.f32 %v2711, %v2729
    %2731 = vmatmul.bf16.gmra.mxu0 %v870
    %v2732 = vpop.f32.mrf.mxu0
    %v2733 = vadd.f32 %v2714, %v2732
    %v2734 = vpop.f32.mrf.mxu0
    %v2735 = vadd.f32 %v2716, %v2734
    %2736 = vdwg.mxu0
    %v2737 = vadd.f32 %v2728, %v2688
    %v2738 = vadd.f32 %v2730, %v2691
    %v2739 = vadd.f32 %v2733, %v2694
    %v2740 = vadd.f32 %v2735, %v2697
    %v2741 = vld [vmem:[%s41] sm:$0xff]
    %v2742 = vld [vmem:[%s41 + $0x8] sm:$0xff]
    %v2743 = vld [vmem:[%s41 + $0x10] sm:$0xff]
    %v2744 = vld [vmem:[%s41 + $0x18] sm:$0xff]
    %2746 = vset.pattern.permute.xlu0 0
    %2747 = vperm.xlu0 %2746, %v2741
    %v2748 = vpop.permute.xlu0 %2747
    %2751 = vset.pattern.permute.xlu0 0
    %2752 = vperm.xlu0 %2751, %v2742
    %v2753 = vpop.permute.xlu0 %2752
    %2756 = vset.pattern.permute.xlu0 0
    %2757 = vperm.xlu0 %2756, %v2743
    %v2758 = vpop.permute.xlu0 %2757
    %2761 = vset.pattern.permute.xlu0 0
    %2762 = vperm.xlu0 %2761, %v2744
    %v2763 = vpop.permute.xlu0 %2762
    %v2765 = vadd.f32 %v2737, %v2748
    %v2766 = vadd.f32 %v2738, %v2753
    %v2767 = vadd.f32 %v2739, %v2758
    %v2768 = vadd.f32 %v2740, %v2763
    %s2769 = scalar_lea.vmem %s63, 32
    %2770 = vst.msk [vmem:[%s2769] sm:$0xff] %vm144, %v2765
    %2771 = vst.msk [vmem:[%s2769 + $0x8] sm:$0xff] %vm144, %v2766
    %2772 = vst.msk [vmem:[%s2769 + $0x10] sm:$0xff] %vm144, %v2767
    %2773 = vst.msk [vmem:[%s2769 + $0x18] sm:$0xff] %vm144, %v2768
    // Predicated region
    $region110: #{grounding_dino_forward.1} parent=1 // pred_check
      _
    $region111: #{grounding_dino_forward.1} parent=1 // pred_check_branch
      %2775 = sbr.rel (0) target = $region113
    $region112: #{grounding_dino_forward.1} parent=1 // pred_region
      %2777 = vsyncadd [#allocation4], 0
      %s2778 = sshll.u32 [#allocation3], 4
      %s2779 = int_to_ptr.vmem [resolvable:$true] %s2778
      %s2780 = sshll.u32 %s55, 4
      %s2781 = int_to_ptr.hbm [resolvable:$true] %s2780
      %2786 = dma.vmem_to_hbm [thread:$0]  %s2779, 256, %s2781, [#allocation4], 128, 128, 8
    $region113: #{grounding_dino_forward.1} parent=1 // pred_fallthru
      _
    // Predicated region
    $region114: #{grounding_dino_forward.1} parent=1 // pred_check
      _
    $region115: #{grounding_dino_forward.1} parent=1 // pred_check_branch
      %2788 = sbr.rel (0) target = $region117
    $region116: #{grounding_dino_forward.1} parent=1 // pred_region
      _
    $region117: #{grounding_dino_forward.1} parent=1 // pred_fallthru
      _
    // Predicated region
    $region118: #{grounding_dino_forward.1} parent=1 // pred_check
      _
    $region119: #{grounding_dino_forward.1} parent=1 // pred_check_branch
      %2790 = sbr.rel (0) target = $region121
    $region120: #{grounding_dino_forward.1} parent=1 // pred_region
      _
    $region121: #{grounding_dino_forward.1} parent=1 // pred_fallthru
      _
    // Predicated region
    $region122: #{grounding_dino_forward.1} parent=1 // pred_check
      _
    $region123: #{grounding_dino_forward.1} parent=1 // pred_check_branch
      %2792 = sbr.rel (0) target = $region125
    $region124: #{grounding_dino_forward.1} parent=1 // pred_region
      _
    $region125: #{grounding_dino_forward.1} parent=1 // pred_fallthru
      _
    // Predicated region
    $region126: #{grounding_dino_forward.1} parent=1 // pred_check
      _
    $region127: #{grounding_dino_forward.1} parent=1 // pred_check_branch
      %2794 = sbr.rel (0) target = $region129
    $region128: #{grounding_dino_forward.1} parent=1 // pred_region
      _
    $region129: #{grounding_dino_forward.1} parent=1 // pred_fallthru
      _
    // Predicated region
    $region130: #{grounding_dino_forward.1} parent=1 // pred_check
      _
    $region131: #{grounding_dino_forward.1} parent=1 // pred_check_branch
      %2796 = sbr.rel (0) target = $region133
    $region132: #{grounding_dino_forward.1} parent=1 // pred_region
      %2798 = dma.done [#allocation4], 256
    $region133: #{grounding_dino_forward.1} parent=1 // pred_fallthru
      _
    // Predicated region
    $region134: #{grounding_dino_forward.1} parent=1 // pred_check
      _
    $region135: #{grounding_dino_forward.1} parent=1 // pred_check_branch
      %2800 = sbr.rel (0) target = $region137
    $region136: #{grounding_dino_forward.1} parent=1 // pred_region
      _
    $region137: #{grounding_dino_forward.1} parent=1 // pred_fallthru
      _
    // Predicated region
    $region138: #{grounding_dino_forward.1} parent=1 // pred_check
      _
    $region139: #{grounding_dino_forward.1} parent=1 // pred_check_branch
      %2802 = sbr.rel (0) target = $region141
    $region140: #{grounding_dino_forward.1} parent=1 // pred_region
      _
    $region141: #{grounding_dino_forward.1} parent=1 // pred_fallthru
      _
    // Predicated region
    $region142: #{grounding_dino_forward.1} parent=1 // pred_check
      _
    $region143: #{grounding_dino_forward.1} parent=1 // pred_check_branch
      %2804 = sbr.rel (0) target = $region145
    $region144: #{grounding_dino_forward.1} parent=1 // pred_region
      _
    $region145: #{grounding_dino_forward.1} parent=1 // pred_fallthru
      _
    // Predicated region
    $region146: #{grounding_dino_forward.1} parent=1 // pred_check
      _
    $region147: #{grounding_dino_forward.1} parent=1 // pred_check_branch
      %2806 = sbr.rel (0) target = $region149
    $region148: #{grounding_dino_forward.1} parent=1 // pred_region
      _
    $region149: #{grounding_dino_forward.1} parent=1 // pred_fallthru
      _
    %2807 = vsyncpa [#allocation4], 1

</llo_original>
